<compile_context>
chip_gen: v7x
topology: tpu7x:2x2x1
jax: 0.10.0
libtpu: 0.0.40
codegen_flags: <defaults>
</compile_context>

<pallas_src>
import math
import functools

import jax
import jax.numpy as jnp
from jax.experimental import pallas as pl
from jax.experimental.pallas import tpu as pltpu

EPS = 1e-6          # matches reference Norm(eps=1e-6)
_NEG_BIG = 1e9


# ----------------------------------------------------------------------------
# Shared math helpers (used both inside kernels and in the pure-JAX reference)
# ----------------------------------------------------------------------------
def _layer_norm(x, gamma, beta):
    # Unbiased std (divide by D-1), matching the reference Norm module.
    mean = jnp.mean(x, axis=-1, keepdims=True)
    d = x - mean
    var = jnp.sum(d * d, axis=-1, keepdims=True) * (1.0 / (x.shape[-1] - 1))
    std = jnp.sqrt(var)
    return gamma * d * (1.0 / (std + EPS)) + beta


def _vmem_limit_bytes():
    cap = 64 * 1024 * 1024   # conservative fallback (safe on v5e/v6e/v7x)
    try:
        info = pltpu.get_tpu_info()
        cap = int(getattr(info, "vmem_capacity_bytes", cap))
    except Exception:
        pass
    return min(cap * 3 // 4, 100 * 1024 * 1024)


def _batch_block(B, target=8):
    bb = min(B, target)
    while B % bb:
        bb -= 1
    return bb


def _ff_chunk(d_ff):
    for t in (512, 256, 128):
        if d_ff % t == 0:
            return t
    return d_ff


def _vocab_tile(v):
    for t in (2048, 1024, 512, 256, 128):
        if v % t == 0:
            return t
    return v


# ----------------------------------------------------------------------------
# Pallas kernels
# ----------------------------------------------------------------------------
def encoder_stack_kernel(x_ref, mask_ref,
                         ln1_g_ref, ln1_b_ref,
                         wqkv_ref, bqkv_ref,
                         wo_ref, bo_ref,
                         ln2_g_ref, ln2_b_ref,
                         w1_ref, b1_ref, w2_ref, b2_ref,
                         lnf_g_ref, lnf_b_ref,
                         o_ref,
                         h_ref, ctx_ref, x2_ref,
                         *, num_heads):
    """Grid = (batch_block, layer, ffn_chunk).

    h_ref   : [Bb*S, D] f32 resident activation (persists across layer/chunk axes)
    ctx_ref : [Bb, S, D] bf16 attention context
    x2_ref  : [Bb*S, D] bf16 LN2 output reused by every FFN chunk of a layer
    Attention + projections run only at chunk 0; FFN weight chunks are streamed
    by the BlockSpec pipeline and accumulated directly into h_ref.
    """
    l = pl.program_id(1)
    c = pl.program_id(2)
    n_layers = pl.num_programs(1)
    n_chunks = pl.num_programs(2)
    bf = jnp.bfloat16

    Bb, S, D = x_ref.shape
    rows = Bb * S
    dk = D // num_heads
    inv_sqrt_dk = 1.0 / math.sqrt(dk)

    # Fresh batch block: load activation into the resident VMEM scratch.
    @pl.when(jnp.logical_and(l == 0, c == 0))
    def _():
        h_ref[...] = x_ref[...].reshape(rows, D)

    # ---- sublayer 1 (attention) + LN2: runs once per layer, at chunk 0 -------
    @pl.when(c == 0)
    def _():
        x = h_ref[...]                                   # [rows, D] f32
        x2 = _layer_norm(x, ln1_g_ref[0], ln1_b_ref[0]).astype(bf)

        # Fused QKV projection (single [D, 3D] matmul).
        qkv = jnp.dot(x2, wqkv_ref[0],
                      preferred_element_type=jnp.float32) + bqkv_ref[0]
        # Fold 1/sqrt(dk) into q once (instead of scaling every [S,S] score).
        q = (qkv[:, :D] * inv_sqrt_dk).astype(bf).reshape(Bb, S, D)
        k = qkv[:, D:2 * D].astype(bf).reshape(Bb, S, D)
        v = qkv[:, 2 * D:].astype(bf).reshape(Bb, S, D)

        # Additive mask bias (0 keep, -1e9 masked), broadcast over queries.
        bias = (mask_ref[...] - 1.0) * _NEG_BIG          # [Bb, 1, S]

        for hh in range(num_heads):                      # static loop, small H
            qh = q[:, :, hh * dk:(hh + 1) * dk]
            kh = k[:, :, hh * dk:(hh + 1) * dk]
            vh = v[:, :, hh * dk:(hh + 1) * dk]
            s = jnp.einsum("bqd,bkd->bqk", qh, kh,
                           preferred_element_type=jnp.float32)    # [Bb, S, S]
            s = s + bias
            s = s - jnp.max(s, axis=-1, keepdims=True)
            p = jnp.exp(s)
            p = p * (1.0 / jnp.sum(p, axis=-1, keepdims=True))
            ctxh = jnp.einsum("bqk,bkd->bqd", p.astype(bf), vh,
                              preferred_element_type=jnp.float32)  # [Bb, S, dk]
            ctx_ref[:, :, hh * dk:(hh + 1) * dk] = ctxh.astype(bf)

        attn = jnp.dot(ctx_ref[...].reshape(rows, D), wo_ref[0],
                       preferred_element_type=jnp.float32) + bo_ref[0]
        x = x + attn                                     # dropout == identity (eval)

        # Cache LN2 output (bf16) for all FFN chunks; store post-attn residual.
        x2_ref[...] = _layer_norm(x, ln2_g_ref[0], ln2_b_ref[0]).astype(bf)
        h_ref[...] = x

    # ---- sublayer 2 (FFN): one d_ff chunk per grid step, accumulated --------
    x2b = x2_ref[...]                                    # [rows, D] bf16
    h1 = jnp.dot(x2b, w1_ref[0],
                 preferred_element_type=jnp.float32) + b1_ref[0]
    h1 = jnp.maximum(h1, 0.0).astype(bf)
    part = jnp.dot(h1, w2_ref[0], preferred_element_type=jnp.float32)
    h_ref[...] = h_ref[...] + part

    @pl.when(c == n_chunks - 1)
    def _():
        h_ref[...] = h_ref[...] + b2_ref[0]

    # Final layer & chunk: fuse the final LayerNorm and emit bf16.
    @pl.when(jnp.logical_and(l == n_layers - 1, c == n_chunks - 1))
    def _():
        xn = _layer_norm(h_ref[...], lnf_g_ref[...], lnf_b_ref[...])
        o_ref[...] = xn.astype(o_ref.dtype).reshape(Bb, S, D)


def output_head_kernel(x_ref, w_ref, b_ref, o_ref):
    """Grid = (batch_block, vocab_tile).  Input is the bf16 post-LN activation."""
    Bb, S, D = x_ref.shape
    x = x_ref[...].reshape(Bb * S, D)
    y = jnp.dot(x, w_ref[...], preferred_element_type=jnp.float32) + b_ref[...]
    o_ref[...] = y.reshape(Bb, S, -1).astype(o_ref.dtype)


# ----------------------------------------------------------------------------
# Wrappers around pallas_call
# ----------------------------------------------------------------------------
def run_encoder_stack(x, mask, p, num_heads, block_b=8):
    B, S, D = x.shape
    L = p["wqkv"].shape[0]
    d_ff = p["w1"].shape[2]
    Bb = _batch_block(B, block_b)
    nB = B // Bb
    tC = _ff_chunk(d_ff)
    nC = d_ff // tC

    def layer_spec(shape):
        # stacked [L, ...] parameter, constant across the ffn-chunk axis
        return pl.BlockSpec((1,) + shape, lambda b, l, c: (l, 0, 0))

    in_specs = [
        pl.BlockSpec((Bb, S, D), lambda b, l, c: (b, 0, 0)),    # x
        pl.BlockSpec((Bb, 1, S), lambda b, l, c: (b, 0, 0)),    # mask
        layer_spec((1, D)), layer_spec((1, D)),                 # ln1 gamma/beta
        layer_spec((D, 3 * D)), layer_spec((1, 3 * D)),         # fused wqkv, bqkv
        layer_spec((D, D)), layer_spec((1, D)),                 # wo, bo
        layer_spec((1, D)), layer_spec((1, D)),                 # ln2 gamma/beta
        pl.BlockSpec((1, D, tC), lambda b, l, c: (l, 0, c)),    # w1 chunk
        pl.BlockSpec((1, 1, tC), lambda b, l, c: (l, 0, c)),    # b1 chunk
        pl.BlockSpec((1, tC, D), lambda b, l, c: (l, c, 0)),    # w2 chunk
        layer_spec((1, D)),                                     # b2
        pl.BlockSpec((1, D), lambda b, l, c: (0, 0)),           # ln_f gamma
        pl.BlockSpec((1, D), lambda b, l, c: (0, 0)),           # ln_f beta
    ]
    return pl.pallas_call(
        functools.partial(encoder_stack_kernel, num_heads=num_heads),
        out_shape=jax.ShapeDtypeStruct((B, S, D), jnp.bfloat16),
        grid=(nB, L, nC),
        in_specs=in_specs,
        out_specs=pl.BlockSpec((Bb, S, D), lambda b, l, c: (b, 0, 0)),
        scratch_shapes=[pltpu.VMEM((Bb * S, D), jnp.float32),    # resident activation
                        pltpu.VMEM((Bb, S, D), jnp.bfloat16),    # attention context
                        pltpu.VMEM((Bb * S, D), jnp.bfloat16)],  # LN2 output cache
        compiler_params=pltpu.CompilerParams(
            dimension_semantics=("parallel", "arbitrary", "arbitrary"),
            vmem_limit_bytes=_vmem_limit_bytes()),
    )(x, mask,
      p["ln1_g"], p["ln1_b"],
      p["wqkv"], p["bqkv"], p["wo"], p["bo"],
      p["ln2_g"], p["ln2_b"],
      p["w1"], p["b1"], p["w2"], p["b2"],
      p["ln_f_g"], p["ln_f_b"])


def run_output_head(xn, w_out, b_out, block_b=8):
    B, S, D = xn.shape
    V = w_out.shape[1]
    tV = _vocab_tile(V)
    nV = V // tV
    Bb = _batch_block(B, block_b)
    nB = B // Bb
    return pl.pallas_call(
        output_head_kernel,
        out_shape=jax.ShapeDtypeStruct((B, S, V), jnp.float32),
        grid=(nB, nV),
        in_specs=[
            pl.BlockSpec((Bb, S, D), lambda b, j: (b, 0, 0)),   # bf16 activations
            pl.BlockSpec((D, tV), lambda b, j: (0, j)),         # w_out tile
            pl.BlockSpec((1, tV), lambda b, j: (0, j)),         # b_out tile
        ],
        out_specs=pl.BlockSpec((Bb, S, tV), lambda b, j: (b, 0, j)),
        compiler_params=pltpu.CompilerParams(
            dimension_semantics=("parallel", "arbitrary"),
            vmem_limit_bytes=_vmem_limit_bytes()),
    )(xn, w_out, b_out)


# ----------------------------------------------------------------------------
# Model glue: embedding + positional encoding (gather / table setup stays JAX)
# ----------------------------------------------------------------------------
def positional_encoding(max_len, d_model):
    pos = jnp.arange(max_len, dtype=jnp.float32)[:, None]
    i = jnp.arange(0, d_model, 2, dtype=jnp.float32)
    div = jnp.exp(-i * (math.log(10000.0) / d_model))
    pe = jnp.zeros((max_len, d_model), jnp.float32)
    pe = pe.at[:, 0::2].set(jnp.sin(pos * div))
    pe = pe.at[:, 1::2].set(jnp.cos(pos * div))
    return pe


def transformer_encoder_forward(src, src_mask, params, num_heads):
    d_model = params["embed"].shape[1]
    # TODO(synk): embedding gather + PE add kept in plain JAX (glue, not hot path).
    x = params["embed"][src] * jnp.sqrt(jnp.float32(d_model))
    x = x + params["pe"][: src.shape[1]][None]
    mask = src_mask.astype(jnp.float32)
    xn = run_encoder_stack(x, mask, params, num_heads)   # bf16, final LN fused in
    return run_output_head(xn, params["w_out"], params["b_out"])


# ----------------------------------------------------------------------------
# Pure-JAX reference (same math incl. bf16 matmul operands / f32 accumulation)
# ----------------------------------------------------------------------------
def reference_forward(src, src_mask, params, num_heads):
    bf = jnp.bfloat16
    D = params["embed"].shape[1]
    x = params["embed"][src] * jnp.sqrt(jnp.float32(D))
    x = x + params["pe"][: src.shape[1]][None]
    B, S, _ = x.shape
    H = num_heads
    dk = D // H
    inv_sqrt_dk = 1.0 / math.sqrt(dk)
    bias = (src_mask.astype(jnp.float32) - 1.0) * _NEG_BIG     # [B,1,S]
    bias = bias[:, :, None, :]                                 # [B,1,1,S]
    L = params["wqkv"].shape[0]
    for l in range(L):
        x2 = _layer_norm(x, params["ln1_g"][l], params["ln1_b"][l]).astype(bf)
        qkv = jnp.dot(x2, params["wqkv"][l],
                      preferred_element_type=jnp.float32) + params["bqkv"][l]
        q = (qkv[..., :D] * inv_sqrt_dk).astype(bf)
        k = qkv[..., D:2 * D].astype(bf)
        v = qkv[..., 2 * D:].astype(bf)
        qh = q.reshape(B, S, H, dk).transpose(0, 2, 1, 3)
        kh = k.reshape(B, S, H, dk).transpose(0, 2, 1, 3)
        vh = v.reshape(B, S, H, dk).transpose(0, 2, 1, 3)
        s = jnp.einsum("bhqd,bhkd->bhqk", qh, kh,
                       preferred_element_type=jnp.float32) + bias
        s = s - jnp.max(s, axis=-1, keepdims=True)
        p = jnp.exp(s)
        p = p / jnp.sum(p, axis=-1, keepdims=True)
        ctx = jnp.einsum("bhqk,bhkd->bhqd", p.astype(bf), vh,
                         preferred_element_type=jnp.float32)
        ctx = ctx.transpose(0, 2, 1, 3).reshape(B, S, D).astype(bf)
        x = x + jnp.dot(ctx, params["wo"][l],
                        preferred_element_type=jnp.float32) + params["bo"][l]
        x2 = _layer_norm(x, params["ln2_g"][l], params["ln2_b"][l]).astype(bf)
        h1 = jnp.dot(x2, params["w1"][l],
                     preferred_element_type=jnp.float32) + params["b1"][l]
        h1 = jnp.maximum(h1, 0.0).astype(bf)
        x = x + jnp.dot(h1, params["w2"][l],
                        preferred_element_type=jnp.float32) + params["b2"][l]
    xn = _layer_norm(x, params["ln_f_g"], params["ln_f_b"]).astype(bf)
    return jnp.dot(xn, params["w_out"],
                   preferred_element_type=jnp.float32) + params["b_out"]


# ----------------------------------------------------------------------------
# Deterministic parameter init (matmul weights stored in bf16, rest f32)
# ----------------------------------------------------------------------------
def init_params(key, src_vocab, trg_vocab, d_model, d_ff, num_layers, max_len=64):
    scale = 0.02
    bf = jnp.bfloat16
    keys = jax.random.split(key, 3 + num_layers)

    def dense(k, shape):
        return (scale * jax.random.normal(k, shape, jnp.float32)).astype(bf)

    def bias(k, shape):
        return scale * jax.random.normal(k, shape, jnp.float32)

    names = ["ln1_g", "ln1_b", "wqkv", "bqkv", "wo", "bo",
             "ln2_g", "ln2_b", "w1", "b1", "w2", "b2"]
    per = {n: [] for n in names}
    for l in range(num_layers):
        lk = jax.random.split(keys[3 + l], 12)
        per["ln1_g"].append(jnp.ones((1, d_model), jnp.float32))
        per["ln1_b"].append(jnp.zeros((1, d_model), jnp.float32))
        wq = dense(lk[0], (d_model, d_model))
        wk = dense(lk[1], (d_model, d_model))
        wv = dense(lk[2], (d_model, d_model))
        per["wqkv"].append(jnp.concatenate([wq, wk, wv], axis=1))
        per["bqkv"].append(jnp.concatenate(
            [bias(lk[3], (1, d_model)), bias(lk[4], (1, d_model)),
             bias(lk[5], (1, d_model))], axis=1))
        per["wo"].append(dense(lk[6], (d_model, d_model)))
        per["bo"].append(bias(lk[7], (1, d_model)))
        per["ln2_g"].append(jnp.ones((1, d_model), jnp.float32))
        per["ln2_b"].append(jnp.zeros((1, d_model), jnp.float32))
        per["w1"].append(dense(lk[8], (d_model, d_ff)))
        per["b1"].append(bias(lk[9], (1, d_ff)))
        per["w2"].append(dense(lk[10], (d_ff, d_model)))
        per["b2"].append(bias(lk[11], (1, d_model)))

    params = {
        "embed": scale * jax.random.normal(keys[0], (src_vocab, d_model), jnp.float32),
        "pe": positional_encoding(max_len, d_model),
        "ln_f_g": jnp.ones((1, d_model), jnp.float32),
        "ln_f_b": jnp.zeros((1, d_model), jnp.float32),
        "w_out": dense(keys[1], (d_model, trg_vocab)),
        "b_out": bias(keys[2], (1, trg_vocab)),
    }
    for n in names:
        params[n] = jnp.stack(per[n], axis=0)          # [L, ...]
    return params


if __name__ == "__main__":
    # Small synthetic config
    SRC_VOCAB, TRG_VOCAB = 50, 40
    D_MODEL, D_FF, N_LAYERS, N_HEADS = 32, 64, 2, 4
    B, S = 2, 8

    key = jax.random.PRNGKey(0)
    k_param, k_src = jax.random.split(key)
    params = init_params(k_param, SRC_VOCAB, TRG_VOCAB, D_MODEL, D_FF, N_LAYERS)

    src = jax.random.randint(k_src, (B, S), 0, SRC_VOCAB, dtype=jnp.int32)
    # src_mask: [B, 1, S]; last two positions of batch element 1 are padding.
    src_mask = jnp.ones((B, 1, S), jnp.float32).at[1, 0, -2:].set(0.0)

    out = jax.block_until_ready(
        transformer_encoder_forward(src, src_mask, params, N_HEADS))
    ref = jax.block_until_ready(reference_forward(src, src_mask, params, N_HEADS))

    assert out.shape == (B, S, TRG_VOCAB), out.shape
    max_err = float(jnp.max(jnp.abs(out - ref)))
    assert jnp.allclose(out, ref, atol=2e-3, rtol=2e-3), f"mismatch vs reference: {max_err}"

    print("KERNEL_OK")
</pallas_src>

<mosaic_0001>
module attributes {stable_mosaic.version = 11 : i64} {
  func.func @encoder_stack_kernel(%arg0: i32, %arg1: i32, %arg2: i32, %arg3: memref<2x8x32xf32, #tpu.memory_space<vmem>>, %arg4: memref<2x1x8xf32, #tpu.memory_space<vmem>>, %arg5: memref<1x1x32xf32, #tpu.memory_space<vmem>>, %arg6: memref<1x1x32xf32, #tpu.memory_space<vmem>>, %arg7: memref<1x32x96xbf16, #tpu.memory_space<vmem>>, %arg8: memref<1x1x96xf32, #tpu.memory_space<vmem>>, %arg9: memref<1x32x32xbf16, #tpu.memory_space<vmem>>, %arg10: memref<1x1x32xf32, #tpu.memory_space<vmem>>, %arg11: memref<1x1x32xf32, #tpu.memory_space<vmem>>, %arg12: memref<1x1x32xf32, #tpu.memory_space<vmem>>, %arg13: memref<1x32x64xbf16, #tpu.memory_space<vmem>>, %arg14: memref<1x1x64xf32, #tpu.memory_space<vmem>>, %arg15: memref<1x64x32xbf16, #tpu.memory_space<vmem>>, %arg16: memref<1x1x32xf32, #tpu.memory_space<vmem>>, %arg17: memref<1x32xf32, #tpu.memory_space<vmem>>, %arg18: memref<1x32xf32, #tpu.memory_space<vmem>>, %arg19: memref<2x8x32xbf16, #tpu.memory_space<vmem>>, %arg20: memref<16x32xf32, #tpu.memory_space<vmem>>, %arg21: memref<2x8x32xbf16, #tpu.memory_space<vmem>>, %arg22: memref<16x32xbf16, #tpu.memory_space<vmem>>) attributes {dimension_semantics = [#tpu.dimension_semantics<parallel>, #tpu.dimension_semantics<arbitrary>, #tpu.dimension_semantics<arbitrary>], iteration_bounds = array<i64: 1, 2, 1>, scalar_prefetch = 0 : i64, scratch_operands = 3 : i64, tpu.core_type = #tpu.core_type<tc>, window_params = [{transform_indices = @transform_0, window_bounds = array<i64: 2, 8, 32>}, {transform_indices = @transform_1, window_bounds = array<i64: 2, 1, 8>}, {transform_indices = @transform_2, window_bounds = array<i64: 1, 1, 32>}, {transform_indices = @transform_3, window_bounds = array<i64: 1, 1, 32>}, {transform_indices = @transform_4, window_bounds = array<i64: 1, 32, 96>}, {transform_indices = @transform_5, window_bounds = array<i64: 1, 1, 96>}, {transform_indices = @transform_6, window_bounds = array<i64: 1, 32, 32>}, {transform_indices = @transform_7, window_bounds = array<i64: 1, 1, 32>}, {transform_indices = @transform_8, window_bounds = array<i64: 1, 1, 32>}, {transform_indices = @transform_9, window_bounds = array<i64: 1, 1, 32>}, {transform_indices = @transform_10, window_bounds = array<i64: 1, 32, 64>}, {transform_indices = @transform_11, window_bounds = array<i64: 1, 1, 64>}, {transform_indices = @transform_12, window_bounds = array<i64: 1, 64, 32>}, {transform_indices = @transform_13, window_bounds = array<i64: 1, 1, 32>}, {pipeline_mode = #tpu.pipeline_mode<synchronous>, transform_indices = @transform_14, window_bounds = array<i64: 1, 32>}, {pipeline_mode = #tpu.pipeline_mode<synchronous>, transform_indices = @transform_15, window_bounds = array<i64: 1, 32>}, {transform_indices = @transform_16, window_bounds = array<i64: 2, 8, 32>}]} {
    %c0_i32 = arith.constant 0 : i32
    %0 = arith.cmpi eq, %arg1, %c0_i32 : i32
    %c0_i32_0 = arith.constant 0 : i32
    %1 = arith.cmpi eq, %arg2, %c0_i32_0 : i32
    %2 = arith.andi %0, %1 : i1
    %3 = arith.extui %2 : i1 to i32
    %c0_i32_1 = arith.constant 0 : i32
    %4 = arith.cmpi ne, %3, %c0_i32_1 : i32
    scf.if %4 {
      %c0_24 = arith.constant 0 : index
      %c0_25 = arith.constant 0 : index
      %c0_26 = arith.constant 0 : index
      %33 = vector.load %arg3[%c0_24, %c0_25, %c0_26] : memref<2x8x32xf32, #tpu.memory_space<vmem>>, vector<2x8x32xf32>
      %34 = vector.shape_cast %33 : vector<2x8x32xf32> to vector<16x32xf32>
      %c0_27 = arith.constant 0 : index
      %c0_28 = arith.constant 0 : index
      %35 = vector.load %arg20[%c0_27, %c0_28] : memref<16x32xf32, #tpu.memory_space<vmem>>, vector<16x32xf32>
      tpu.vector_store %arg20[%c0_27, %c0_28], %34 {strides = array<i32>} : memref<16x32xf32, #tpu.memory_space<vmem>>, vector<16x32xf32>,
    } else {
    }
    %c0_i32_2 = arith.constant 0 : i32
    %5 = arith.cmpi eq, %arg2, %c0_i32_2 : i32
    %6 = arith.extui %5 : i1 to i32
    %c0_i32_3 = arith.constant 0 : i32
    %7 = arith.cmpi ne, %6, %c0_i32_3 : i32
    scf.if %7 {
      %c0_24 = arith.constant 0 : index
      %c0_25 = arith.constant 0 : index
      %33 = vector.load %arg20[%c0_24, %c0_25] : memref<16x32xf32, #tpu.memory_space<vmem>>, vector<16x32xf32>
      %c0_26 = arith.constant 0 : index
      %c0_27 = arith.constant 0 : index
      %c0_28 = arith.constant 0 : index
      %34 = vector.load %arg5[%c0_26, %c0_27, %c0_28] : memref<1x1x32xf32, #tpu.memory_space<vmem>>, vector<1x1x32xf32>
      %35 = vector.shape_cast %34 : vector<1x1x32xf32> to vector<1x32xf32>
      %c0_29 = arith.constant 0 : index
      %c0_30 = arith.constant 0 : index
      %c0_31 = arith.constant 0 : index
      %36 = vector.load %arg6[%c0_29, %c0_30, %c0_31] : memref<1x1x32xf32, #tpu.memory_space<vmem>>, vector<1x1x32xf32>
      %37 = vector.shape_cast %36 : vector<1x1x32xf32> to vector<1x32xf32>
      %cst_32 = arith.constant dense<0.000000e+00> : vector<16xf32>
      %38 = vector.multi_reduction <add>, %33, %cst_32 [1] : vector<16x32xf32> to vector<16xf32>
      %39 = vector.shape_cast %38 : vector<16xf32> to vector<16x1xf32>
      %cst_33 = arith.constant 3.200000e+01 : f32
      %40 = vector.broadcast %cst_33 : f32 to vector<16x1xf32>
      %41 = arith.divf %39, %40 : vector<16x1xf32>
      %42 = vector.broadcast %41 : vector<16x1xf32> to vector<16x32xf32>
      %43 = arith.subf %33, %42 : vector<16x32xf32>
      %44 = arith.mulf %43, %43 : vector<16x32xf32>
      %cst_34 = arith.constant dense<0.000000e+00> : vector<16xf32>
      %45 = vector.multi_reduction <add>, %44, %cst_34 [1] : vector<16x32xf32> to vector<16xf32>
      %46 = vector.shape_cast %45 : vector<16xf32> to vector<16x1xf32>
      %cst_35 = arith.constant 0.0322580636 : f32
      %47 = vector.broadcast %cst_35 : f32 to vector<16x1xf32>
      %48 = arith.mulf %46, %47 : vector<16x1xf32>
      %49 = math.sqrt %48 : vector<16x1xf32>
      %50 = vector.broadcast %35 : vector<1x32xf32> to vector<16x32xf32>
      %51 = arith.mulf %50, %43 : vector<16x32xf32>
      %cst_36 = arith.constant 9.99999997E-7 : f32
      %52 = vector.broadcast %cst_36 : f32 to vector<16x1xf32>
      %53 = arith.addf %49, %52 : vector<16x1xf32>
      %cst_37 = arith.constant 1.000000e+00 : f32
      %54 = vector.broadcast %cst_37 : f32 to vector<16x1xf32>
      %55 = arith.divf %54, %53 : vector<16x1xf32>
      %56 = vector.broadcast %55 : vector<16x1xf32> to vector<16x32xf32>
      %57 = arith.mulf %51, %56 : vector<16x32xf32>
      %58 = vector.broadcast %37 : vector<1x32xf32> to vector<16x32xf32>
      %59 = arith.addf %57, %58 : vector<16x32xf32>
      %60 = arith.truncf %59 : vector<16x32xf32> to vector<16x32xbf16>
      %c0_38 = arith.constant 0 : index
      %c0_39 = arith.constant 0 : index
      %c0_40 = arith.constant 0 : index
      %61 = vector.load %arg7[%c0_38, %c0_39, %c0_40] : memref<1x32x96xbf16, #tpu.memory_space<vmem>>, vector<1x32x96xbf16>
      %62 = vector.shape_cast %61 : vector<1x32x96xbf16> to vector<32x96xbf16>
      %cst_41 = arith.constant dense<0.000000e+00> : vector<16x96xf32>
      %63 = tpu.matmul %60, %62, %cst_41 {dimension_numbers = #tpu.dot_dimension_numbers<[1], [0], [0], [1], [0, 0, 1, 1], [], []>} : vector<16x32xbf16>, vector<32x96xbf16>, vector<16x96xf32> -> vector<16x96xf32>
      %c0_42 = arith.constant 0 : index
      %c0_43 = arith.constant 0 : index
      %c0_44 = arith.constant 0 : index
      %64 = vector.load %arg8[%c0_42, %c0_43, %c0_44] : memref<1x1x96xf32, #tpu.memory_space<vmem>>, vector<1x1x96xf32>
      %65 = vector.shape_cast %64 : vector<1x1x96xf32> to vector<1x96xf32>
      %66 = vector.broadcast %65 : vector<1x96xf32> to vector<16x96xf32>
      %67 = arith.addf %63, %66 : vector<16x96xf32>
      %68 = vector.extract_strided_slice %67 {offsets = [0, 0], sizes = [16, 32], strides = [1, 1]} : vector<16x96xf32> to vector<16x32xf32>
      %cst_45 = arith.constant 0.353553385 : f32
      %69 = vector.broadcast %cst_45 : f32 to vector<16x32xf32>
      %70 = arith.mulf %68, %69 : vector<16x32xf32>
      %71 = arith.truncf %70 : vector<16x32xf32> to vector<16x32xbf16>
      %72 = vector.shape_cast %71 : vector<16x32xbf16> to vector<2x8x32xbf16>
      %73 = vector.extract_strided_slice %67 {offsets = [0, 32], sizes = [16, 32], strides = [1, 1]} : vector<16x96xf32> to vector<16x32xf32>
      %74 = arith.truncf %73 : vector<16x32xf32> to vector<16x32xbf16>
      %75 = vector.shape_cast %74 : vector<16x32xbf16> to vector<2x8x32xbf16>
      %76 = vector.extract_strided_slice %67 {offsets = [0, 64], sizes = [16, 32], strides = [1, 1]} : vector<16x96xf32> to vector<16x32xf32>
      %77 = arith.truncf %76 : vector<16x32xf32> to vector<16x32xbf16>
      %78 = vector.shape_cast %77 : vector<16x32xbf16> to vector<2x8x32xbf16>
      %c0_46 = arith.constant 0 : index
      %c0_47 = arith.constant 0 : index
      %c0_48 = arith.constant 0 : index
      %79 = vector.load %arg4[%c0_46, %c0_47, %c0_48] : memref<2x1x8xf32, #tpu.memory_space<vmem>>, vector<2x1x8xf32>
      %cst_49 = arith.constant 1.000000e+00 : f32
      %80 = vector.broadcast %cst_49 : f32 to vector<2x1x8xf32>
      %81 = arith.subf %79, %80 : vector<2x1x8xf32>
      %cst_50 = arith.constant 1.000000e+09 : f32
      %82 = vector.broadcast %cst_50 : f32 to vector<2x1x8xf32>
      %83 = arith.mulf %81, %82 : vector<2x1x8xf32>
      %84 = vector.extract_strided_slice %72 {offsets = [0, 0, 0], sizes = [2, 8, 8], strides = [1, 1, 1]} : vector<2x8x32xbf16> to vector<2x8x8xbf16>
      %85 = vector.extract_strided_slice %75 {offsets = [0, 0, 0], sizes = [2, 8, 8], strides = [1, 1, 1]} : vector<2x8x32xbf16> to vector<2x8x8xbf16>
      %86 = vector.extract_strided_slice %78 {offsets = [0, 0, 0], sizes = [2, 8, 8], strides = [1, 1, 1]} : vector<2x8x32xbf16> to vector<2x8x8xbf16>
      "tpu.trace_start"() <{level = 10 : i32, message = "bqd,bkd->bqk"}> : () -> ()
      %cst_51 = arith.constant dense<0.000000e+00> : vector<2x8x8xf32>
      %87 = tpu.matmul %84, %85, %cst_51 {dimension_numbers = #tpu.dot_dimension_numbers<[2], [2], [1], [1], [0, 0, 0, 1, 1, 1], [0], [0]>} : vector<2x8x8xbf16>, vector<2x8x8xbf16>, vector<2x8x8xf32> -> vector<2x8x8xf32>
      "tpu.trace_stop"() : () -> ()
      %88 = vector.broadcast %83 : vector<2x1x8xf32> to vector<2x8x8xf32>
      %89 = arith.addf %87, %88 : vector<2x8x8xf32>
      %cst_52 = arith.constant dense<0xFF800000> : vector<2x8xf32>
      %90 = vector.multi_reduction <maximumf>, %89, %cst_52 [2] : vector<2x8x8xf32> to vector<2x8xf32>
      %91 = vector.shape_cast %90 : vector<2x8xf32> to vector<2x8x1xf32>
      %92 = vector.broadcast %91 : vector<2x8x1xf32> to vector<2x8x8xf32>
      %93 = arith.subf %89, %92 : vector<2x8x8xf32>
      %94 = math.exp %93 : vector<2x8x8xf32>
      %cst_53 = arith.constant dense<0.000000e+00> : vector<2x8xf32>
      %95 = vector.multi_reduction <add>, %94, %cst_53 [2] : vector<2x8x8xf32> to vector<2x8xf32>
      %96 = vector.shape_cast %95 : vector<2x8xf32> to vector<2x8x1xf32>
      %cst_54 = arith.constant 1.000000e+00 : f32
      %97 = vector.broadcast %cst_54 : f32 to vector<2x8x1xf32>
      %98 = arith.divf %97, %96 : vector<2x8x1xf32>
      %99 = vector.broadcast %98 : vector<2x8x1xf32> to vector<2x8x8xf32>
      %100 = arith.mulf %94, %99 : vector<2x8x8xf32>
      %101 = arith.truncf %100 : vector<2x8x8xf32> to vector<2x8x8xbf16>
      "tpu.trace_start"() <{level = 10 : i32, message = "bqk,bkd->bqd"}> : () -> ()
      %cst_55 = arith.constant dense<0.000000e+00> : vector<2x8x8xf32>
      %102 = tpu.matmul %101, %86, %cst_55 {dimension_numbers = #tpu.dot_dimension_numbers<[2], [1], [1], [2], [0, 0, 0, 1, 1, 2], [0], [0]>} : vector<2x8x8xbf16>, vector<2x8x8xbf16>, vector<2x8x8xf32> -> vector<2x8x8xf32>
      "tpu.trace_stop"() : () -> ()
      %103 = arith.truncf %102 : vector<2x8x8xf32> to vector<2x8x8xbf16>
      %c0_56 = arith.constant 0 : index
      %c0_57 = arith.constant 0 : index
      %c0_58 = arith.constant 0 : index
      %104 = vector.load %arg21[%c0_56, %c0_57, %c0_58] : memref<2x8x32xbf16, #tpu.memory_space<vmem>>, vector<2x8x8xbf16>
      tpu.vector_store %arg21[%c0_56, %c0_57, %c0_58], %103 {strides = array<i32>} : memref<2x8x32xbf16, #tpu.memory_space<vmem>>, vector<2x8x8xbf16>,
      %105 = vector.extract_strided_slice %72 {offsets = [0, 0, 8], sizes = [2, 8, 8], strides = [1, 1, 1]} : vector<2x8x32xbf16> to vector<2x8x8xbf16>
      %106 = vector.extract_strided_slice %75 {offsets = [0, 0, 8], sizes = [2, 8, 8], strides = [1, 1, 1]} : vector<2x8x32xbf16> to vector<2x8x8xbf16>
      %107 = vector.extract_strided_slice %78 {offsets = [0, 0, 8], sizes = [2, 8, 8], strides = [1, 1, 1]} : vector<2x8x32xbf16> to vector<2x8x8xbf16>
      "tpu.trace_start"() <{level = 10 : i32, message = "bqd,bkd->bqk"}> : () -> ()
      %cst_59 = arith.constant dense<0.000000e+00> : vector<2x8x8xf32>
      %108 = tpu.matmul %105, %106, %cst_59 {dimension_numbers = #tpu.dot_dimension_numbers<[2], [2], [1], [1], [0, 0, 0, 1, 1, 1], [0], [0]>} : vector<2x8x8xbf16>, vector<2x8x8xbf16>, vector<2x8x8xf32> -> vector<2x8x8xf32>
      "tpu.trace_stop"() : () -> ()
      %109 = vector.broadcast %83 : vector<2x1x8xf32> to vector<2x8x8xf32>
      %110 = arith.addf %108, %109 : vector<2x8x8xf32>
      %cst_60 = arith.constant dense<0xFF800000> : vector<2x8xf32>
      %111 = vector.multi_reduction <maximumf>, %110, %cst_60 [2] : vector<2x8x8xf32> to vector<2x8xf32>
      %112 = vector.shape_cast %111 : vector<2x8xf32> to vector<2x8x1xf32>
      %113 = vector.broadcast %112 : vector<2x8x1xf32> to vector<2x8x8xf32>
      %114 = arith.subf %110, %113 : vector<2x8x8xf32>
      %115 = math.exp %114 : vector<2x8x8xf32>
      %cst_61 = arith.constant dense<0.000000e+00> : vector<2x8xf32>
      %116 = vector.multi_reduction <add>, %115, %cst_61 [2] : vector<2x8x8xf32> to vector<2x8xf32>
      %117 = vector.shape_cast %116 : vector<2x8xf32> to vector<2x8x1xf32>
      %cst_62 = arith.constant 1.000000e+00 : f32
      %118 = vector.broadcast %cst_62 : f32 to vector<2x8x1xf32>
      %119 = arith.divf %118, %117 : vector<2x8x1xf32>
      %120 = vector.broadcast %119 : vector<2x8x1xf32> to vector<2x8x8xf32>
      %121 = arith.mulf %115, %120 : vector<2x8x8xf32>
      %122 = arith.truncf %121 : vector<2x8x8xf32> to vector<2x8x8xbf16>
      "tpu.trace_start"() <{level = 10 : i32, message = "bqk,bkd->bqd"}> : () -> ()
      %cst_63 = arith.constant dense<0.000000e+00> : vector<2x8x8xf32>
      %123 = tpu.matmul %122, %107, %cst_63 {dimension_numbers = #tpu.dot_dimension_numbers<[2], [1], [1], [2], [0, 0, 0, 1, 1, 2], [0], [0]>} : vector<2x8x8xbf16>, vector<2x8x8xbf16>, vector<2x8x8xf32> -> vector<2x8x8xf32>
      "tpu.trace_stop"() : () -> ()
      %124 = arith.truncf %123 : vector<2x8x8xf32> to vector<2x8x8xbf16>
      %c0_64 = arith.constant 0 : index
      %c0_65 = arith.constant 0 : index
      %c8 = arith.constant 8 : index
      %125 = vector.load %arg21[%c0_64, %c0_65, %c8] : memref<2x8x32xbf16, #tpu.memory_space<vmem>>, vector<2x8x8xbf16>
      tpu.vector_store %arg21[%c0_64, %c0_65, %c8], %124 {strides = array<i32>} : memref<2x8x32xbf16, #tpu.memory_space<vmem>>, vector<2x8x8xbf16>,
      %126 = vector.extract_strided_slice %72 {offsets = [0, 0, 16], sizes = [2, 8, 8], strides = [1, 1, 1]} : vector<2x8x32xbf16> to vector<2x8x8xbf16>
      %127 = vector.extract_strided_slice %75 {offsets = [0, 0, 16], sizes = [2, 8, 8], strides = [1, 1, 1]} : vector<2x8x32xbf16> to vector<2x8x8xbf16>
      %128 = vector.extract_strided_slice %78 {offsets = [0, 0, 16], sizes = [2, 8, 8], strides = [1, 1, 1]} : vector<2x8x32xbf16> to vector<2x8x8xbf16>
      "tpu.trace_start"() <{level = 10 : i32, message = "bqd,bkd->bqk"}> : () -> ()
      %cst_66 = arith.constant dense<0.000000e+00> : vector<2x8x8xf32>
      %129 = tpu.matmul %126, %127, %cst_66 {dimension_numbers = #tpu.dot_dimension_numbers<[2], [2], [1], [1], [0, 0, 0, 1, 1, 1], [0], [0]>} : vector<2x8x8xbf16>, vector<2x8x8xbf16>, vector<2x8x8xf32> -> vector<2x8x8xf32>
      "tpu.trace_stop"() : () -> ()
      %130 = vector.broadcast %83 : vector<2x1x8xf32> to vector<2x8x8xf32>
      %131 = arith.addf %129, %130 : vector<2x8x8xf32>
      %cst_67 = arith.constant dense<0xFF800000> : vector<2x8xf32>
      %132 = vector.multi_reduction <maximumf>, %131, %cst_67 [2] : vector<2x8x8xf32> to vector<2x8xf32>
      %133 = vector.shape_cast %132 : vector<2x8xf32> to vector<2x8x1xf32>
      %134 = vector.broadcast %133 : vector<2x8x1xf32> to vector<2x8x8xf32>
      %135 = arith.subf %131, %134 : vector<2x8x8xf32>
      %136 = math.exp %135 : vector<2x8x8xf32>
      %cst_68 = arith.constant dense<0.000000e+00> : vector<2x8xf32>
      %137 = vector.multi_reduction <add>, %136, %cst_68 [2] : vector<2x8x8xf32> to vector<2x8xf32>
      %138 = vector.shape_cast %137 : vector<2x8xf32> to vector<2x8x1xf32>
      %cst_69 = arith.constant 1.000000e+00 : f32
      %139 = vector.broadcast %cst_69 : f32 to vector<2x8x1xf32>
      %140 = arith.divf %139, %138 : vector<2x8x1xf32>
      %141 = vector.broadcast %140 : vector<2x8x1xf32> to vector<2x8x8xf32>
      %142 = arith.mulf %136, %141 : vector<2x8x8xf32>
      %143 = arith.truncf %142 : vector<2x8x8xf32> to vector<2x8x8xbf16>
      "tpu.trace_start"() <{level = 10 : i32, message = "bqk,bkd->bqd"}> : () -> ()
      %cst_70 = arith.constant dense<0.000000e+00> : vector<2x8x8xf32>
      %144 = tpu.matmul %143, %128, %cst_70 {dimension_numbers = #tpu.dot_dimension_numbers<[2], [1], [1], [2], [0, 0, 0, 1, 1, 2], [0], [0]>} : vector<2x8x8xbf16>, vector<2x8x8xbf16>, vector<2x8x8xf32> -> vector<2x8x8xf32>
      "tpu.trace_stop"() : () -> ()
      %145 = arith.truncf %144 : vector<2x8x8xf32> to vector<2x8x8xbf16>
      %c0_71 = arith.constant 0 : index
      %c0_72 = arith.constant 0 : index
      %c16 = arith.constant 16 : index
      %146 = vector.load %arg21[%c0_71, %c0_72, %c16] : memref<2x8x32xbf16, #tpu.memory_space<vmem>>, vector<2x8x8xbf16>
      tpu.vector_store %arg21[%c0_71, %c0_72, %c16], %145 {strides = array<i32>} : memref<2x8x32xbf16, #tpu.memory_space<vmem>>, vector<2x8x8xbf16>,
      %147 = vector.extract_strided_slice %72 {offsets = [0, 0, 24], sizes = [2, 8, 8], strides = [1, 1, 1]} : vector<2x8x32xbf16> to vector<2x8x8xbf16>
      %148 = vector.extract_strided_slice %75 {offsets = [0, 0, 24], sizes = [2, 8, 8], strides = [1, 1, 1]} : vector<2x8x32xbf16> to vector<2x8x8xbf16>
      %149 = vector.extract_strided_slice %78 {offsets = [0, 0, 24], sizes = [2, 8, 8], strides = [1, 1, 1]} : vector<2x8x32xbf16> to vector<2x8x8xbf16>
      "tpu.trace_start"() <{level = 10 : i32, message = "bqd,bkd->bqk"}> : () -> ()
      %cst_73 = arith.constant dense<0.000000e+00> : vector<2x8x8xf32>
      %150 = tpu.matmul %147, %148, %cst_73 {dimension_numbers = #tpu.dot_dimension_numbers<[2], [2], [1], [1], [0, 0, 0, 1, 1, 1], [0], [0]>} : vector<2x8x8xbf16>, vector<2x8x8xbf16>, vector<2x8x8xf32> -> vector<2x8x8xf32>
      "tpu.trace_stop"() : () -> ()
      %151 = vector.broadcast %83 : vector<2x1x8xf32> to vector<2x8x8xf32>
      %152 = arith.addf %150, %151 : vector<2x8x8xf32>
      %cst_74 = arith.constant dense<0xFF800000> : vector<2x8xf32>
      %153 = vector.multi_reduction <maximumf>, %152, %cst_74 [2] : vector<2x8x8xf32> to vector<2x8xf32>
      %154 = vector.shape_cast %153 : vector<2x8xf32> to vector<2x8x1xf32>
      %155 = vector.broadcast %154 : vector<2x8x1xf32> to vector<2x8x8xf32>
      %156 = arith.subf %152, %155 : vector<2x8x8xf32>
      %157 = math.exp %156 : vector<2x8x8xf32>
      %cst_75 = arith.constant dense<0.000000e+00> : vector<2x8xf32>
      %158 = vector.multi_reduction <add>, %157, %cst_75 [2] : vector<2x8x8xf32> to vector<2x8xf32>
      %159 = vector.shape_cast %158 : vector<2x8xf32> to vector<2x8x1xf32>
      %cst_76 = arith.constant 1.000000e+00 : f32
      %160 = vector.broadcast %cst_76 : f32 to vector<2x8x1xf32>
      %161 = arith.divf %160, %159 : vector<2x8x1xf32>
      %162 = vector.broadcast %161 : vector<2x8x1xf32> to vector<2x8x8xf32>
      %163 = arith.mulf %157, %162 : vector<2x8x8xf32>
      %164 = arith.truncf %163 : vector<2x8x8xf32> to vector<2x8x8xbf16>
      "tpu.trace_start"() <{level = 10 : i32, message = "bqk,bkd->bqd"}> : () -> ()
      %cst_77 = arith.constant dense<0.000000e+00> : vector<2x8x8xf32>
      %165 = tpu.matmul %164, %149, %cst_77 {dimension_numbers = #tpu.dot_dimension_numbers<[2], [1], [1], [2], [0, 0, 0, 1, 1, 2], [0], [0]>} : vector<2x8x8xbf16>, vector<2x8x8xbf16>, vector<2x8x8xf32> -> vector<2x8x8xf32>
      "tpu.trace_stop"() : () -> ()
      %166 = arith.truncf %165 : vector<2x8x8xf32> to vector<2x8x8xbf16>
      %c0_78 = arith.constant 0 : index
      %c0_79 = arith.constant 0 : index
      %c24 = arith.constant 24 : index
      %167 = vector.load %arg21[%c0_78, %c0_79, %c24] : memref<2x8x32xbf16, #tpu.memory_space<vmem>>, vector<2x8x8xbf16>
      tpu.vector_store %arg21[%c0_78, %c0_79, %c24], %166 {strides = array<i32>} : memref<2x8x32xbf16, #tpu.memory_space<vmem>>, vector<2x8x8xbf16>,
      %c0_80 = arith.constant 0 : index
      %c0_81 = arith.constant 0 : index
      %c0_82 = arith.constant 0 : index
      %168 = vector.load %arg21[%c0_80, %c0_81, %c0_82] : memref<2x8x32xbf16, #tpu.memory_space<vmem>>, vector<2x8x32xbf16>
      %169 = vector.shape_cast %168 : vector<2x8x32xbf16> to vector<16x32xbf16>
      %c0_83 = arith.constant 0 : index
      %c0_84 = arith.constant 0 : index
      %c0_85 = arith.constant 0 : index
      %170 = vector.load %arg9[%c0_83, %c0_84, %c0_85] : memref<1x32x32xbf16, #tpu.memory_space<vmem>>, vector<1x32x32xbf16>
      %171 = vector.shape_cast %170 : vector<1x32x32xbf16> to vector<32x32xbf16>
      %cst_86 = arith.constant dense<0.000000e+00> : vector<16x32xf32>
      %172 = tpu.matmul %169, %171, %cst_86 {dimension_numbers = #tpu.dot_dimension_numbers<[1], [0], [0], [1], [0, 0, 1, 1], [], []>} : vector<16x32xbf16>, vector<32x32xbf16>, vector<16x32xf32> -> vector<16x32xf32>
      %c0_87 = arith.constant 0 : index
      %c0_88 = arith.constant 0 : index
      %c0_89 = arith.constant 0 : index
      %173 = vector.load %arg10[%c0_87, %c0_88, %c0_89] : memref<1x1x32xf32, #tpu.memory_space<vmem>>, vector<1x1x32xf32>
      %174 = vector.shape_cast %173 : vector<1x1x32xf32> to vector<1x32xf32>
      %175 = vector.broadcast %174 : vector<1x32xf32> to vector<16x32xf32>
      %176 = arith.addf %172, %175 : vector<16x32xf32>
      %177 = arith.addf %33, %176 : vector<16x32xf32>
      %c0_90 = arith.constant 0 : index
      %c0_91 = arith.constant 0 : index
      %c0_92 = arith.constant 0 : index
      %178 = vector.load %arg11[%c0_90, %c0_91, %c0_92] : memref<1x1x32xf32, #tpu.memory_space<vmem>>, vector<1x1x32xf32>
      %179 = vector.shape_cast %178 : vector<1x1x32xf32> to vector<1x32xf32>
      %c0_93 = arith.constant 0 : index
      %c0_94 = arith.constant 0 : index
      %c0_95 = arith.constant 0 : index
      %180 = vector.load %arg12[%c0_93, %c0_94, %c0_95] : memref<1x1x32xf32, #tpu.memory_space<vmem>>, vector<1x1x32xf32>
      %181 = vector.shape_cast %180 : vector<1x1x32xf32> to vector<1x32xf32>
      %cst_96 = arith.constant dense<0.000000e+00> : vector<16xf32>
      %182 = vector.multi_reduction <add>, %177, %cst_96 [1] : vector<16x32xf32> to vector<16xf32>
      %183 = vector.shape_cast %182 : vector<16xf32> to vector<16x1xf32>
      %cst_97 = arith.constant 3.200000e+01 : f32
      %184 = vector.broadcast %cst_97 : f32 to vector<16x1xf32>
      %185 = arith.divf %183, %184 : vector<16x1xf32>
      %186 = vector.broadcast %185 : vector<16x1xf32> to vector<16x32xf32>
      %187 = arith.subf %177, %186 : vector<16x32xf32>
      %188 = arith.mulf %187, %187 : vector<16x32xf32>
      %cst_98 = arith.constant dense<0.000000e+00> : vector<16xf32>
      %189 = vector.multi_reduction <add>, %188, %cst_98 [1] : vector<16x32xf32> to vector<16xf32>
      %190 = vector.shape_cast %189 : vector<16xf32> to vector<16x1xf32>
      %cst_99 = arith.constant 0.0322580636 : f32
      %191 = vector.broadcast %cst_99 : f32 to vector<16x1xf32>
      %192 = arith.mulf %190, %191 : vector<16x1xf32>
      %193 = math.sqrt %192 : vector<16x1xf32>
      %194 = vector.broadcast %179 : vector<1x32xf32> to vector<16x32xf32>
      %195 = arith.mulf %194, %187 : vector<16x32xf32>
      %cst_100 = arith.constant 9.99999997E-7 : f32
      %196 = vector.broadcast %cst_100 : f32 to vector<16x1xf32>
      %197 = arith.addf %193, %196 : vector<16x1xf32>
      %cst_101 = arith.constant 1.000000e+00 : f32
      %198 = vector.broadcast %cst_101 : f32 to vector<16x1xf32>
      %199 = arith.divf %198, %197 : vector<16x1xf32>
      %200 = vector.broadcast %199 : vector<16x1xf32> to vector<16x32xf32>
      %201 = arith.mulf %195, %200 : vector<16x32xf32>
      %202 = vector.broadcast %181 : vector<1x32xf32> to vector<16x32xf32>
      %203 = arith.addf %201, %202 : vector<16x32xf32>
      %204 = arith.truncf %203 : vector<16x32xf32> to vector<16x32xbf16>
      %c0_102 = arith.constant 0 : index
      %c0_103 = arith.constant 0 : index
      %205 = vector.load %arg22[%c0_102, %c0_103] : memref<16x32xbf16, #tpu.memory_space<vmem>>, vector<16x32xbf16>
      tpu.vector_store %arg22[%c0_102, %c0_103], %204 {strides = array<i32>} : memref<16x32xbf16, #tpu.memory_space<vmem>>, vector<16x32xbf16>,
      %c0_104 = arith.constant 0 : index
      %c0_105 = arith.constant 0 : index
      %206 = vector.load %arg20[%c0_104, %c0_105] : memref<16x32xf32, #tpu.memory_space<vmem>>, vector<16x32xf32>
      tpu.vector_store %arg20[%c0_104, %c0_105], %177 {strides = array<i32>} : memref<16x32xf32, #tpu.memory_space<vmem>>, vector<16x32xf32>,
    } else {
    }
    %c0 = arith.constant 0 : index
    %c0_4 = arith.constant 0 : index
    %8 = vector.load %arg22[%c0, %c0_4] : memref<16x32xbf16, #tpu.memory_space<vmem>>, vector<16x32xbf16>
    %c0_5 = arith.constant 0 : index
    %c0_6 = arith.constant 0 : index
    %c0_7 = arith.constant 0 : index
    %9 = vector.load %arg13[%c0_5, %c0_6, %c0_7] : memref<1x32x64xbf16, #tpu.memory_space<vmem>>, vector<1x32x64xbf16>
    %10 = vector.shape_cast %9 : vector<1x32x64xbf16> to vector<32x64xbf16>
    %cst = arith.constant dense<0.000000e+00> : vector<16x64xf32>
    %11 = tpu.matmul %8, %10, %cst {dimension_numbers = #tpu.dot_dimension_numbers<[1], [0], [0], [1], [0, 0, 1, 1], [], []>} : vector<16x32xbf16>, vector<32x64xbf16>, vector<16x64xf32> -> vector<16x64xf32>
    %c0_8 = arith.constant 0 : index
    %c0_9 = arith.constant 0 : index
    %c0_10 = arith.constant 0 : index
    %12 = vector.load %arg14[%c0_8, %c0_9, %c0_10] : memref<1x1x64xf32, #tpu.memory_space<vmem>>, vector<1x1x64xf32>
    %13 = vector.shape_cast %12 : vector<1x1x64xf32> to vector<1x64xf32>
    %14 = vector.broadcast %13 : vector<1x64xf32> to vector<16x64xf32>
    %15 = arith.addf %11, %14 : vector<16x64xf32>
    %cst_11 = arith.constant 0.000000e+00 : f32
    %16 = vector.broadcast %cst_11 : f32 to vector<16x64xf32>
    %17 = arith.maximumf %15, %16 : vector<16x64xf32>
    %18 = arith.truncf %17 : vector<16x64xf32> to vector<16x64xbf16>
    %c0_12 = arith.constant 0 : index
    %c0_13 = arith.constant 0 : index
    %c0_14 = arith.constant 0 : index
    %19 = vector.load %arg15[%c0_12, %c0_13, %c0_14] : memref<1x64x32xbf16, #tpu.memory_space<vmem>>, vector<1x64x32xbf16>
    %20 = vector.shape_cast %19 : vector<1x64x32xbf16> to vector<64x32xbf16>
    %cst_15 = arith.constant dense<0.000000e+00> : vector<16x32xf32>
    %21 = tpu.matmul %18, %20, %cst_15 {dimension_numbers = #tpu.dot_dimension_numbers<[1], [0], [0], [1], [0, 0, 1, 1], [], []>} : vector<16x64xbf16>, vector<64x32xbf16>, vector<16x32xf32> -> vector<16x32xf32>
    %c0_16 = arith.constant 0 : index
    %c0_17 = arith.constant 0 : index
    %22 = vector.load %arg20[%c0_16, %c0_17] : memref<16x32xf32, #tpu.memory_space<vmem>>, vector<16x32xf32>
    %23 = arith.addf %22, %21 : vector<16x32xf32>
    %c0_18 = arith.constant 0 : index
    %c0_19 = arith.constant 0 : index
    %24 = vector.load %arg20[%c0_18, %c0_19] : memref<16x32xf32, #tpu.memory_space<vmem>>, vector<16x32xf32>
    tpu.vector_store %arg20[%c0_18, %c0_19], %23 {strides = array<i32>} : memref<16x32xf32, #tpu.memory_space<vmem>>, vector<16x32xf32>,
    %c0_i32_20 = arith.constant 0 : i32
    %25 = arith.cmpi eq, %arg2, %c0_i32_20 : i32
    %26 = arith.extui %25 : i1 to i32
    %c0_i32_21 = arith.constant 0 : i32
    %27 = arith.cmpi ne, %26, %c0_i32_21 : i32
    scf.if %27 {
      %c0_24 = arith.constant 0 : index
      %c0_25 = arith.constant 0 : index
      %33 = vector.load %arg20[%c0_24, %c0_25] : memref<16x32xf32, #tpu.memory_space<vmem>>, vector<16x32xf32>
      %c0_26 = arith.constant 0 : index
      %c0_27 = arith.constant 0 : index
      %c0_28 = arith.constant 0 : index
      %34 = vector.load %arg16[%c0_26, %c0_27, %c0_28] : memref<1x1x32xf32, #tpu.memory_space<vmem>>, vector<1x1x32xf32>
      %35 = vector.shape_cast %34 : vector<1x1x32xf32> to vector<1x32xf32>
      %36 = vector.broadcast %35 : vector<1x32xf32> to vector<16x32xf32>
      %37 = arith.addf %33, %36 : vector<16x32xf32>
      %c0_29 = arith.constant 0 : index
      %c0_30 = arith.constant 0 : index
      %38 = vector.load %arg20[%c0_29, %c0_30] : memref<16x32xf32, #tpu.memory_space<vmem>>, vector<16x32xf32>
      tpu.vector_store %arg20[%c0_29, %c0_30], %37 {strides = array<i32>} : memref<16x32xf32, #tpu.memory_space<vmem>>, vector<16x32xf32>,
    } else {
    }
    %c1_i32 = arith.constant 1 : i32
    %28 = arith.cmpi eq, %arg1, %c1_i32 : i32
    %c0_i32_22 = arith.constant 0 : i32
    %29 = arith.cmpi eq, %arg2, %c0_i32_22 : i32
    %30 = arith.andi %28, %29 : i1
    %31 = arith.extui %30 : i1 to i32
    %c0_i32_23 = arith.constant 0 : i32
    %32 = arith.cmpi ne, %31, %c0_i32_23 : i32
    scf.if %32 {
      %c0_24 = arith.constant 0 : index
      %c0_25 = arith.constant 0 : index
      %33 = vector.load %arg20[%c0_24, %c0_25] : memref<16x32xf32, #tpu.memory_space<vmem>>, vector<16x32xf32>
      %c0_26 = arith.constant 0 : index
      %c0_27 = arith.constant 0 : index
      %34 = vector.load %arg17[%c0_26, %c0_27] : memref<1x32xf32, #tpu.memory_space<vmem>>, vector<1x32xf32>
      %c0_28 = arith.constant 0 : index
      %c0_29 = arith.constant 0 : index
      %35 = vector.load %arg18[%c0_28, %c0_29] : memref<1x32xf32, #tpu.memory_space<vmem>>, vector<1x32xf32>
      %cst_30 = arith.constant dense<0.000000e+00> : vector<16xf32>
      %36 = vector.multi_reduction <add>, %33, %cst_30 [1] : vector<16x32xf32> to vector<16xf32>
      %37 = vector.shape_cast %36 : vector<16xf32> to vector<16x1xf32>
      %cst_31 = arith.constant 3.200000e+01 : f32
      %38 = vector.broadcast %cst_31 : f32 to vector<16x1xf32>
      %39 = arith.divf %37, %38 : vector<16x1xf32>
      %40 = vector.broadcast %39 : vector<16x1xf32> to vector<16x32xf32>
      %41 = arith.subf %33, %40 : vector<16x32xf32>
      %42 = arith.mulf %41, %41 : vector<16x32xf32>
      %cst_32 = arith.constant dense<0.000000e+00> : vector<16xf32>
      %43 = vector.multi_reduction <add>, %42, %cst_32 [1] : vector<16x32xf32> to vector<16xf32>
      %44 = vector.shape_cast %43 : vector<16xf32> to vector<16x1xf32>
      %cst_33 = arith.constant 0.0322580636 : f32
      %45 = vector.broadcast %cst_33 : f32 to vector<16x1xf32>
      %46 = arith.mulf %44, %45 : vector<16x1xf32>
      %47 = math.sqrt %46 : vector<16x1xf32>
      %48 = vector.broadcast %34 : vector<1x32xf32> to vector<16x32xf32>
      %49 = arith.mulf %48, %41 : vector<16x32xf32>
      %cst_34 = arith.constant 9.99999997E-7 : f32
      %50 = vector.broadcast %cst_34 : f32 to vector<16x1xf32>
      %51 = arith.addf %47, %50 : vector<16x1xf32>
      %cst_35 = arith.constant 1.000000e+00 : f32
      %52 = vector.broadcast %cst_35 : f32 to vector<16x1xf32>
      %53 = arith.divf %52, %51 : vector<16x1xf32>
      %54 = vector.broadcast %53 : vector<16x1xf32> to vector<16x32xf32>
      %55 = arith.mulf %49, %54 : vector<16x32xf32>
      %56 = vector.broadcast %35 : vector<1x32xf32> to vector<16x32xf32>
      %57 = arith.addf %55, %56 : vector<16x32xf32>
      %58 = arith.truncf %57 : vector<16x32xf32> to vector<16x32xbf16>
      %59 = vector.shape_cast %58 : vector<16x32xbf16> to vector<2x8x32xbf16>
      %c0_36 = arith.constant 0 : index
      %c0_37 = arith.constant 0 : index
      %c0_38 = arith.constant 0 : index
      %60 = vector.load %arg19[%c0_36, %c0_37, %c0_38] : memref<2x8x32xbf16, #tpu.memory_space<vmem>>, vector<2x8x32xbf16>
      tpu.vector_store %arg19[%c0_36, %c0_37, %c0_38], %59 {strides = array<i32>} : memref<2x8x32xbf16, #tpu.memory_space<vmem>>, vector<2x8x32xbf16>,
    } else {
    }
    return
  }
  func.func @transform_0(%arg0: i32, %arg1: i32, %arg2: i32) -> (i32, i32, i32) {
    %c0_i32 = arith.constant 0 : i32
    %c0_i32_0 = arith.constant 0 : i32
    %c0_i32_1 = arith.constant 0 : i32
    return %arg0, %c0_i32, %c0_i32_0 : i32, i32, i32
  }
  func.func @transform_1(%arg0: i32, %arg1: i32, %arg2: i32) -> (i32, i32, i32) {
    %c0_i32 = arith.constant 0 : i32
    %c0_i32_0 = arith.constant 0 : i32
    %c0_i32_1 = arith.constant 0 : i32
    return %arg0, %c0_i32, %c0_i32_0 : i32, i32, i32
  }
  func.func @transform_2(%arg0: i32, %arg1: i32, %arg2: i32) -> (i32, i32, i32) {
    %c0_i32 = arith.constant 0 : i32
    %c0_i32_0 = arith.constant 0 : i32
    %c0_i32_1 = arith.constant 0 : i32
    return %arg1, %c0_i32, %c0_i32_0 : i32, i32, i32
  }
  func.func @transform_3(%arg0: i32, %arg1: i32, %arg2: i32) -> (i32, i32, i32) {
    %c0_i32 = arith.constant 0 : i32
    %c0_i32_0 = arith.constant 0 : i32
    %c0_i32_1 = arith.constant 0 : i32
    return %arg1, %c0_i32, %c0_i32_0 : i32, i32, i32
  }
  func.func @transform_4(%arg0: i32, %arg1: i32, %arg2: i32) -> (i32, i32, i32) {
    %c0_i32 = arith.constant 0 : i32
    %c0_i32_0 = arith.constant 0 : i32
    %c0_i32_1 = arith.constant 0 : i32
    return %arg1, %c0_i32, %c0_i32_0 : i32, i32, i32
  }
  func.func @transform_5(%arg0: i32, %arg1: i32, %arg2: i32) -> (i32, i32, i32) {
    %c0_i32 = arith.constant 0 : i32
    %c0_i32_0 = arith.constant 0 : i32
    %c0_i32_1 = arith.constant 0 : i32
    return %arg1, %c0_i32, %c0_i32_0 : i32, i32, i32
  }
  func.func @transform_6(%arg0: i32, %arg1: i32, %arg2: i32) -> (i32, i32, i32) {
    %c0_i32 = arith.constant 0 : i32
    %c0_i32_0 = arith.constant 0 : i32
    %c0_i32_1 = arith.constant 0 : i32
    return %arg1, %c0_i32, %c0_i32_0 : i32, i32, i32
  }
  func.func @transform_7(%arg0: i32, %arg1: i32, %arg2: i32) -> (i32, i32, i32) {
    %c0_i32 = arith.constant 0 : i32
    %c0_i32_0 = arith.constant 0 : i32
    %c0_i32_1 = arith.constant 0 : i32
    return %arg1, %c0_i32, %c0_i32_0 : i32, i32, i32
  }
  func.func @transform_8(%arg0: i32, %arg1: i32, %arg2: i32) -> (i32, i32, i32) {
    %c0_i32 = arith.constant 0 : i32
    %c0_i32_0 = arith.constant 0 : i32
    %c0_i32_1 = arith.constant 0 : i32
    return %arg1, %c0_i32, %c0_i32_0 : i32, i32, i32
  }
  func.func @transform_9(%arg0: i32, %arg1: i32, %arg2: i32) -> (i32, i32, i32) {
    %c0_i32 = arith.constant 0 : i32
    %c0_i32_0 = arith.constant 0 : i32
    %c0_i32_1 = arith.constant 0 : i32
    return %arg1, %c0_i32, %c0_i32_0 : i32, i32, i32
  }
  func.func @transform_10(%arg0: i32, %arg1: i32, %arg2: i32) -> (i32, i32, i32) {
    %c0_i32 = arith.constant 0 : i32
    %c0_i32_0 = arith.constant 0 : i32
    return %arg1, %c0_i32, %arg2 : i32, i32, i32
  }
  func.func @transform_11(%arg0: i32, %arg1: i32, %arg2: i32) -> (i32, i32, i32) {
    %c0_i32 = arith.constant 0 : i32
    %c0_i32_0 = arith.constant 0 : i32
    return %arg1, %c0_i32, %arg2 : i32, i32, i32
  }
  func.func @transform_12(%arg0: i32, %arg1: i32, %arg2: i32) -> (i32, i32, i32) {
    %c0_i32 = arith.constant 0 : i32
    %c0_i32_0 = arith.constant 0 : i32
    return %arg1, %arg2, %c0_i32 : i32, i32, i32
  }
  func.func @transform_13(%arg0: i32, %arg1: i32, %arg2: i32) -> (i32, i32, i32) {
    %c0_i32 = arith.constant 0 : i32
    %c0_i32_0 = arith.constant 0 : i32
    %c0_i32_1 = arith.constant 0 : i32
    return %arg1, %c0_i32, %c0_i32_0 : i32, i32, i32
  }
  func.func @transform_14(%arg0: i32, %arg1: i32, %arg2: i32) -> (i32, i32) {
    %c0_i32 = arith.constant 0 : i32
    %c0_i32_0 = arith.constant 0 : i32
    %c0_i32_1 = arith.constant 0 : i32
    return %c0_i32, %c0_i32_0 : i32, i32
  }
  func.func @transform_15(%arg0: i32, %arg1: i32, %arg2: i32) -> (i32, i32) {
    %c0_i32 = arith.constant 0 : i32
    %c0_i32_0 = arith.constant 0 : i32
    %c0_i32_1 = arith.constant 0 : i32
    return %c0_i32, %c0_i32_0 : i32, i32
  }
  func.func @transform_16(%arg0: i32, %arg1: i32, %arg2: i32) -> (i32, i32, i32) {
    %c0_i32 = arith.constant 0 : i32
    %c0_i32_0 = arith.constant 0 : i32
    %c0_i32_1 = arith.constant 0 : i32
    return %arg0, %c0_i32, %c0_i32_0 : i32, i32, i32
  }
}

</mosaic_0001>

<llo_original>
// kernel: tpu_custom_call.1
$region0: #{tpu_custom_call.1}
  #allocation0 [shape = 'u32[]', space=smem, size = 0x4, offset = 0x4, fixed_abs, tag = 'smem constant byte address 0x4 - core index']
  #allocation1 [shape = 'u32[144,128]{1,0:T(1,128)}', space=vmem, size = 0x12000, scoped, tag = 'internal scratch']
  #allocation2 [shape = 'f32[16,32]{1,0:T(8,128)}', space=vmem, size = 0x2000, scoped, tag = 'scratch operand']
  #allocation3 [shape = 'bf16[2,8,32]{2,1,0:T(8,128)(2,1)}', space=vmem, size = 0x1000, scoped, tag = 'scratch operand']
  #allocation4 [shape = 'bf16[16,32]{1,0:T(16,128)(2,1)}', space=vmem, size = 0x1000, scoped, tag = 'scratch operand']
  %s0 = inlined_call_operand.hbm [shape: f32[2,8,32], index: 0, kind: input, shape index: {}]
  %s1 = inlined_call_operand.vmem [shape: f32[2,1,8], index: 1, kind: input, shape index: {}]
  %s2 = inlined_call_operand.vmem [shape: f32[2,1,32], index: 2, kind: input, shape index: {}]
  %s3 = inlined_call_operand.vmem [shape: f32[2,1,32], index: 3, kind: input, shape index: {}]
  %s4 = inlined_call_operand.vmem [shape: bf16[2,32,96], index: 4, kind: input, shape index: {}]
  %s5 = inlined_call_operand.vmem [shape: f32[2,1,96], index: 5, kind: input, shape index: {}]
  %s6 = inlined_call_operand.vmem [shape: bf16[2,32,32], index: 6, kind: input, shape index: {}]
  %s7 = inlined_call_operand.vmem [shape: f32[2,1,32], index: 7, kind: input, shape index: {}]
  %s8 = inlined_call_operand.vmem [shape: f32[2,1,32], index: 8, kind: input, shape index: {}]
  %s9 = inlined_call_operand.hbm [shape: f32[2,1,32], index: 9, kind: input, shape index: {}]
  %s10 = inlined_call_operand.vmem [shape: bf16[2,32,64], index: 10, kind: input, shape index: {}]
  %s11 = inlined_call_operand.hbm [shape: f32[2,1,64], index: 11, kind: input, shape index: {}]
  %s12 = inlined_call_operand.vmem [shape: bf16[2,64,32], index: 12, kind: input, shape index: {}]
  %s13 = inlined_call_operand.vmem [shape: f32[2,1,32], index: 13, kind: input, shape index: {}]
  %s14 = inlined_call_operand.vmem [shape: f32[1,32], index: 14, kind: input, shape index: {}]
  %s15 = inlined_call_operand.vmem [shape: f32[1,32], index: 15, kind: input, shape index: {}]
  %s16 = inlined_call_operand.hbm [shape: bf16[2,8,32], index: 16, kind: output, shape index: {}]
  %s17 = sld [smem:[#allocation0]]
  $region125: #{tpu_custom_call.1} parent=0
    _
  %s19 = ssub.s32 1, %s17
  %s20 = scalar_select 0, %s19, %s17
  $region1: #{tpu_custom_call.1} parent=0
    #allocation5 [shape = 'u8[8192]{0}', space=vmem, size = 0x2000, scoped, tag = 'input window, operand 0, single buffered']
    #allocation6 [shape = 's32[2]{0}', space=sflag, size = 0x8, scoped, tag = 'scoped memory for tpu_custom_call.1']
    #allocation7 [shape = 's32[2]{0}', space=sflag, size = 0x8, scoped, tag = 'scoped memory for tpu_custom_call.1']
    #allocation8 [shape = 'u8[1024]{0}', space=vmem, size = 0x400, scoped, tag = 'input window, operand 9']
    #allocation9 [shape = 's32[2]{0}', space=sflag, size = 0x8, scoped, tag = 'scoped memory for tpu_custom_call.1']
    #allocation10 [shape = 'u8[1024]{0}', space=vmem, size = 0x400, scoped, tag = 'input window, operand 11']
    #allocation11 [shape = 'u8[4096]{0}', space=vmem, size = 0x1000, scoped, tag = 'output window, operand 0, single buffered']
    %21 = vsyncpa [#allocation6], 0
    %22 = vsyncpa [#allocation9], 0
    %s23 = scalar_lea.sflag [#allocation9], 1
    %24 = vsyncpa %s23, 0
    %25 = vsyncpa [#allocation7], 0
    loop: start=0, step=1, limit=4
    $region2: #{tpu_custom_call.1} parent=1 // loop_pre_header
      _
    $region3: #{tpu_custom_call.1} parent=1 // loop_header
      %s27 = sphi 0, %s31
      %p28 = scmp.ge.s32.totalorder %s27, 4
      %s34 = sphi 0, %s53
      %s35 = sphi 0, %s49
      %s36 = sphi 0, %s45
      %s37 = sphi 0, %s34
      %s38 = sphi 0, %s35
      %s39 = sphi 0, %s36
      %s40 = sphi 0, %s37
      %s41 = sphi 0, %s38
      %s42 = sphi 0, %s39
      %s56 = sphi 0, %s58
      %s59 = sphi 0, %s56
      %s60 = sphi 0, %s59
      %s76 = sphi 0, %s60
      %s82 = sphi 0, %s84
      %s85 = sphi 0, %s82
      %s86 = sphi 0, %s85
      %s102 = sphi 0, %s86
      %s108 = sphi 0, %s110
      %s111 = sphi 0, %s108
      %s112 = sphi 0, %s111
      %s128 = sphi 0, %s112
      %s134 = sphi 0, %s136
      %s137 = sphi 0, %s134
      %s138 = sphi 0, %s137
      %s154 = sphi 0, %s138
      %s160 = sphi 0, %s162
      %s163 = sphi 0, %s160
      %s164 = sphi 0, %s163
      %s180 = sphi 0, %s164
      %s186 = sphi 0, %s188
      %s189 = sphi 0, %s186
      %s190 = sphi 0, %s189
      %s206 = sphi 0, %s190
      %s212 = sphi 0, %s214
      %s215 = sphi 0, %s212
      %s216 = sphi 0, %s215
      %s232 = sphi 0, %s216
      %s238 = sphi 0, %s240
      %s241 = sphi 0, %s238
      %s242 = sphi 0, %s241
      %s258 = sphi 0, %s242
      %s264 = sphi 0, %s266
      %s267 = sphi 0, %s264
      %s268 = sphi 0, %s267
      %s284 = sphi 0, %s268
      %s290 = sphi 0, %s292
      %s293 = sphi 0, %s290
      %s294 = sphi 0, %s293
      %s310 = sphi 0, %s294
      %s318 = sphi 0, %s320
      %s321 = sphi 0, %s318
      %s322 = sphi 0, %s321
      %s338 = sphi 0, %s322
      %s346 = sphi 0, %s348
      %s349 = sphi 0, %s346
      %s350 = sphi 0, %s349
      %s366 = sphi 0, %s350
      %s374 = sphi 0, %s376
      %s377 = sphi 0, %s374
      %s378 = sphi 0, %s377
      %s394 = sphi 0, %s378
      %s400 = sphi 0, %s402
      %s403 = sphi 0, %s400
      %s404 = sphi 0, %s403
      %s420 = sphi 0, %s404
      %s424 = sphi 0, %s424
      %s426 = sphi 0, %s424
      %s427 = sphi 0, %s426
      %s441 = sphi 0, %s427
      %s445 = sphi 0, %s445
      %s447 = sphi 0, %s445
      %s448 = sphi 0, %s447
      %s462 = sphi 0, %s448
      %s468 = sphi 0, %s470
      %s471 = sphi 0, %s468
      %s472 = sphi 0, %s471
      %s488 = sphi 0, %s472
    $region4: #{tpu_custom_call.1} parent=1 // loop_header_branch
      %30 = sbr.rel (%p28) target = $region8
    $region5: #{tpu_custom_call.1} parent=1 // loop_body
      %s32 = ssub.s32 %s27, 1
      %s33 = ssub.s32 %s27, 2
      %s43 = sadd.s32 1, %s36
      %p44 = scmp.ge.s32.totalorder %s43, 1
      %s45 = scalar_select %p44, 0, %s43
      %s46 = sadd.s32 1, %s35
      %s47 = scalar_select %p44, %s46, %s35
      %p48 = scmp.ge.s32.totalorder %s47, 2
      %s49 = scalar_select %p48, 0, %s47
      %s50 = sadd.s32 1, %s34
      %s51 = scalar_select %p48, %s50, %s34
      %p52 = scmp.ge.s32.totalorder %s51, 1
      %s53 = scalar_select %p52, 0, %s51
      %s54 = ssub.s32 %s34, %s53
      %p55 = scmp.eq.s32.totalorder %s54, 0
      %s57 = sadd.s32 %s56, 1
      %s58 = scalar_select %p55, %s56, %s57
      %p61 = pneg %p55
      %p62 = scmp.eq.s32.totalorder %s27, 1
      %p63 = por %p61, %p62
      %p64 = scmp.ne.s32.totalorder %s56, %s59
      %p65 = scmp.eq.s32.totalorder %s27, 0
      %p66 = por %p64, %p65
      %p67 = scmp.ne.s32.totalorder %s56, %s59
      %p68 = scmp.eq.s32.totalorder %s32, 1
      %p69 = por %p67, %p68
      %p70 = scmp.ne.s32.totalorder %s59, %s60
      %p71 = scmp.eq.s32.totalorder %s32, 0
      %p72 = por %p70, %p71
      %p73 = scmp.ne.s32.totalorder %s59, %s60
      %p74 = scmp.eq.s32.totalorder %s33, 1
      %p75 = por %p73, %p74
      %p77 = scmp.ne.s32.totalorder %s60, %s76
      %p78 = scmp.eq.s32.totalorder %s33, 0
      %p79 = por %p77, %p78
      %s80 = ssub.s32 %s34, %s53
      %p81 = scmp.eq.s32.totalorder %s80, 0
      %s83 = sadd.s32 %s82, 1
      %s84 = scalar_select %p81, %s82, %s83
      %p87 = pneg %p81
      %p88 = scmp.eq.s32.totalorder %s27, 1
      %p89 = por %p87, %p88
      %p90 = scmp.ne.s32.totalorder %s82, %s85
      %p91 = scmp.eq.s32.totalorder %s27, 0
      %p92 = por %p90, %p91
      %p93 = scmp.ne.s32.totalorder %s82, %s85
      %p94 = scmp.eq.s32.totalorder %s32, 1
      %p95 = por %p93, %p94
      %p96 = scmp.ne.s32.totalorder %s85, %s86
      %p97 = scmp.eq.s32.totalorder %s32, 0
      %p98 = por %p96, %p97
      %p99 = scmp.ne.s32.totalorder %s85, %s86
      %p100 = scmp.eq.s32.totalorder %s33, 1
      %p101 = por %p99, %p100
      %p103 = scmp.ne.s32.totalorder %s86, %s102
      %p104 = scmp.eq.s32.totalorder %s33, 0
      %p105 = por %p103, %p104
      %s106 = ssub.s32 %s35, %s49
      %p107 = scmp.eq.s32.totalorder %s106, 0
      %s109 = sadd.s32 %s108, 1
      %s110 = scalar_select %p107, %s108, %s109
      %p113 = pneg %p107
      %p114 = scmp.eq.s32.totalorder %s27, 1
      %p115 = por %p113, %p114
      %p116 = scmp.ne.s32.totalorder %s108, %s111
      %p117 = scmp.eq.s32.totalorder %s27, 0
      %p118 = por %p116, %p117
      %p119 = scmp.ne.s32.totalorder %s108, %s111
      %p120 = scmp.eq.s32.totalorder %s32, 1
      %p121 = por %p119, %p120
      %p122 = scmp.ne.s32.totalorder %s111, %s112
      %p123 = scmp.eq.s32.totalorder %s32, 0
      %p124 = por %p122, %p123
      %p125 = scmp.ne.s32.totalorder %s111, %s112
      %p126 = scmp.eq.s32.totalorder %s33, 1
      %p127 = por %p125, %p126
      %p129 = scmp.ne.s32.totalorder %s112, %s128
      %p130 = scmp.eq.s32.totalorder %s33, 0
      %p131 = por %p129, %p130
      %s132 = ssub.s32 %s35, %s49
      %p133 = scmp.eq.s32.totalorder %s132, 0
      %s135 = sadd.s32 %s134, 1
      %s136 = scalar_select %p133, %s134, %s135
      %p139 = pneg %p133
      %p140 = scmp.eq.s32.totalorder %s27, 1
      %p141 = por %p139, %p140
      %p142 = scmp.ne.s32.totalorder %s134, %s137
      %p143 = scmp.eq.s32.totalorder %s27, 0
      %p144 = por %p142, %p143
      %p145 = scmp.ne.s32.totalorder %s134, %s137
      %p146 = scmp.eq.s32.totalorder %s32, 1
      %p147 = por %p145, %p146
      %p148 = scmp.ne.s32.totalorder %s137, %s138
      %p149 = scmp.eq.s32.totalorder %s32, 0
      %p150 = por %p148, %p149
      %p151 = scmp.ne.s32.totalorder %s137, %s138
      %p152 = scmp.eq.s32.totalorder %s33, 1
      %p153 = por %p151, %p152
      %p155 = scmp.ne.s32.totalorder %s138, %s154
      %p156 = scmp.eq.s32.totalorder %s33, 0
      %p157 = por %p155, %p156
      %s158 = ssub.s32 %s35, %s49
      %p159 = scmp.eq.s32.totalorder %s158, 0
      %s161 = sadd.s32 %s160, 1
      %s162 = scalar_select %p159, %s160, %s161
      %p165 = pneg %p159
      %p166 = scmp.eq.s32.totalorder %s27, 1
      %p167 = por %p165, %p166
      %p168 = scmp.ne.s32.totalorder %s160, %s163
      %p169 = scmp.eq.s32.totalorder %s27, 0
      %p170 = por %p168, %p169
      %p171 = scmp.ne.s32.totalorder %s160, %s163
      %p172 = scmp.eq.s32.totalorder %s32, 1
      %p173 = por %p171, %p172
      %p174 = scmp.ne.s32.totalorder %s163, %s164
      %p175 = scmp.eq.s32.totalorder %s32, 0
      %p176 = por %p174, %p175
      %p177 = scmp.ne.s32.totalorder %s163, %s164
      %p178 = scmp.eq.s32.totalorder %s33, 1
      %p179 = por %p177, %p178
      %p181 = scmp.ne.s32.totalorder %s164, %s180
      %p182 = scmp.eq.s32.totalorder %s33, 0
      %p183 = por %p181, %p182
      %s184 = ssub.s32 %s35, %s49
      %p185 = scmp.eq.s32.totalorder %s184, 0
      %s187 = sadd.s32 %s186, 1
      %s188 = scalar_select %p185, %s186, %s187
      %p191 = pneg %p185
      %p192 = scmp.eq.s32.totalorder %s27, 1
      %p193 = por %p191, %p192
      %p194 = scmp.ne.s32.totalorder %s186, %s189
      %p195 = scmp.eq.s32.totalorder %s27, 0
      %p196 = por %p194, %p195
      %p197 = scmp.ne.s32.totalorder %s186, %s189
      %p198 = scmp.eq.s32.totalorder %s32, 1
      %p199 = por %p197, %p198
      %p200 = scmp.ne.s32.totalorder %s189, %s190
      %p201 = scmp.eq.s32.totalorder %s32, 0
      %p202 = por %p200, %p201
      %p203 = scmp.ne.s32.totalorder %s189, %s190
      %p204 = scmp.eq.s32.totalorder %s33, 1
      %p205 = por %p203, %p204
      %p207 = scmp.ne.s32.totalorder %s190, %s206
      %p208 = scmp.eq.s32.totalorder %s33, 0
      %p209 = por %p207, %p208
      %s210 = ssub.s32 %s35, %s49
      %p211 = scmp.eq.s32.totalorder %s210, 0
      %s213 = sadd.s32 %s212, 1
      %s214 = scalar_select %p211, %s212, %s213
      %p217 = pneg %p211
      %p218 = scmp.eq.s32.totalorder %s27, 1
      %p219 = por %p217, %p218
      %p220 = scmp.ne.s32.totalorder %s212, %s215
      %p221 = scmp.eq.s32.totalorder %s27, 0
      %p222 = por %p220, %p221
      %p223 = scmp.ne.s32.totalorder %s212, %s215
      %p224 = scmp.eq.s32.totalorder %s32, 1
      %p225 = por %p223, %p224
      %p226 = scmp.ne.s32.totalorder %s215, %s216
      %p227 = scmp.eq.s32.totalorder %s32, 0
      %p228 = por %p226, %p227
      %p229 = scmp.ne.s32.totalorder %s215, %s216
      %p230 = scmp.eq.s32.totalorder %s33, 1
      %p231 = por %p229, %p230
      %p233 = scmp.ne.s32.totalorder %s216, %s232
      %p234 = scmp.eq.s32.totalorder %s33, 0
      %p235 = por %p233, %p234
      %s236 = ssub.s32 %s35, %s49
      %p237 = scmp.eq.s32.totalorder %s236, 0
      %s239 = sadd.s32 %s238, 1
      %s240 = scalar_select %p237, %s238, %s239
      %p243 = pneg %p237
      %p244 = scmp.eq.s32.totalorder %s27, 1
      %p245 = por %p243, %p244
      %p246 = scmp.ne.s32.totalorder %s238, %s241
      %p247 = scmp.eq.s32.totalorder %s27, 0
      %p248 = por %p246, %p247
      %p249 = scmp.ne.s32.totalorder %s238, %s241
      %p250 = scmp.eq.s32.totalorder %s32, 1
      %p251 = por %p249, %p250
      %p252 = scmp.ne.s32.totalorder %s241, %s242
      %p253 = scmp.eq.s32.totalorder %s32, 0
      %p254 = por %p252, %p253
      %p255 = scmp.ne.s32.totalorder %s241, %s242
      %p256 = scmp.eq.s32.totalorder %s33, 1
      %p257 = por %p255, %p256
      %p259 = scmp.ne.s32.totalorder %s242, %s258
      %p260 = scmp.eq.s32.totalorder %s33, 0
      %p261 = por %p259, %p260
      %s262 = ssub.s32 %s35, %s49
      %p263 = scmp.eq.s32.totalorder %s262, 0
      %s265 = sadd.s32 %s264, 1
      %s266 = scalar_select %p263, %s264, %s265
      %p269 = pneg %p263
      %p270 = scmp.eq.s32.totalorder %s27, 1
      %p271 = por %p269, %p270
      %p272 = scmp.ne.s32.totalorder %s264, %s267
      %p273 = scmp.eq.s32.totalorder %s27, 0
      %p274 = por %p272, %p273
      %p275 = scmp.ne.s32.totalorder %s264, %s267
      %p276 = scmp.eq.s32.totalorder %s32, 1
      %p277 = por %p275, %p276
      %p278 = scmp.ne.s32.totalorder %s267, %s268
      %p279 = scmp.eq.s32.totalorder %s32, 0
      %p280 = por %p278, %p279
      %p281 = scmp.ne.s32.totalorder %s267, %s268
      %p282 = scmp.eq.s32.totalorder %s33, 1
      %p283 = por %p281, %p282
      %p285 = scmp.ne.s32.totalorder %s268, %s284
      %p286 = scmp.eq.s32.totalorder %s33, 0
      %p287 = por %p285, %p286
      %s288 = ssub.s32 %s35, %s49
      %p289 = scmp.eq.s32.totalorder %s288, 0
      %s291 = sadd.s32 %s290, 1
      %s292 = scalar_select %p289, %s290, %s291
      %p295 = pneg %p289
      %p296 = scmp.eq.s32.totalorder %s27, 1
      %p297 = por %p295, %p296
      %p298 = scmp.ne.s32.totalorder %s290, %s293
      %p299 = scmp.eq.s32.totalorder %s27, 0
      %p300 = por %p298, %p299
      %p301 = scmp.ne.s32.totalorder %s290, %s293
      %p302 = scmp.eq.s32.totalorder %s32, 1
      %p303 = por %p301, %p302
      %p304 = scmp.ne.s32.totalorder %s293, %s294
      %p305 = scmp.eq.s32.totalorder %s32, 0
      %p306 = por %p304, %p305
      %p307 = scmp.ne.s32.totalorder %s293, %s294
      %p308 = scmp.eq.s32.totalorder %s33, 1
      %p309 = por %p307, %p308
      %p311 = scmp.ne.s32.totalorder %s294, %s310
      %p312 = scmp.eq.s32.totalorder %s33, 0
      %p313 = por %p311, %p312
      %s314 = ssub.s32 %s35, %s49
      %s315 = ssub.s32 %s36, %s45
      %s316 = sor.u32 %s314, %s315
      %p317 = scmp.eq.s32.totalorder %s316, 0
      %s319 = sadd.s32 %s318, 1
      %s320 = scalar_select %p317, %s318, %s319
      %p323 = pneg %p317
      %p324 = scmp.eq.s32.totalorder %s27, 1
      %p325 = por %p323, %p324
      %p326 = scmp.ne.s32.totalorder %s318, %s321
      %p327 = scmp.eq.s32.totalorder %s27, 0
      %p328 = por %p326, %p327
      %p329 = scmp.ne.s32.totalorder %s318, %s321
      %p330 = scmp.eq.s32.totalorder %s32, 1
      %p331 = por %p329, %p330
      %p332 = scmp.ne.s32.totalorder %s321, %s322
      %p333 = scmp.eq.s32.totalorder %s32, 0
      %p334 = por %p332, %p333
      %p335 = scmp.ne.s32.totalorder %s321, %s322
      %p336 = scmp.eq.s32.totalorder %s33, 1
      %p337 = por %p335, %p336
      %p339 = scmp.ne.s32.totalorder %s322, %s338
      %p340 = scmp.eq.s32.totalorder %s33, 0
      %p341 = por %p339, %p340
      %s342 = ssub.s32 %s35, %s49
      %s343 = ssub.s32 %s36, %s45
      %s344 = sor.u32 %s342, %s343
      %p345 = scmp.eq.s32.totalorder %s344, 0
      %s347 = sadd.s32 %s346, 1
      %s348 = scalar_select %p345, %s346, %s347
      %p351 = pneg %p345
      %p352 = scmp.eq.s32.totalorder %s27, 1
      %p353 = por %p351, %p352
      %p354 = scmp.ne.s32.totalorder %s346, %s349
      %p355 = scmp.eq.s32.totalorder %s27, 0
      %p356 = por %p354, %p355
      %p357 = scmp.ne.s32.totalorder %s346, %s349
      %p358 = scmp.eq.s32.totalorder %s32, 1
      %p359 = por %p357, %p358
      %p360 = scmp.ne.s32.totalorder %s349, %s350
      %p361 = scmp.eq.s32.totalorder %s32, 0
      %p362 = por %p360, %p361
      %p363 = scmp.ne.s32.totalorder %s349, %s350
      %p364 = scmp.eq.s32.totalorder %s33, 1
      %p365 = por %p363, %p364
      %p367 = scmp.ne.s32.totalorder %s350, %s366
      %p368 = scmp.eq.s32.totalorder %s33, 0
      %p369 = por %p367, %p368
      %s370 = ssub.s32 %s35, %s49
      %s371 = ssub.s32 %s36, %s45
      %s372 = sor.u32 %s370, %s371
      %p373 = scmp.eq.s32.totalorder %s372, 0
      %s375 = sadd.s32 %s374, 1
      %s376 = scalar_select %p373, %s374, %s375
      %p379 = pneg %p373
      %p380 = scmp.eq.s32.totalorder %s27, 1
      %p381 = por %p379, %p380
      %p382 = scmp.ne.s32.totalorder %s374, %s377
      %p383 = scmp.eq.s32.totalorder %s27, 0
      %p384 = por %p382, %p383
      %p385 = scmp.ne.s32.totalorder %s374, %s377
      %p386 = scmp.eq.s32.totalorder %s32, 1
      %p387 = por %p385, %p386
      %p388 = scmp.ne.s32.totalorder %s377, %s378
      %p389 = scmp.eq.s32.totalorder %s32, 0
      %p390 = por %p388, %p389
      %p391 = scmp.ne.s32.totalorder %s377, %s378
      %p392 = scmp.eq.s32.totalorder %s33, 1
      %p393 = por %p391, %p392
      %p395 = scmp.ne.s32.totalorder %s378, %s394
      %p396 = scmp.eq.s32.totalorder %s33, 0
      %p397 = por %p395, %p396
      %s398 = ssub.s32 %s35, %s49
      %p399 = scmp.eq.s32.totalorder %s398, 0
      %s401 = sadd.s32 %s400, 1
      %s402 = scalar_select %p399, %s400, %s401
      %p405 = pneg %p399
      %p406 = scmp.eq.s32.totalorder %s27, 1
      %p407 = por %p405, %p406
      %p408 = scmp.ne.s32.totalorder %s400, %s403
      %p409 = scmp.eq.s32.totalorder %s27, 0
      %p410 = por %p408, %p409
      %p411 = scmp.ne.s32.totalorder %s400, %s403
      %p412 = scmp.eq.s32.totalorder %s32, 1
      %p413 = por %p411, %p412
      %p414 = scmp.ne.s32.totalorder %s403, %s404
      %p415 = scmp.eq.s32.totalorder %s32, 0
      %p416 = por %p414, %p415
      %p417 = scmp.ne.s32.totalorder %s403, %s404
      %p418 = scmp.eq.s32.totalorder %s33, 1
      %p419 = por %p417, %p418
      %p421 = scmp.ne.s32.totalorder %s404, %s420
      %p422 = scmp.eq.s32.totalorder %s33, 0
      %p423 = por %p421, %p422
      %s425 = sadd.s32 %s424, 1
      %p428 = scmp.eq.s32.totalorder %s27, 1
      %p429 = scmp.ne.s32.totalorder %s424, %s426
      %p430 = scmp.eq.s32.totalorder %s27, 0
      %p431 = por %p429, %p430
      %p432 = scmp.ne.s32.totalorder %s424, %s426
      %p433 = scmp.eq.s32.totalorder %s32, 1
      %p434 = por %p432, %p433
      %p435 = scmp.ne.s32.totalorder %s426, %s427
      %p436 = scmp.eq.s32.totalorder %s32, 0
      %p437 = por %p435, %p436
      %p438 = scmp.ne.s32.totalorder %s426, %s427
      %p439 = scmp.eq.s32.totalorder %s33, 1
      %p440 = por %p438, %p439
      %p442 = scmp.ne.s32.totalorder %s427, %s441
      %p443 = scmp.eq.s32.totalorder %s33, 0
      %p444 = por %p442, %p443
      %s446 = sadd.s32 %s445, 1
      %p449 = scmp.eq.s32.totalorder %s27, 1
      %p450 = scmp.ne.s32.totalorder %s445, %s447
      %p451 = scmp.eq.s32.totalorder %s27, 0
      %p452 = por %p450, %p451
      %p453 = scmp.ne.s32.totalorder %s445, %s447
      %p454 = scmp.eq.s32.totalorder %s32, 1
      %p455 = por %p453, %p454
      %p456 = scmp.ne.s32.totalorder %s447, %s448
      %p457 = scmp.eq.s32.totalorder %s32, 0
      %p458 = por %p456, %p457
      %p459 = scmp.ne.s32.totalorder %s447, %s448
      %p460 = scmp.eq.s32.totalorder %s33, 1
      %p461 = por %p459, %p460
      %p463 = scmp.ne.s32.totalorder %s448, %s462
      %p464 = scmp.eq.s32.totalorder %s33, 0
      %p465 = por %p463, %p464
      %s466 = ssub.s32 %s34, %s53
      %p467 = scmp.eq.s32.totalorder %s466, 0
      %s469 = sadd.s32 %s468, 1
      %s470 = scalar_select %p467, %s468, %s469
      %p473 = pneg %p467
      %p474 = scmp.eq.s32.totalorder %s27, 1
      %p475 = por %p473, %p474
      %p476 = scmp.ne.s32.totalorder %s468, %s471
      %p477 = scmp.eq.s32.totalorder %s27, 0
      %p478 = por %p476, %p477
      %p479 = scmp.ne.s32.totalorder %s468, %s471
      %p480 = scmp.eq.s32.totalorder %s32, 1
      %p481 = por %p479, %p480
      %p482 = scmp.ne.s32.totalorder %s471, %s472
      %p483 = scmp.eq.s32.totalorder %s32, 0
      %p484 = por %p482, %p483
      %p485 = scmp.ne.s32.totalorder %s471, %s472
      %p486 = scmp.eq.s32.totalorder %s33, 1
      %p487 = por %p485, %p486
      %p489 = scmp.ne.s32.totalorder %s472, %s488
      %p490 = scmp.eq.s32.totalorder %s33, 0
      %p491 = por %p489, %p490
      %p492 = scmp.le.s32.totalorder 1, %s27
      %p493 = scmp.lt.s32.totalorder %s27, 3
      %p494 = pnand %p492, %p493
      %p495 = pneg %p494
      // Predicated region
      $region9: #{tpu_custom_call.1} parent=5 // pred_check
        _
      $region10: #{tpu_custom_call.1} parent=5 // pred_check_branch
        %497 = sbr.rel (%p494) target = $region12
      $region11: #{tpu_custom_call.1} parent=5 // pred_region
        %s498 = ssub.s32 %s27, 1
        // Predicated region
        $region13: #{tpu_custom_call.1} parent=11 // pred_check
          %p499 = pneg %p72
        $region14: #{tpu_custom_call.1} parent=11 // pred_check_branch
          %501 = sbr.rel (%p499) target = $region16
        $region15: #{tpu_custom_call.1} parent=11 // pred_region
          %s502 = smul.u32 2, %s37
          %s504 = ssub.s32 256, 256
          %505 = vsyncadd [#allocation6], %s504
          %s506 = smul.addr %s502, 128
          %s507 = scalar_lea.hbm %s0, %s506
          %s508 = sshll.u32 [#allocation5], 4
          %s509 = int_to_ptr.vmem [resolvable:$true] %s508
          %514 = dma.hbm_to_vmem [thread:$0]  %s507, 256, %s509, [#allocation6], 128, 128, 8
        $region16: #{tpu_custom_call.1} parent=11 // pred_fallthru
          _
        // Predicated region
        $region17: #{tpu_custom_call.1} parent=11 // pred_check
          %p515 = pneg %p98
        $region18: #{tpu_custom_call.1} parent=11 // pred_check_branch
          %517 = sbr.rel (%p515) target = $region20
        $region19: #{tpu_custom_call.1} parent=11 // pred_region
          %s518 = smul.u32 2, %s37
          %p519 = scmp.lt.s32.totalorder %s518, 1
          %s520 = scalar_select %p519, %s518, 1
          %s521 = scalar_lea.vmem %s1, %s520
          %s522 = smul.u32 2, %s37
        $region20: #{tpu_custom_call.1} parent=11 // pred_fallthru
          _
        // Predicated region
        $region21: #{tpu_custom_call.1} parent=11 // pred_check
          %p523 = pneg %p437
        $region22: #{tpu_custom_call.1} parent=11 // pred_check_branch
          %525 = sbr.rel (%p523) target = $region24
        $region23: #{tpu_custom_call.1} parent=11 // pred_region
          _
        $region24: #{tpu_custom_call.1} parent=11 // pred_fallthru
          _
        // Predicated region
        $region25: #{tpu_custom_call.1} parent=11 // pred_check
          %p526 = pneg %p458
        $region26: #{tpu_custom_call.1} parent=11 // pred_check_branch
          %528 = sbr.rel (%p526) target = $region28
        $region27: #{tpu_custom_call.1} parent=11 // pred_region
          _
        $region28: #{tpu_custom_call.1} parent=11 // pred_fallthru
          _
      $region12: #{tpu_custom_call.1} parent=5 // pred_fallthru
        _
      %p529 = scmp.lt.s32.totalorder %s27, 2
      // Predicated region
      $region29: #{tpu_custom_call.1} parent=5 // pred_check
        %p530 = pneg %p529
      $region30: #{tpu_custom_call.1} parent=5 // pred_check_branch
        %532 = sbr.rel (%p530) target = $region32
      $region31: #{tpu_custom_call.1} parent=5 // pred_region
        // Predicated region
        $region33: #{tpu_custom_call.1} parent=31 // pred_check
          %p533 = pneg %p118
        $region34: #{tpu_custom_call.1} parent=31 // pred_check_branch
          %535 = sbr.rel (%p533) target = $region36
        $region35: #{tpu_custom_call.1} parent=31 // pred_region
          %p536 = scmp.lt.s32.totalorder %s35, 1
          %s537 = scalar_select %p536, %s35, 1
          %s538 = scalar_lea.vmem %s2, %s537
        $region36: #{tpu_custom_call.1} parent=31 // pred_fallthru
          _
        // Predicated region
        $region37: #{tpu_custom_call.1} parent=31 // pred_check
          %p539 = pneg %p144
        $region38: #{tpu_custom_call.1} parent=31 // pred_check_branch
          %541 = sbr.rel (%p539) target = $region40
        $region39: #{tpu_custom_call.1} parent=31 // pred_region
          %p542 = scmp.lt.s32.totalorder %s35, 1
          %s543 = scalar_select %p542, %s35, 1
          %s544 = scalar_lea.vmem %s3, %s543
        $region40: #{tpu_custom_call.1} parent=31 // pred_fallthru
          _
        // Predicated region
        $region41: #{tpu_custom_call.1} parent=31 // pred_check
          %p545 = pneg %p170
        $region42: #{tpu_custom_call.1} parent=31 // pred_check_branch
          %547 = sbr.rel (%p545) target = $region44
        $region43: #{tpu_custom_call.1} parent=31 // pred_region
          %p548 = scmp.lt.s32.totalorder %s35, 1
          %s549 = scalar_select %p548, %s35, 1
          %s550 = smul.addr %s549, 4
          %s551 = smul.addr %s550, 4
          %s552 = scalar_lea.vmem %s4, %s551
        $region44: #{tpu_custom_call.1} parent=31 // pred_fallthru
          _
        // Predicated region
        $region45: #{tpu_custom_call.1} parent=31 // pred_check
          %p553 = pneg %p196
        $region46: #{tpu_custom_call.1} parent=31 // pred_check_branch
          %555 = sbr.rel (%p553) target = $region48
        $region47: #{tpu_custom_call.1} parent=31 // pred_region
          %p556 = scmp.lt.s32.totalorder %s35, 1
          %s557 = scalar_select %p556, %s35, 1
          %s558 = scalar_lea.vmem %s5, %s557
        $region48: #{tpu_custom_call.1} parent=31 // pred_fallthru
          _
        // Predicated region
        $region49: #{tpu_custom_call.1} parent=31 // pred_check
          %p559 = pneg %p222
        $region50: #{tpu_custom_call.1} parent=31 // pred_check_branch
          %561 = sbr.rel (%p559) target = $region52
        $region51: #{tpu_custom_call.1} parent=31 // pred_region
          %p562 = scmp.lt.s32.totalorder %s35, 1
          %s563 = scalar_select %p562, %s35, 1
          %s564 = smul.addr %s563, 4
          %s565 = smul.addr %s564, 4
          %s566 = scalar_lea.vmem %s6, %s565
        $region52: #{tpu_custom_call.1} parent=31 // pred_fallthru
          _
        // Predicated region
        $region53: #{tpu_custom_call.1} parent=31 // pred_check
          %p567 = pneg %p248
        $region54: #{tpu_custom_call.1} parent=31 // pred_check_branch
          %569 = sbr.rel (%p567) target = $region56
        $region55: #{tpu_custom_call.1} parent=31 // pred_region
          %p570 = scmp.lt.s32.totalorder %s35, 1
          %s571 = scalar_select %p570, %s35, 1
          %s572 = scalar_lea.vmem %s7, %s571
        $region56: #{tpu_custom_call.1} parent=31 // pred_fallthru
          _
        // Predicated region
        $region57: #{tpu_custom_call.1} parent=31 // pred_check
          %p573 = pneg %p274
        $region58: #{tpu_custom_call.1} parent=31 // pred_check_branch
          %575 = sbr.rel (%p573) target = $region60
        $region59: #{tpu_custom_call.1} parent=31 // pred_region
          %p576 = scmp.lt.s32.totalorder %s35, 1
          %s577 = scalar_select %p576, %s35, 1
          %s578 = scalar_lea.vmem %s8, %s577
        $region60: #{tpu_custom_call.1} parent=31 // pred_fallthru
          _
        // Predicated region
        $region61: #{tpu_custom_call.1} parent=31 // pred_check
          %p579 = pneg %p300
        $region62: #{tpu_custom_call.1} parent=31 // pred_check_branch
          %581 = sbr.rel (%p579) target = $region64
        $region63: #{tpu_custom_call.1} parent=31 // pred_region
          %s582 = sand.u32 %s27, 1
          %s583 = scalar_lea.sflag [#allocation9], %s582
          %s584 = sand.u32 %s290, 1
          %s585 = scalar_lea.vmem [#allocation8], %s584
          %s587 = ssub.s32 16, 16
          %588 = vsyncadd %s583, %s587
          %s589 = smul.addr %s35, 16
          %s590 = scalar_lea.hbm %s9, %s589
          %s592 = sshll.u32 %s585, 4
          %s593 = int_to_ptr.vmem [resolvable:$true] %s592
          %595 = dma.hbm_to_vmem [thread:$0]  %s590, 16, %s593, %s583
        $region64: #{tpu_custom_call.1} parent=31 // pred_fallthru
          _
        // Predicated region
        $region65: #{tpu_custom_call.1} parent=31 // pred_check
          %p596 = pneg %p328
        $region66: #{tpu_custom_call.1} parent=31 // pred_check_branch
          %598 = sbr.rel (%p596) target = $region68
        $region67: #{tpu_custom_call.1} parent=31 // pred_region
          %p599 = scmp.lt.s32.totalorder %s35, 1
          %s600 = scalar_select %p599, %s35, 1
          %p601 = scmp.lt.s32.totalorder %s36, 0
          %s602 = scalar_select %p601, %s36, 0
          %s603 = smul.addr %s600, 4
          %s604 = sadd.s32 %s602, %s603
          %s605 = smul.addr %s604, 4
          %s606 = scalar_lea.vmem %s10, %s605
        $region68: #{tpu_custom_call.1} parent=31 // pred_fallthru
          _
        // Predicated region
        $region69: #{tpu_custom_call.1} parent=31 // pred_check
          %p607 = pneg %p356
        $region70: #{tpu_custom_call.1} parent=31 // pred_check_branch
          %609 = sbr.rel (%p607) target = $region72
        $region71: #{tpu_custom_call.1} parent=31 // pred_region
          %s610 = sand.u32 %s27, 1
          %s611 = scalar_lea.sflag [#allocation9], %s610
          %s612 = sand.u32 %s346, 1
          %s613 = scalar_lea.vmem [#allocation10], %s612
          %s615 = ssub.s32 16, 16
          %616 = vsyncadd %s611, %s615
          %s617 = sadd.s32 %s36, %s35
          %s618 = smul.addr %s617, 16
          %s619 = scalar_lea.hbm %s11, %s618
          %s621 = sshll.u32 %s613, 4
          %s622 = int_to_ptr.vmem [resolvable:$true] %s621
          %624 = dma.hbm_to_vmem [thread:$0]  %s619, 16, %s622, %s611
        $region72: #{tpu_custom_call.1} parent=31 // pred_fallthru
          _
        // Predicated region
        $region73: #{tpu_custom_call.1} parent=31 // pred_check
          %p625 = pneg %p384
        $region74: #{tpu_custom_call.1} parent=31 // pred_check_branch
          %627 = sbr.rel (%p625) target = $region76
        $region75: #{tpu_custom_call.1} parent=31 // pred_region
          %s628 = smul.u32 8, %s36
          %p629 = scmp.lt.s32.totalorder %s35, 1
          %s630 = scalar_select %p629, %s35, 1
          %p631 = scmp.lt.s32.totalorder %s628, 7
          %s632 = scalar_select %p631, %s628, 7
          %s633 = smul.addr %s630, 8
          %s634 = sadd.s32 %s632, %s633
          %s635 = smul.addr %s634, 4
          %s636 = scalar_lea.vmem %s12, %s635
          %s637 = smul.u32 8, %s36
        $region76: #{tpu_custom_call.1} parent=31 // pred_fallthru
          _
        // Predicated region
        $region77: #{tpu_custom_call.1} parent=31 // pred_check
          %p638 = pneg %p410
        $region78: #{tpu_custom_call.1} parent=31 // pred_check_branch
          %640 = sbr.rel (%p638) target = $region80
        $region79: #{tpu_custom_call.1} parent=31 // pred_region
          %p641 = scmp.lt.s32.totalorder %s35, 1
          %s642 = scalar_select %p641, %s35, 1
          %s643 = scalar_lea.vmem %s13, %s642
        $region80: #{tpu_custom_call.1} parent=31 // pred_fallthru
          _
      $region32: #{tpu_custom_call.1} parent=5 // pred_fallthru
        _
      %p644 = scmp.le.s32.totalorder 1, %s27
      %p645 = scmp.lt.s32.totalorder %s27, 3
      %p646 = pnand %p644, %p645
      %p647 = pneg %p646
      // Predicated region
      $region81: #{tpu_custom_call.1} parent=5 // pred_check
        _
      $region82: #{tpu_custom_call.1} parent=5 // pred_check_branch
        %649 = sbr.rel (%p646) target = $region84
      $region83: #{tpu_custom_call.1} parent=5 // pred_region
        %s650 = ssub.s32 %s27, 1
        // Predicated region
        $region85: #{tpu_custom_call.1} parent=83 // pred_check
          %p651 = pneg %p72
        $region86: #{tpu_custom_call.1} parent=83 // pred_check_branch
          %653 = sbr.rel (%p651) target = $region88
        $region87: #{tpu_custom_call.1} parent=83 // pred_region
          %654 = dma.done [#allocation6], 256
        $region88: #{tpu_custom_call.1} parent=83 // pred_fallthru
          _
        %s655 = sand.u32 %s32, 1
        %s656 = scalar_lea.sflag [#allocation9], %s655
        %s657 = sand.u32 %s293, 1
        %s658 = scalar_lea.vmem [#allocation8], %s657
        // Predicated region
        $region89: #{tpu_custom_call.1} parent=83 // pred_check
          %p659 = pneg %p306
        $region90: #{tpu_custom_call.1} parent=83 // pred_check_branch
          %661 = sbr.rel (%p659) target = $region92
        $region91: #{tpu_custom_call.1} parent=83 // pred_region
          %662 = dma.done %s656, 16
        $region92: #{tpu_custom_call.1} parent=83 // pred_fallthru
          _
        %s663 = sand.u32 %s32, 1
        %s664 = scalar_lea.sflag [#allocation9], %s663
        %s665 = sand.u32 %s349, 1
        %s666 = scalar_lea.vmem [#allocation10], %s665
        // Predicated region
        $region93: #{tpu_custom_call.1} parent=83 // pred_check
          %p667 = pneg %p362
        $region94: #{tpu_custom_call.1} parent=83 // pred_check_branch
          %669 = sbr.rel (%p667) target = $region96
        $region95: #{tpu_custom_call.1} parent=83 // pred_region
          %670 = dma.done %s664, 16
        $region96: #{tpu_custom_call.1} parent=83 // pred_fallthru
          _
        %p671 = pneg %p72
        %p672 = pneg %p69
        %s673 = smul.u32 2, %s37
        %p674 = scmp.lt.s32.totalorder %s673, 1
        %s675 = scalar_select %p674, %s673, 1
        %s676 = scalar_lea.vmem %s1, %s675
        %p677 = pneg %p98
        %p678 = pneg %p95
        %p679 = scmp.lt.s32.totalorder %s38, 1
        %s680 = scalar_select %p679, %s38, 1
        %s681 = scalar_lea.vmem %s2, %s680
        %p682 = pneg %p124
        %p683 = pneg %p121
        %p684 = scmp.lt.s32.totalorder %s38, 1
        %s685 = scalar_select %p684, %s38, 1
        %s686 = scalar_lea.vmem %s3, %s685
        %p687 = pneg %p150
        %p688 = pneg %p147
        %p689 = scmp.lt.s32.totalorder %s38, 1
        %s690 = scalar_select %p689, %s38, 1
        %s691 = smul.addr %s690, 4
        %s692 = smul.addr %s691, 4
        %s693 = scalar_lea.vmem %s4, %s692
        %p694 = pneg %p176
        %p695 = pneg %p173
        %p696 = scmp.lt.s32.totalorder %s38, 1
        %s697 = scalar_select %p696, %s38, 1
        %s698 = scalar_lea.vmem %s5, %s697
        %p699 = pneg %p202
        %p700 = pneg %p199
        %p701 = scmp.lt.s32.totalorder %s38, 1
        %s702 = scalar_select %p701, %s38, 1
        %s703 = smul.addr %s702, 4
        %s704 = smul.addr %s703, 4
        %s705 = scalar_lea.vmem %s6, %s704
        %p706 = pneg %p228
        %p707 = pneg %p225
        %p708 = scmp.lt.s32.totalorder %s38, 1
        %s709 = scalar_select %p708, %s38, 1
        %s710 = scalar_lea.vmem %s7, %s709
        %p711 = pneg %p254
        %p712 = pneg %p251
        %p713 = scmp.lt.s32.totalorder %s38, 1
        %s714 = scalar_select %p713, %s38, 1
        %s715 = scalar_lea.vmem %s8, %s714
        %p716 = pneg %p280
        %p717 = pneg %p277
        %s718 = sand.u32 %s32, 1
        %s719 = scalar_lea.sflag [#allocation9], %s718
        %s720 = sand.u32 %s293, 1
        %s721 = scalar_lea.vmem [#allocation8], %s720
        %p722 = pneg %p306
        %p723 = pneg %p303
        %p724 = scmp.lt.s32.totalorder %s38, 1
        %s725 = scalar_select %p724, %s38, 1
        %p726 = scmp.lt.s32.totalorder %s39, 0
        %s727 = scalar_select %p726, %s39, 0
        %s728 = smul.addr %s725, 4
        %s729 = sadd.s32 %s727, %s728
        %s730 = smul.addr %s729, 4
        %s731 = scalar_lea.vmem %s10, %s730
        %p732 = pneg %p334
        %p733 = pneg %p331
        %s734 = sand.u32 %s32, 1
        %s735 = scalar_lea.sflag [#allocation9], %s734
        %s736 = sand.u32 %s349, 1
        %s737 = scalar_lea.vmem [#allocation10], %s736
        %p738 = pneg %p362
        %p739 = pneg %p359
        %s740 = smul.u32 8, %s39
        %p741 = scmp.lt.s32.totalorder %s38, 1
        %s742 = scalar_select %p741, %s38, 1
        %p743 = scmp.lt.s32.totalorder %s740, 7
        %s744 = scalar_select %p743, %s740, 7
        %s745 = smul.addr %s742, 8
        %s746 = sadd.s32 %s744, %s745
        %s747 = smul.addr %s746, 4
        %s748 = scalar_lea.vmem %s12, %s747
        %p749 = pneg %p390
        %p750 = pneg %p387
        %p751 = scmp.lt.s32.totalorder %s38, 1
        %s752 = scalar_select %p751, %s38, 1
        %s753 = scalar_lea.vmem %s13, %s752
        %p754 = pneg %p416
        %p755 = pneg %p413
        %p756 = pneg %p437
        %p757 = pneg %p434
        %p758 = pneg %p458
        %p759 = pneg %p455
        %p760 = pneg %p484
        %p761 = pneg %p481
        %s762 = smul.u32 2, %s37
        %s763 = smul.u32 2, %s37
        %p764 = scmp.lt.s32.totalorder %s763, 1
        %s765 = scalar_select %p764, %s763, 1
        %s766 = scalar_lea.vmem %s1, %s765
        %s767 = smul.u32 2, %s37
        %p768 = scmp.lt.s32.totalorder %s38, 1
        %s769 = scalar_select %p768, %s38, 1
        %s770 = scalar_lea.vmem %s2, %s769
        %p771 = scmp.lt.s32.totalorder %s38, 1
        %s772 = scalar_select %p771, %s38, 1
        %s773 = scalar_lea.vmem %s3, %s772
        %p774 = scmp.lt.s32.totalorder %s38, 1
        %s775 = scalar_select %p774, %s38, 1
        %s776 = smul.addr %s775, 4
        %s777 = smul.addr %s776, 4
        %s778 = scalar_lea.vmem %s4, %s777
        %p779 = scmp.lt.s32.totalorder %s38, 1
        %s780 = scalar_select %p779, %s38, 1
        %s781 = scalar_lea.vmem %s5, %s780
        %p782 = scmp.lt.s32.totalorder %s38, 1
        %s783 = scalar_select %p782, %s38, 1
        %s784 = smul.addr %s783, 4
        %s785 = smul.addr %s784, 4
        %s786 = scalar_lea.vmem %s6, %s785
        %p787 = scmp.lt.s32.totalorder %s38, 1
        %s788 = scalar_select %p787, %s38, 1
        %s789 = scalar_lea.vmem %s7, %s788
        %p790 = scmp.lt.s32.totalorder %s38, 1
        %s791 = scalar_select %p790, %s38, 1
        %s792 = scalar_lea.vmem %s8, %s791
        %p793 = scmp.lt.s32.totalorder %s38, 1
        %s794 = scalar_select %p793, %s38, 1
        %p795 = scmp.lt.s32.totalorder %s39, 0
        %s796 = scalar_select %p795, %s39, 0
        %s797 = smul.addr %s794, 4
        %s798 = sadd.s32 %s796, %s797
        %s799 = smul.addr %s798, 4
        %s800 = scalar_lea.vmem %s10, %s799
        %s801 = smul.u32 8, %s39
        %p802 = scmp.lt.s32.totalorder %s38, 1
        %s803 = scalar_select %p802, %s38, 1
        %p804 = scmp.lt.s32.totalorder %s801, 7
        %s805 = scalar_select %p804, %s801, 7
        %s806 = smul.addr %s803, 8
        %s807 = sadd.s32 %s805, %s806
        %s808 = smul.addr %s807, 4
        %s809 = scalar_lea.vmem %s12, %s808
        %s810 = smul.u32 8, %s39
        %p811 = scmp.lt.s32.totalorder %s38, 1
        %s812 = scalar_select %p811, %s38, 1
        %s813 = scalar_lea.vmem %s13, %s812
        %s814 = smul.u32 2, %s37
        %p816 = scmp.eq.s32.totalorder %s38, 0
        %p817 = scmp.eq.s32.totalorder %s39, 0
        %p818 = pnand %p816, %p817
        %p819 = pneg %p818
        // Predicated region
        $region97: #{tpu_custom_call.1} parent=83 // pred_check
          _
        $region98: #{tpu_custom_call.1} parent=83 // pred_check_branch
          %821 = sbr.rel (%p818) target = $region100
        $region99: #{tpu_custom_call.1} parent=83 // pred_region
          %v822 = vld [vmem:[#allocation5] sm:$0xff]
          %v823 = vld [vmem:[#allocation5 + $0x8] sm:$0xff]
          %vm824 = vcmask 261120
          %825 = vst.msk [vmem:[#allocation2] sm:$0xff] %vm824, %v822
          %826 = vst.msk [vmem:[#allocation2 + $0x8] sm:$0xff] %vm824, %v823
        $region100: #{tpu_custom_call.1} parent=83 // pred_fallthru
          _
        // Predicated region
        $region101: #{tpu_custom_call.1} parent=83 // pred_check
          %p827 = pneg %p817
        $region102: #{tpu_custom_call.1} parent=83 // pred_check_branch
          %829 = sbr.rel (%p827) target = $region104
        $region103: #{tpu_custom_call.1} parent=83 // pred_region
          %v830 = vld [vmem:[#allocation2] sm:$0xff]
          %v831 = vld [vmem:[#allocation2 + $0x8] sm:$0xff]
          %v832 = vld [vmem:[%s770] sm:$0x1]
          %v833 = vld [vmem:[%s773] sm:$0x1]
          %vm834 = vcmask 261120
          %v835 = vsel %vm834, %v830, 0.0
          %836 = vadd.xlane.f32.xlu0 %v835
          %v837 = vpop.xlane.xlu0 %836
          %v838 = vsel %vm834, %v831, 0.0
          %839 = vadd.xlane.f32.xlu0 %v838
          %v840 = vpop.xlane.xlu0 %839
          %v841 = vrcp.pop 32.0
          %v842 = vmul.f32 %v837, %v841
          %v843 = vmul.f32 %v840, %v841
          %v844 = vsub.f32 %v830, %v842
          %v845 = vsub.f32 %v831, %v843
          %v846 = vmul.f32 %v844, %v844
          %v847 = vmul.f32 %v845, %v845
          %v848 = vsel %vm834, %v846, 0.0
          %849 = vadd.xlane.f32.xlu0 %v848
          %v850 = vpop.xlane.xlu0 %849
          %v851 = vsel %vm834, %v847, 0.0
          %852 = vadd.xlane.f32.xlu0 %v851
          %v853 = vpop.xlane.xlu0 %852
          %v854 = vmul.f32 %v850, 0.032258064
          %v855 = vmul.f32 %v853, 0.032258064
          %v856 = vrsqrt.pop %v854
          %v857 = vmul.f32 %v854, %v856
          %vm858 = vcmp.eq.f32.partialorder %v854, inf
          %v859 = vsel %vm858, %v854, %v857
          %vm860 = vcmp.eq.f32.partialorder %v854, 0.0
          %v861 = vand.u32 %v854, 2147483648
          %v862 = vsel %vm860, %v861, %v859
          %v863 = vrsqrt.pop %v855
          %v864 = vmul.f32 %v855, %v863
          %vm865 = vcmp.eq.f32.partialorder %v855, inf
          %v866 = vsel %vm865, %v855, %v864
          %vm867 = vcmp.eq.f32.partialorder %v855, 0.0
          %v868 = vand.u32 %v855, 2147483648
          %v869 = vsel %vm867, %v868, %v866
          %v871 = vlaneseq
          %v872 = vshrl.u32 %v871, 7
          %v873 = vsub.s32 0, %v872
          %v874 = vrot.slane %v832, %v873
          %v876 = vmul.f32 %v874, %v844
          %v877 = vmul.f32 %v874, %v845
          %v878 = vadd.f32 %v862, 1e-06
          %v879 = vadd.f32 %v869, 1e-06
          %v880 = vrcp.pop %v878
          %v881 = vmul.f32 1.0, %v880
          %v882 = vrcp.pop %v879
          %v883 = vmul.f32 1.0, %v882
          %v884 = vmul.f32 %v876, %v881
          %v885 = vmul.f32 %v877, %v883
          %v887 = vlaneseq
          %v888 = vshrl.u32 %v887, 7
          %v889 = vsub.s32 0, %v888
          %v890 = vrot.slane %v833, %v889
          %v892 = vadd.f32 %v884, %v890
          %v893 = vadd.f32 %v885, %v890
          %v894 = vpack.c.bf16 %v893, %v892
          %v895 = vld [vmem:[%s778] sm:$0xf]
          %v896 = vld [vmem:[%s778 + $0x4] sm:$0xf]
          %v897 = vld [vmem:[%s778 + $0x8] sm:$0xf]
          %v898 = vld [vmem:[%s778 + $0xc] sm:$0xf]
          %v899 = vld [vmem:[%s781] sm:$0x1]
          %v901 = vlaneseq
          %v902 = vshrl.u32 %v901, 7
          %v903 = vsub.s32 0, %v902
          %v904 = vrot.slane %v899, %v903
          %v910 = vunpack.c.l.b16 %v895
          %v911 = vunpack.c.l.b16 %v896
          %v912 = vunpack.c.l.b16 %v897
          %v913 = vunpack.c.l.b16 %v898
          %v914 = vpack.c.b16 %v911, %v910
          %v915 = vpack.c.b16 %v913, %v912
          %v919 = vsel %vm834, %v894, 0
          %921 = vmatprep.subr.bf16.mxu0 0
          %922 = vmatpush1.bf16.msra.mxu0 %v914
          %923 = vmatprep.subr.bf16.mxu0 0
          %924 = vmatpush1.bf16.msra.mxu0 %v915
          %925 = vmatprep.subr.bf16.mxu0 0
          %926 = vmatpush1.bf16.msra.mxu0 0
          %927 = vmatprep.subr.bf16.mxu0 0
          %928 = vmatpush1.bf16.msra.mxu0 0
          %929 = vmatprep.subr.bf16.mxu0 0
          %930 = vmatpush1.bf16.msra.mxu0 0
          %931 = vmatprep.subr.bf16.mxu0 0
          %932 = vmatpush1.bf16.msra.mxu0 0
          %933 = vmatprep.subr.bf16.mxu0 0
          %934 = vmatpush1.bf16.msra.mxu0 0
          %935 = vmatprep.subr.bf16.mxu0 0
          %936 = vmatpush1.bf16.msra.mxu0 0
          %937 = vmatprep.subr.bf16.mxu0 0
          %938 = vmatpush1.bf16.msra.mxu0 0
          %939 = vmatprep.subr.bf16.mxu0 0
          %940 = vmatpush1.bf16.msra.mxu0 0
          %941 = vmatprep.subr.bf16.mxu0 0
          %942 = vmatpush1.bf16.msra.mxu0 0
          %943 = vmatprep.subr.bf16.mxu0 0
          %944 = vmatpush1.bf16.msra.mxu0 0
          %945 = vmatprep.subr.bf16.mxu0 0
          %946 = vmatpush1.bf16.msra.mxu0 0
          %947 = vmatprep.subr.bf16.mxu0 0
          %948 = vmatpush1.bf16.msra.mxu0 0
          %949 = vmatprep.subr.bf16.mxu0 0
          %950 = vmatpush1.bf16.msra.mxu0 0
          %951 = vmatprep.subr.bf16.mxu0 0
          %952 = vmatpush1.bf16.msra.mxu0 0
          %953 = vmatprep.mubr.bf16.mxu0 0
          %954 = vmatmul.mubr.bf16.gmra.mrb[0].mxu0 %v919
          %v955 = vpop.f32.mrb[0].mxu0
          %v956 = vadd.f32 %v904, %v955
          %v957 = vpop.f32.mrb[0].mxu0
          %v958 = vpop.f32.mrb[0].mxu0
          %v959 = vadd.f32 %v904, %v958
          %v960 = vpop.f32.mrb[0].mxu0
          %961 = vdwg.mxu0
          %v962 = vmul.f32 %v956, 0.35355338
          %v963 = vmul.f32 %v959, 0.35355338
          %v964 = vpack.c.bf16 %v963, %v962
          %v966 = vunpack.c.l.b16 %v964
          %v967 = vunpack.c.h.b16 %v964
          %v968 = vpack.c.b16 %v966, %v966
          %v969 = vpack.c.b16 %v967, %v967
          %v970 = vpack.c.bf16 %v959, %v956
          %v972 = vunpack.c.l.b16 %v970
          %v973 = vunpack.c.h.b16 %v970
          %v974 = vld [vmem:[%s766] sm:$0x1]
          %v975 = vld [vmem:[%s766 + $0x1] sm:$0x1]
          %v976 = vsub.f32 %v974, 1.0
          %v977 = vsub.f32 %v975, 1.0
          %v978 = vmul.f32 %v976, 1e+09
          %v979 = vmul.f32 %v977, 1e+09
          %v982 = vlaneseq
          %v983 = vshrl.u32 %v982, 7
          %v984 = vsub.s32 0, %v983
          %v985 = vrot.slane %v978, %v984
          %v986 = vlaneseq
          %v987 = vshrl.u32 %v986, 7
          %v988 = vsub.s32 0, %v987
          %v989 = vrot.slane %v979, %v988
          %v992 = vpack.c.b16 %v972, %v972
          %993 = vrot.lane.b32.xlu0 %v992, 96
          %v994 = vpop.permute.xlu0 %993
          %vm995 = vcmask 64512
          %v997 = vsel %vm995, %v968, 0
          %v1000 = vsel %vm995, %v994, 0
          %1002 = vmatprep.subr.bf16.mxu0 0
          %1003 = vmatpush1.bf16.xpose.msra.mxu0 %v1000
          %1004 = vmatprep.subr.bf16.mxu0 0
          %1005 = vmatpush1.bf16.xpose.msra.mxu0 0
          %1006 = vmatprep.subr.bf16.mxu0 0
          %1007 = vmatpush1.bf16.xpose.msra.mxu0 0
          %1008 = vmatprep.subr.bf16.mxu0 0
          %1009 = vmatpush1.bf16.xpose.msra.mxu0 0
          %1010 = vmatprep.subr.bf16.mxu0 0
          %1011 = vmatpush1.bf16.xpose.msra.mxu0 0
          %1012 = vmatprep.subr.bf16.mxu0 0
          %1013 = vmatpush1.bf16.xpose.msra.mxu0 0
          %1014 = vmatprep.subr.bf16.mxu0 0
          %1015 = vmatpush1.bf16.xpose.msra.mxu0 0
          %1016 = vmatprep.subr.bf16.mxu0 0
          %1017 = vmatpush1.bf16.xpose.msra.mxu0 0
          %1018 = vmatprep.subr.bf16.mxu0 0
          %1019 = vmatpush1.bf16.xpose.msra.mxu0 0
          %1020 = vmatprep.subr.bf16.mxu0 0
          %1021 = vmatpush1.bf16.xpose.msra.mxu0 0
          %1022 = vmatprep.subr.bf16.mxu0 0
          %1023 = vmatpush1.bf16.xpose.msra.mxu0 0
          %1024 = vmatprep.subr.bf16.mxu0 0
          %1025 = vmatpush1.bf16.xpose.msra.mxu0 0
          %1026 = vmatprep.subr.bf16.mxu0 0
          %1027 = vmatpush1.bf16.xpose.msra.mxu0 0
          %1028 = vmatprep.subr.bf16.mxu0 0
          %1029 = vmatpush1.bf16.xpose.msra.mxu0 0
          %1030 = vmatprep.subr.bf16.mxu0 0
          %1031 = vmatpush1.bf16.xpose.msra.mxu0 0
          %1032 = vmatprep.subr.bf16.mxu0 0
          %1033 = vmatpush1.bf16.xpose.msra.mxu0 0
          %1034 = vmatprep.mubr.bf16.mxu0 0
          %1035 = vmatmul.mubr.bf16.gmra.mrb[0].mxu0 %v997
          %v1036 = vpop.f32.mrb[0].mxu0
          %v1037 = vadd.f32 %v985, %v1036
          %v1038 = vpop.f32.mrb[0].mxu0
          %v1039 = vpop.f32.mrb[0].mxu0
          %v1040 = vpop.f32.mrb[0].mxu0
          %1041 = vdwg.mxu0
          %v1042 = vpack.c.b16 %v973, %v973
          %1043 = vrot.lane.b32.xlu0 %v1042, 96
          %v1044 = vpop.permute.xlu0 %1043
          %v1046 = vsel %vm995, %v969, 0
          %v1049 = vsel %vm995, %v1044, 0
          %1051 = vmatprep.subr.bf16.mxu0 0
          %1052 = vmatpush1.bf16.xpose.msra.mxu0 %v1049
          %1053 = vmatprep.subr.bf16.mxu0 0
          %1054 = vmatpush1.bf16.xpose.msra.mxu0 0
          %1055 = vmatprep.subr.bf16.mxu0 0
          %1056 = vmatpush1.bf16.xpose.msra.mxu0 0
          %1057 = vmatprep.subr.bf16.mxu0 0
          %1058 = vmatpush1.bf16.xpose.msra.mxu0 0
          %1059 = vmatprep.subr.bf16.mxu0 0
          %1060 = vmatpush1.bf16.xpose.msra.mxu0 0
          %1061 = vmatprep.subr.bf16.mxu0 0
          %1062 = vmatpush1.bf16.xpose.msra.mxu0 0
          %1063 = vmatprep.subr.bf16.mxu0 0
          %1064 = vmatpush1.bf16.xpose.msra.mxu0 0
          %1065 = vmatprep.subr.bf16.mxu0 0
          %1066 = vmatpush1.bf16.xpose.msra.mxu0 0
          %1067 = vmatprep.subr.bf16.mxu0 0
          %1068 = vmatpush1.bf16.xpose.msra.mxu0 0
          %1069 = vmatprep.subr.bf16.mxu0 0
          %1070 = vmatpush1.bf16.xpose.msra.mxu0 0
          %1071 = vmatprep.subr.bf16.mxu0 0
          %1072 = vmatpush1.bf16.xpose.msra.mxu0 0
          %1073 = vmatprep.subr.bf16.mxu0 0
          %1074 = vmatpush1.bf16.xpose.msra.mxu0 0
          %1075 = vmatprep.subr.bf16.mxu0 0
          %1076 = vmatpush1.bf16.xpose.msra.mxu0 0
          %1077 = vmatprep.subr.bf16.mxu0 0
          %1078 = vmatpush1.bf16.xpose.msra.mxu0 0
          %1079 = vmatprep.subr.bf16.mxu0 0
          %1080 = vmatpush1.bf16.xpose.msra.mxu0 0
          %1081 = vmatprep.subr.bf16.mxu0 0
          %1082 = vmatpush1.bf16.xpose.msra.mxu0 0
          %1083 = vmatprep.mubr.bf16.mxu0 0
          %1084 = vmatmul.mubr.bf16.gmra.mrb[0].mxu0 %v1046
          %v1085 = vpop.f32.mrb[0].mxu0
          %v1086 = vadd.f32 %v989, %v1085
          %v1087 = vpop.f32.mrb[0].mxu0
          %v1088 = vpop.f32.mrb[0].mxu0
          %v1089 = vpop.f32.mrb[0].mxu0
          %1090 = vdwg.mxu0
          %v1091 = vsel %vm995, %v1037, -inf
          %1092 = vmax.xlane.f32.xlu0 %v1091
          %v1093 = vpop.xlane.xlu0 %1092
          %v1094 = vsel %vm995, %v1086, -inf
          %1095 = vmax.xlane.f32.xlu0 %v1094
          %v1096 = vpop.xlane.xlu0 %1095
          %v1097 = vsub.f32 %v1037, %v1093
          %v1098 = vsub.f32 %v1086, %v1096
          %v1099 = vmul.f32 %v1097, 1.442695
          %v1100 = vpow.pop %v1099
          %v1101 = vmul.f32 %v1098, 1.442695
          %v1102 = vpow.pop %v1101
          %v1103 = vsel %vm995, %v1100, 0.0
          %1104 = vadd.xlane.f32.xlu0 %v1103
          %v1105 = vpop.xlane.xlu0 %1104
          %v1106 = vsel %vm995, %v1102, 0.0
          %1107 = vadd.xlane.f32.xlu0 %v1106
          %v1108 = vpop.xlane.xlu0 %1107
          %v1109 = vrcp.pop %v1105
          %v1110 = vmul.f32 1.0, %v1109
          %v1111 = vrcp.pop %v1108
          %v1112 = vmul.f32 1.0, %v1111
          %v1113 = vmul.f32 %v1100, %v1110
          %v1114 = vmul.f32 %v1102, %v1112
          %v1115 = vpack.c.bf16 %v1113, %v1113
          %v1116 = vpack.c.bf16 %v1114, %v1114
          %1117 = vrot.lane.b32.xlu0 %v992, 64
          %v1118 = vpop.permute.xlu0 %1117
          %v1120 = vsel %vm995, %v1115, 0
          %vm1122 = vcmask 1043456
          %v1124 = vsel %vm1122, %v1118, 0
          %1126 = vmatprep.subr.bf16.mxu0 0
          %1127 = vmatpush1.bf16.msra.mxu0 %v1124
          %1128 = vmatprep.subr.bf16.mxu0 0
          %1129 = vmatpush1.bf16.msra.mxu0 0
          %1130 = vmatprep.subr.bf16.mxu0 0
          %1131 = vmatpush1.bf16.msra.mxu0 0
          %1132 = vmatprep.subr.bf16.mxu0 0
          %1133 = vmatpush1.bf16.msra.mxu0 0
          %1134 = vmatprep.subr.bf16.mxu0 0
          %1135 = vmatpush1.bf16.msra.mxu0 0
          %1136 = vmatprep.subr.bf16.mxu0 0
          %1137 = vmatpush1.bf16.msra.mxu0 0
          %1138 = vmatprep.subr.bf16.mxu0 0
          %1139 = vmatpush1.bf16.msra.mxu0 0
          %1140 = vmatprep.subr.bf16.mxu0 0
          %1141 = vmatpush1.bf16.msra.mxu0 0
          %1142 = vmatprep.subr.bf16.mxu0 0
          %1143 = vmatpush1.bf16.msra.mxu0 0
          %1144 = vmatprep.subr.bf16.mxu0 0
          %1145 = vmatpush1.bf16.msra.mxu0 0
          %1146 = vmatprep.subr.bf16.mxu0 0
          %1147 = vmatpush1.bf16.msra.mxu0 0
          %1148 = vmatprep.subr.bf16.mxu0 0
          %1149 = vmatpush1.bf16.msra.mxu0 0
          %1150 = vmatprep.subr.bf16.mxu0 0
          %1151 = vmatpush1.bf16.msra.mxu0 0
          %1152 = vmatprep.subr.bf16.mxu0 0
          %1153 = vmatpush1.bf16.msra.mxu0 0
          %1154 = vmatprep.subr.bf16.mxu0 0
          %1155 = vmatpush1.bf16.msra.mxu0 0
          %1156 = vmatprep.subr.bf16.mxu0 0
          %1157 = vmatpush1.bf16.msra.mxu0 0
          %1158 = vmatprep.mubr.bf16.mxu0 0
          %1159 = vmatmul.mubr.bf16.gmra.mrb[0].mxu0 %v1120
          %v1160 = vpop.f32.mrb[0].mxu0
          %v1161 = vadd.f32 0.0, %v1160
          %v1162 = vpop.f32.mrb[0].mxu0
          %v1163 = vpop.f32.mrb[0].mxu0
          %v1164 = vpop.f32.mrb[0].mxu0
          %1165 = vdwg.mxu0
          %1166 = vrot.lane.b32.xlu0 %v1042, 64
          %v1167 = vpop.permute.xlu0 %1166
          %v1169 = vsel %vm995, %v1116, 0
          %v1172 = vsel %vm1122, %v1167, 0
          %1174 = vmatprep.subr.bf16.mxu0 0
          %1175 = vmatpush1.bf16.msra.mxu0 %v1172
          %1176 = vmatprep.subr.bf16.mxu0 0
          %1177 = vmatpush1.bf16.msra.mxu0 0
          %1178 = vmatprep.subr.bf16.mxu0 0
          %1179 = vmatpush1.bf16.msra.mxu0 0
          %1180 = vmatprep.subr.bf16.mxu0 0
          %1181 = vmatpush1.bf16.msra.mxu0 0
          %1182 = vmatprep.subr.bf16.mxu0 0
          %1183 = vmatpush1.bf16.msra.mxu0 0
          %1184 = vmatprep.subr.bf16.mxu0 0
          %1185 = vmatpush1.bf16.msra.mxu0 0
          %1186 = vmatprep.subr.bf16.mxu0 0
          %1187 = vmatpush1.bf16.msra.mxu0 0
          %1188 = vmatprep.subr.bf16.mxu0 0
          %1189 = vmatpush1.bf16.msra.mxu0 0
          %1190 = vmatprep.subr.bf16.mxu0 0
          %1191 = vmatpush1.bf16.msra.mxu0 0
          %1192 = vmatprep.subr.bf16.mxu0 0
          %1193 = vmatpush1.bf16.msra.mxu0 0
          %1194 = vmatprep.subr.bf16.mxu0 0
          %1195 = vmatpush1.bf16.msra.mxu0 0
          %1196 = vmatprep.subr.bf16.mxu0 0
          %1197 = vmatpush1.bf16.msra.mxu0 0
          %1198 = vmatprep.subr.bf16.mxu0 0
          %1199 = vmatpush1.bf16.msra.mxu0 0
          %1200 = vmatprep.subr.bf16.mxu0 0
          %1201 = vmatpush1.bf16.msra.mxu0 0
          %1202 = vmatprep.subr.bf16.mxu0 0
          %1203 = vmatpush1.bf16.msra.mxu0 0
          %1204 = vmatprep.subr.bf16.mxu0 0
          %1205 = vmatpush1.bf16.msra.mxu0 0
          %1206 = vmatprep.mubr.bf16.mxu0 0
          %1207 = vmatmul.mubr.bf16.gmra.mrb[0].mxu0 %v1169
          %v1208 = vpop.f32.mrb[0].mxu0
          %v1209 = vadd.f32 0.0, %v1208
          %v1210 = vpop.f32.mrb[0].mxu0
          %v1211 = vpop.f32.mrb[0].mxu0
          %v1212 = vpop.f32.mrb[0].mxu0
          %1213 = vdwg.mxu0
          %v1214 = vpack.c.bf16 %v1161, %v1161
          %v1215 = vpack.c.bf16 %v1209, %v1209
          %vm1216 = vcmask 60416
          %1217 = vst.msk [vmem:[#allocation3] sm:$0xf] %vm1216, %v1214
          %1218 = vst.msk [vmem:[#allocation3 + $0x4] sm:$0xf] %vm1216, %v1215
          %1219 = vrot.lane.b32.xlu0 %v968, 120
          %v1220 = vpop.permute.xlu0 %1219
          %1221 = vrot.lane.b32.xlu0 %v992, 88
          %v1222 = vpop.permute.xlu0 %1221
          %v1224 = vsel %vm995, %v1220, 0
          %v1227 = vsel %vm995, %v1222, 0
          %1229 = vmatprep.subr.bf16.mxu0 0
          %1230 = vmatpush1.bf16.xpose.msra.mxu0 %v1227
          %1231 = vmatprep.subr.bf16.mxu0 0
          %1232 = vmatpush1.bf16.xpose.msra.mxu0 0
          %1233 = vmatprep.subr.bf16.mxu0 0
          %1234 = vmatpush1.bf16.xpose.msra.mxu0 0
          %1235 = vmatprep.subr.bf16.mxu0 0
          %1236 = vmatpush1.bf16.xpose.msra.mxu0 0
          %1237 = vmatprep.subr.bf16.mxu0 0
          %1238 = vmatpush1.bf16.xpose.msra.mxu0 0
          %1239 = vmatprep.subr.bf16.mxu0 0
          %1240 = vmatpush1.bf16.xpose.msra.mxu0 0
          %1241 = vmatprep.subr.bf16.mxu0 0
          %1242 = vmatpush1.bf16.xpose.msra.mxu0 0
          %1243 = vmatprep.subr.bf16.mxu0 0
          %1244 = vmatpush1.bf16.xpose.msra.mxu0 0
          %1245 = vmatprep.subr.bf16.mxu0 0
          %1246 = vmatpush1.bf16.xpose.msra.mxu0 0
          %1247 = vmatprep.subr.bf16.mxu0 0
          %1248 = vmatpush1.bf16.xpose.msra.mxu0 0
          %1249 = vmatprep.subr.bf16.mxu0 0
          %1250 = vmatpush1.bf16.xpose.msra.mxu0 0
          %1251 = vmatprep.subr.bf16.mxu0 0
          %1252 = vmatpush1.bf16.xpose.msra.mxu0 0
          %1253 = vmatprep.subr.bf16.mxu0 0
          %1254 = vmatpush1.bf16.xpose.msra.mxu0 0
          %1255 = vmatprep.subr.bf16.mxu0 0
          %1256 = vmatpush1.bf16.xpose.msra.mxu0 0
          %1257 = vmatprep.subr.bf16.mxu0 0
          %1258 = vmatpush1.bf16.xpose.msra.mxu0 0
          %1259 = vmatprep.subr.bf16.mxu0 0
          %1260 = vmatpush1.bf16.xpose.msra.mxu0 0
          %1261 = vmatprep.mubr.bf16.mxu0 0
          %1262 = vmatmul.mubr.bf16.gmra.mrb[0].mxu0 %v1224
          %v1263 = vpop.f32.mrb[0].mxu0
          %v1264 = vadd.f32 %v985, %v1263
          %v1265 = vpop.f32.mrb[0].mxu0
          %v1266 = vpop.f32.mrb[0].mxu0
          %v1267 = vpop.f32.mrb[0].mxu0
          %1268 = vdwg.mxu0
          %1269 = vrot.lane.b32.xlu0 %v969, 120
          %v1270 = vpop.permute.xlu0 %1269
          %1271 = vrot.lane.b32.xlu0 %v1042, 88
          %v1272 = vpop.permute.xlu0 %1271
          %v1274 = vsel %vm995, %v1270, 0
          %v1277 = vsel %vm995, %v1272, 0
          %1279 = vmatprep.subr.bf16.mxu0 0
          %1280 = vmatpush1.bf16.xpose.msra.mxu0 %v1277
          %1281 = vmatprep.subr.bf16.mxu0 0
          %1282 = vmatpush1.bf16.xpose.msra.mxu0 0
          %1283 = vmatprep.subr.bf16.mxu0 0
          %1284 = vmatpush1.bf16.xpose.msra.mxu0 0
          %1285 = vmatprep.subr.bf16.mxu0 0
          %1286 = vmatpush1.bf16.xpose.msra.mxu0 0
          %1287 = vmatprep.subr.bf16.mxu0 0
          %1288 = vmatpush1.bf16.xpose.msra.mxu0 0
          %1289 = vmatprep.subr.bf16.mxu0 0
          %1290 = vmatpush1.bf16.xpose.msra.mxu0 0
          %1291 = vmatprep.subr.bf16.mxu0 0
          %1292 = vmatpush1.bf16.xpose.msra.mxu0 0
          %1293 = vmatprep.subr.bf16.mxu0 0
          %1294 = vmatpush1.bf16.xpose.msra.mxu0 0
          %1295 = vmatprep.subr.bf16.mxu0 0
          %1296 = vmatpush1.bf16.xpose.msra.mxu0 0
          %1297 = vmatprep.subr.bf16.mxu0 0
          %1298 = vmatpush1.bf16.xpose.msra.mxu0 0
          %1299 = vmatprep.subr.bf16.mxu0 0
          %1300 = vmatpush1.bf16.xpose.msra.mxu0 0
          %1301 = vmatprep.subr.bf16.mxu0 0
          %1302 = vmatpush1.bf16.xpose.msra.mxu0 0
          %1303 = vmatprep.subr.bf16.mxu0 0
          %1304 = vmatpush1.bf16.xpose.msra.mxu0 0
          %1305 = vmatprep.subr.bf16.mxu0 0
          %1306 = vmatpush1.bf16.xpose.msra.mxu0 0
          %1307 = vmatprep.subr.bf16.mxu0 0
          %1308 = vmatpush1.bf16.xpose.msra.mxu0 0
          %1309 = vmatprep.subr.bf16.mxu0 0
          %1310 = vmatpush1.bf16.xpose.msra.mxu0 0
          %1311 = vmatprep.mubr.bf16.mxu0 0
          %1312 = vmatmul.mubr.bf16.gmra.mrb[0].mxu0 %v1274
          %v1313 = vpop.f32.mrb[0].mxu0
          %v1314 = vadd.f32 %v989, %v1313
          %v1315 = vpop.f32.mrb[0].mxu0
          %v1316 = vpop.f32.mrb[0].mxu0
          %v1317 = vpop.f32.mrb[0].mxu0
          %1318 = vdwg.mxu0
          %v1319 = vsel %vm995, %v1264, -inf
          %1320 = vmax.xlane.f32.xlu0 %v1319
          %v1321 = vpop.xlane.xlu0 %1320
          %v1322 = vsel %vm995, %v1314, -inf
          %1323 = vmax.xlane.f32.xlu0 %v1322
          %v1324 = vpop.xlane.xlu0 %1323
          %v1325 = vsub.f32 %v1264, %v1321
          %v1326 = vsub.f32 %v1314, %v1324
          %v1327 = vmul.f32 %v1325, 1.442695
          %v1328 = vpow.pop %v1327
          %v1329 = vmul.f32 %v1326, 1.442695
          %v1330 = vpow.pop %v1329
          %v1331 = vsel %vm995, %v1328, 0.0
          %1332 = vadd.xlane.f32.xlu0 %v1331
          %v1333 = vpop.xlane.xlu0 %1332
          %v1334 = vsel %vm995, %v1330, 0.0
          %1335 = vadd.xlane.f32.xlu0 %v1334
          %v1336 = vpop.xlane.xlu0 %1335
          %v1337 = vrcp.pop %v1333
          %v1338 = vmul.f32 1.0, %v1337
          %v1339 = vrcp.pop %v1336
          %v1340 = vmul.f32 1.0, %v1339
          %v1341 = vmul.f32 %v1328, %v1338
          %v1342 = vmul.f32 %v1330, %v1340
          %v1343 = vpack.c.bf16 %v1341, %v1341
          %v1344 = vpack.c.bf16 %v1342, %v1342
          %1345 = vrot.lane.b32.xlu0 %v992, 56
          %v1346 = vpop.permute.xlu0 %1345
          %v1348 = vsel %vm995, %v1343, 0
          %v1351 = vsel %vm1122, %v1346, 0
          %1353 = vmatprep.subr.bf16.mxu0 0
          %1354 = vmatpush1.bf16.msra.mxu0 %v1351
          %1355 = vmatprep.subr.bf16.mxu0 0
          %1356 = vmatpush1.bf16.msra.mxu0 0
          %1357 = vmatprep.subr.bf16.mxu0 0
          %1358 = vmatpush1.bf16.msra.mxu0 0
          %1359 = vmatprep.subr.bf16.mxu0 0
          %1360 = vmatpush1.bf16.msra.mxu0 0
          %1361 = vmatprep.subr.bf16.mxu0 0
          %1362 = vmatpush1.bf16.msra.mxu0 0
          %1363 = vmatprep.subr.bf16.mxu0 0
          %1364 = vmatpush1.bf16.msra.mxu0 0
          %1365 = vmatprep.subr.bf16.mxu0 0
          %1366 = vmatpush1.bf16.msra.mxu0 0
          %1367 = vmatprep.subr.bf16.mxu0 0
          %1368 = vmatpush1.bf16.msra.mxu0 0
          %1369 = vmatprep.subr.bf16.mxu0 0
          %1370 = vmatpush1.bf16.msra.mxu0 0
          %1371 = vmatprep.subr.bf16.mxu0 0
          %1372 = vmatpush1.bf16.msra.mxu0 0
          %1373 = vmatprep.subr.bf16.mxu0 0
          %1374 = vmatpush1.bf16.msra.mxu0 0
          %1375 = vmatprep.subr.bf16.mxu0 0
          %1376 = vmatpush1.bf16.msra.mxu0 0
          %1377 = vmatprep.subr.bf16.mxu0 0
          %1378 = vmatpush1.bf16.msra.mxu0 0
          %1379 = vmatprep.subr.bf16.mxu0 0
          %1380 = vmatpush1.bf16.msra.mxu0 0
          %1381 = vmatprep.subr.bf16.mxu0 0
          %1382 = vmatpush1.bf16.msra.mxu0 0
          %1383 = vmatprep.subr.bf16.mxu0 0
          %1384 = vmatpush1.bf16.msra.mxu0 0
          %1385 = vmatprep.mubr.bf16.mxu0 0
          %1386 = vmatmul.mubr.bf16.gmra.mrb[0].mxu0 %v1348
          %v1387 = vpop.f32.mrb[0].mxu0
          %v1388 = vadd.f32 0.0, %v1387
          %v1389 = vpop.f32.mrb[0].mxu0
          %v1390 = vpop.f32.mrb[0].mxu0
          %v1391 = vpop.f32.mrb[0].mxu0
          %1392 = vdwg.mxu0
          %1393 = vrot.lane.b32.xlu0 %v1042, 56
          %v1394 = vpop.permute.xlu0 %1393
          %v1396 = vsel %vm995, %v1344, 0
          %v1399 = vsel %vm1122, %v1394, 0
          %1401 = vmatprep.subr.bf16.mxu0 0
          %1402 = vmatpush1.bf16.msra.mxu0 %v1399
          %1403 = vmatprep.subr.bf16.mxu0 0
          %1404 = vmatpush1.bf16.msra.mxu0 0
          %1405 = vmatprep.subr.bf16.mxu0 0
          %1406 = vmatpush1.bf16.msra.mxu0 0
          %1407 = vmatprep.subr.bf16.mxu0 0
          %1408 = vmatpush1.bf16.msra.mxu0 0
          %1409 = vmatprep.subr.bf16.mxu0 0
          %1410 = vmatpush1.bf16.msra.mxu0 0
          %1411 = vmatprep.subr.bf16.mxu0 0
          %1412 = vmatpush1.bf16.msra.mxu0 0
          %1413 = vmatprep.subr.bf16.mxu0 0
          %1414 = vmatpush1.bf16.msra.mxu0 0
          %1415 = vmatprep.subr.bf16.mxu0 0
          %1416 = vmatpush1.bf16.msra.mxu0 0
          %1417 = vmatprep.subr.bf16.mxu0 0
          %1418 = vmatpush1.bf16.msra.mxu0 0
          %1419 = vmatprep.subr.bf16.mxu0 0
          %1420 = vmatpush1.bf16.msra.mxu0 0
          %1421 = vmatprep.subr.bf16.mxu0 0
          %1422 = vmatpush1.bf16.msra.mxu0 0
          %1423 = vmatprep.subr.bf16.mxu0 0
          %1424 = vmatpush1.bf16.msra.mxu0 0
          %1425 = vmatprep.subr.bf16.mxu0 0
          %1426 = vmatpush1.bf16.msra.mxu0 0
          %1427 = vmatprep.subr.bf16.mxu0 0
          %1428 = vmatpush1.bf16.msra.mxu0 0
          %1429 = vmatprep.subr.bf16.mxu0 0
          %1430 = vmatpush1.bf16.msra.mxu0 0
          %1431 = vmatprep.subr.bf16.mxu0 0
          %1432 = vmatpush1.bf16.msra.mxu0 0
          %1433 = vmatprep.mubr.bf16.mxu0 0
          %1434 = vmatmul.mubr.bf16.gmra.mrb[0].mxu0 %v1396
          %v1435 = vpop.f32.mrb[0].mxu0
          %v1436 = vadd.f32 0.0, %v1435
          %v1437 = vpop.f32.mrb[0].mxu0
          %v1438 = vpop.f32.mrb[0].mxu0
          %v1439 = vpop.f32.mrb[0].mxu0
          %1440 = vdwg.mxu0
          %v1441 = vpack.c.bf16 %v1388, %v1388
          %v1442 = vpack.c.bf16 %v1436, %v1436
          %v1445 = vunpack.c.l.b16 %v1441
          %v1446 = vunpack.c.l.b16 %v1442
          %v1447 = vpack.c.b16 %v1445, %v1445
          %v1448 = vpack.c.b16 %v1446, %v1446
          %1449 = vrot.lane.b32.xlu0 %v1447, 8
          %v1450 = vpop.permute.xlu0 %1449
          %1451 = vrot.lane.b32.xlu0 %v1448, 8
          %v1452 = vpop.permute.xlu0 %1451
          %vm1455 = vcmask 126016
          %1456 = vst.msk [vmem:[#allocation3] sm:$0xf] %vm1455, %v1450
          %1457 = vst.msk [vmem:[#allocation3 + $0x4] sm:$0xf] %vm1455, %v1452
          %1458 = vrot.lane.b32.xlu0 %v968, 112
          %v1459 = vpop.permute.xlu0 %1458
          %1460 = vrot.lane.b32.xlu0 %v992, 80
          %v1461 = vpop.permute.xlu0 %1460
          %v1463 = vsel %vm995, %v1459, 0
          %v1466 = vsel %vm995, %v1461, 0
          %1468 = vmatprep.subr.bf16.mxu0 0
          %1469 = vmatpush1.bf16.xpose.msra.mxu0 %v1466
          %1470 = vmatprep.subr.bf16.mxu0 0
          %1471 = vmatpush1.bf16.xpose.msra.mxu0 0
          %1472 = vmatprep.subr.bf16.mxu0 0
          %1473 = vmatpush1.bf16.xpose.msra.mxu0 0
          %1474 = vmatprep.subr.bf16.mxu0 0
          %1475 = vmatpush1.bf16.xpose.msra.mxu0 0
          %1476 = vmatprep.subr.bf16.mxu0 0
          %1477 = vmatpush1.bf16.xpose.msra.mxu0 0
          %1478 = vmatprep.subr.bf16.mxu0 0
          %1479 = vmatpush1.bf16.xpose.msra.mxu0 0
          %1480 = vmatprep.subr.bf16.mxu0 0
          %1481 = vmatpush1.bf16.xpose.msra.mxu0 0
          %1482 = vmatprep.subr.bf16.mxu0 0
          %1483 = vmatpush1.bf16.xpose.msra.mxu0 0
          %1484 = vmatprep.subr.bf16.mxu0 0
          %1485 = vmatpush1.bf16.xpose.msra.mxu0 0
          %1486 = vmatprep.subr.bf16.mxu0 0
          %1487 = vmatpush1.bf16.xpose.msra.mxu0 0
          %1488 = vmatprep.subr.bf16.mxu0 0
          %1489 = vmatpush1.bf16.xpose.msra.mxu0 0
          %1490 = vmatprep.subr.bf16.mxu0 0
          %1491 = vmatpush1.bf16.xpose.msra.mxu0 0
          %1492 = vmatprep.subr.bf16.mxu0 0
          %1493 = vmatpush1.bf16.xpose.msra.mxu0 0
          %1494 = vmatprep.subr.bf16.mxu0 0
          %1495 = vmatpush1.bf16.xpose.msra.mxu0 0
          %1496 = vmatprep.subr.bf16.mxu0 0
          %1497 = vmatpush1.bf16.xpose.msra.mxu0 0
          %1498 = vmatprep.subr.bf16.mxu0 0
          %1499 = vmatpush1.bf16.xpose.msra.mxu0 0
          %1500 = vmatprep.mubr.bf16.mxu0 0
          %1501 = vmatmul.mubr.bf16.gmra.mrb[0].mxu0 %v1463
          %v1502 = vpop.f32.mrb[0].mxu0
          %v1503 = vadd.f32 %v985, %v1502
          %v1504 = vpop.f32.mrb[0].mxu0
          %v1505 = vpop.f32.mrb[0].mxu0
          %v1506 = vpop.f32.mrb[0].mxu0
          %1507 = vdwg.mxu0
          %1508 = vrot.lane.b32.xlu0 %v969, 112
          %v1509 = vpop.permute.xlu0 %1508
          %1510 = vrot.lane.b32.xlu0 %v1042, 80
          %v1511 = vpop.permute.xlu0 %1510
          %v1513 = vsel %vm995, %v1509, 0
          %v1516 = vsel %vm995, %v1511, 0
          %1518 = vmatprep.subr.bf16.mxu0 0
          %1519 = vmatpush1.bf16.xpose.msra.mxu0 %v1516
          %1520 = vmatprep.subr.bf16.mxu0 0
          %1521 = vmatpush1.bf16.xpose.msra.mxu0 0
          %1522 = vmatprep.subr.bf16.mxu0 0
          %1523 = vmatpush1.bf16.xpose.msra.mxu0 0
          %1524 = vmatprep.subr.bf16.mxu0 0
          %1525 = vmatpush1.bf16.xpose.msra.mxu0 0
          %1526 = vmatprep.subr.bf16.mxu0 0
          %1527 = vmatpush1.bf16.xpose.msra.mxu0 0
          %1528 = vmatprep.subr.bf16.mxu0 0
          %1529 = vmatpush1.bf16.xpose.msra.mxu0 0
          %1530 = vmatprep.subr.bf16.mxu0 0
          %1531 = vmatpush1.bf16.xpose.msra.mxu0 0
          %1532 = vmatprep.subr.bf16.mxu0 0
          %1533 = vmatpush1.bf16.xpose.msra.mxu0 0
          %1534 = vmatprep.subr.bf16.mxu0 0
          %1535 = vmatpush1.bf16.xpose.msra.mxu0 0
          %1536 = vmatprep.subr.bf16.mxu0 0
          %1537 = vmatpush1.bf16.xpose.msra.mxu0 0
          %1538 = vmatprep.subr.bf16.mxu0 0
          %1539 = vmatpush1.bf16.xpose.msra.mxu0 0
          %1540 = vmatprep.subr.bf16.mxu0 0
          %1541 = vmatpush1.bf16.xpose.msra.mxu0 0
          %1542 = vmatprep.subr.bf16.mxu0 0
          %1543 = vmatpush1.bf16.xpose.msra.mxu0 0
          %1544 = vmatprep.subr.bf16.mxu0 0
          %1545 = vmatpush1.bf16.xpose.msra.mxu0 0
          %1546 = vmatprep.subr.bf16.mxu0 0
          %1547 = vmatpush1.bf16.xpose.msra.mxu0 0
          %1548 = vmatprep.subr.bf16.mxu0 0
          %1549 = vmatpush1.bf16.xpose.msra.mxu0 0
          %1550 = vmatprep.mubr.bf16.mxu0 0
          %1551 = vmatmul.mubr.bf16.gmra.mrb[0].mxu0 %v1513
          %v1552 = vpop.f32.mrb[0].mxu0
          %v1553 = vadd.f32 %v989, %v1552
          %v1554 = vpop.f32.mrb[0].mxu0
          %v1555 = vpop.f32.mrb[0].mxu0
          %v1556 = vpop.f32.mrb[0].mxu0
          %1557 = vdwg.mxu0
          %v1558 = vsel %vm995, %v1503, -inf
          %1559 = vmax.xlane.f32.xlu0 %v1558
          %v1560 = vpop.xlane.xlu0 %1559
          %v1561 = vsel %vm995, %v1553, -inf
          %1562 = vmax.xlane.f32.xlu0 %v1561
          %v1563 = vpop.xlane.xlu0 %1562
          %v1564 = vsub.f32 %v1503, %v1560
          %v1565 = vsub.f32 %v1553, %v1563
          %v1566 = vmul.f32 %v1564, 1.442695
          %v1567 = vpow.pop %v1566
          %v1568 = vmul.f32 %v1565, 1.442695
          %v1569 = vpow.pop %v1568
          %v1570 = vsel %vm995, %v1567, 0.0
          %1571 = vadd.xlane.f32.xlu0 %v1570
          %v1572 = vpop.xlane.xlu0 %1571
          %v1573 = vsel %vm995, %v1569, 0.0
          %1574 = vadd.xlane.f32.xlu0 %v1573
          %v1575 = vpop.xlane.xlu0 %1574
          %v1576 = vrcp.pop %v1572
          %v1577 = vmul.f32 1.0, %v1576
          %v1578 = vrcp.pop %v1575
          %v1579 = vmul.f32 1.0, %v1578
          %v1580 = vmul.f32 %v1567, %v1577
          %v1581 = vmul.f32 %v1569, %v1579
          %v1582 = vpack.c.bf16 %v1580, %v1580
          %v1583 = vpack.c.bf16 %v1581, %v1581
          %1584 = vrot.lane.b32.xlu0 %v992, 48
          %v1585 = vpop.permute.xlu0 %1584
          %v1587 = vsel %vm995, %v1582, 0
          %v1590 = vsel %vm1122, %v1585, 0
          %1592 = vmatprep.subr.bf16.mxu0 0
          %1593 = vmatpush1.bf16.msra.mxu0 %v1590
          %1594 = vmatprep.subr.bf16.mxu0 0
          %1595 = vmatpush1.bf16.msra.mxu0 0
          %1596 = vmatprep.subr.bf16.mxu0 0
          %1597 = vmatpush1.bf16.msra.mxu0 0
          %1598 = vmatprep.subr.bf16.mxu0 0
          %1599 = vmatpush1.bf16.msra.mxu0 0
          %1600 = vmatprep.subr.bf16.mxu0 0
          %1601 = vmatpush1.bf16.msra.mxu0 0
          %1602 = vmatprep.subr.bf16.mxu0 0
          %1603 = vmatpush1.bf16.msra.mxu0 0
          %1604 = vmatprep.subr.bf16.mxu0 0
          %1605 = vmatpush1.bf16.msra.mxu0 0
          %1606 = vmatprep.subr.bf16.mxu0 0
          %1607 = vmatpush1.bf16.msra.mxu0 0
          %1608 = vmatprep.subr.bf16.mxu0 0
          %1609 = vmatpush1.bf16.msra.mxu0 0
          %1610 = vmatprep.subr.bf16.mxu0 0
          %1611 = vmatpush1.bf16.msra.mxu0 0
          %1612 = vmatprep.subr.bf16.mxu0 0
          %1613 = vmatpush1.bf16.msra.mxu0 0
          %1614 = vmatprep.subr.bf16.mxu0 0
          %1615 = vmatpush1.bf16.msra.mxu0 0
          %1616 = vmatprep.subr.bf16.mxu0 0
          %1617 = vmatpush1.bf16.msra.mxu0 0
          %1618 = vmatprep.subr.bf16.mxu0 0
          %1619 = vmatpush1.bf16.msra.mxu0 0
          %1620 = vmatprep.subr.bf16.mxu0 0
          %1621 = vmatpush1.bf16.msra.mxu0 0
          %1622 = vmatprep.subr.bf16.mxu0 0
          %1623 = vmatpush1.bf16.msra.mxu0 0
          %1624 = vmatprep.mubr.bf16.mxu0 0
          %1625 = vmatmul.mubr.bf16.gmra.mrb[0].mxu0 %v1587
          %v1626 = vpop.f32.mrb[0].mxu0
          %v1627 = vadd.f32 0.0, %v1626
          %v1628 = vpop.f32.mrb[0].mxu0
          %v1629 = vpop.f32.mrb[0].mxu0
          %v1630 = vpop.f32.mrb[0].mxu0
          %1631 = vdwg.mxu0
          %1632 = vrot.lane.b32.xlu0 %v1042, 48
          %v1633 = vpop.permute.xlu0 %1632
          %v1635 = vsel %vm995, %v1583, 0
          %v1638 = vsel %vm1122, %v1633, 0
          %1640 = vmatprep.subr.bf16.mxu0 0
          %1641 = vmatpush1.bf16.msra.mxu0 %v1638
          %1642 = vmatprep.subr.bf16.mxu0 0
          %1643 = vmatpush1.bf16.msra.mxu0 0
          %1644 = vmatprep.subr.bf16.mxu0 0
          %1645 = vmatpush1.bf16.msra.mxu0 0
          %1646 = vmatprep.subr.bf16.mxu0 0
          %1647 = vmatpush1.bf16.msra.mxu0 0
          %1648 = vmatprep.subr.bf16.mxu0 0
          %1649 = vmatpush1.bf16.msra.mxu0 0
          %1650 = vmatprep.subr.bf16.mxu0 0
          %1651 = vmatpush1.bf16.msra.mxu0 0
          %1652 = vmatprep.subr.bf16.mxu0 0
          %1653 = vmatpush1.bf16.msra.mxu0 0
          %1654 = vmatprep.subr.bf16.mxu0 0
          %1655 = vmatpush1.bf16.msra.mxu0 0
          %1656 = vmatprep.subr.bf16.mxu0 0
          %1657 = vmatpush1.bf16.msra.mxu0 0
          %1658 = vmatprep.subr.bf16.mxu0 0
          %1659 = vmatpush1.bf16.msra.mxu0 0
          %1660 = vmatprep.subr.bf16.mxu0 0
          %1661 = vmatpush1.bf16.msra.mxu0 0
          %1662 = vmatprep.subr.bf16.mxu0 0
          %1663 = vmatpush1.bf16.msra.mxu0 0
          %1664 = vmatprep.subr.bf16.mxu0 0
          %1665 = vmatpush1.bf16.msra.mxu0 0
          %1666 = vmatprep.subr.bf16.mxu0 0
          %1667 = vmatpush1.bf16.msra.mxu0 0
          %1668 = vmatprep.subr.bf16.mxu0 0
          %1669 = vmatpush1.bf16.msra.mxu0 0
          %1670 = vmatprep.subr.bf16.mxu0 0
          %1671 = vmatpush1.bf16.msra.mxu0 0
          %1672 = vmatprep.mubr.bf16.mxu0 0
          %1673 = vmatmul.mubr.bf16.gmra.mrb[0].mxu0 %v1635
          %v1674 = vpop.f32.mrb[0].mxu0
          %v1675 = vadd.f32 0.0, %v1674
          %v1676 = vpop.f32.mrb[0].mxu0
          %v1677 = vpop.f32.mrb[0].mxu0
          %v1678 = vpop.f32.mrb[0].mxu0
          %1679 = vdwg.mxu0
          %v1680 = vpack.c.bf16 %v1627, %v1627
          %v1681 = vpack.c.bf16 %v1675, %v1675
          %v1684 = vunpack.c.l.b16 %v1680
          %v1685 = vunpack.c.l.b16 %v1681
          %v1686 = vpack.c.b16 %v1684, %v1684
          %v1687 = vpack.c.b16 %v1685, %v1685
          %1688 = vrot.lane.b32.xlu0 %v1686, 16
          %v1689 = vpop.permute.xlu0 %1688
          %1690 = vrot.lane.b32.xlu0 %v1687, 16
          %v1691 = vpop.permute.xlu0 %1690
          %vm1694 = vcmask 191616
          %1695 = vst.msk [vmem:[#allocation3] sm:$0xf] %vm1694, %v1689
          %1696 = vst.msk [vmem:[#allocation3 + $0x4] sm:$0xf] %vm1694, %v1691
          %1697 = vrot.lane.b32.xlu0 %v968, 104
          %v1698 = vpop.permute.xlu0 %1697
          %1699 = vrot.lane.b32.xlu0 %v992, 72
          %v1700 = vpop.permute.xlu0 %1699
          %v1702 = vsel %vm995, %v1698, 0
          %v1705 = vsel %vm995, %v1700, 0
          %1707 = vmatprep.subr.bf16.mxu0 0
          %1708 = vmatpush1.bf16.xpose.msra.mxu0 %v1705
          %1709 = vmatprep.subr.bf16.mxu0 0
          %1710 = vmatpush1.bf16.xpose.msra.mxu0 0
          %1711 = vmatprep.subr.bf16.mxu0 0
          %1712 = vmatpush1.bf16.xpose.msra.mxu0 0
          %1713 = vmatprep.subr.bf16.mxu0 0
          %1714 = vmatpush1.bf16.xpose.msra.mxu0 0
          %1715 = vmatprep.subr.bf16.mxu0 0
          %1716 = vmatpush1.bf16.xpose.msra.mxu0 0
          %1717 = vmatprep.subr.bf16.mxu0 0
          %1718 = vmatpush1.bf16.xpose.msra.mxu0 0
          %1719 = vmatprep.subr.bf16.mxu0 0
          %1720 = vmatpush1.bf16.xpose.msra.mxu0 0
          %1721 = vmatprep.subr.bf16.mxu0 0
          %1722 = vmatpush1.bf16.xpose.msra.mxu0 0
          %1723 = vmatprep.subr.bf16.mxu0 0
          %1724 = vmatpush1.bf16.xpose.msra.mxu0 0
          %1725 = vmatprep.subr.bf16.mxu0 0
          %1726 = vmatpush1.bf16.xpose.msra.mxu0 0
          %1727 = vmatprep.subr.bf16.mxu0 0
          %1728 = vmatpush1.bf16.xpose.msra.mxu0 0
          %1729 = vmatprep.subr.bf16.mxu0 0
          %1730 = vmatpush1.bf16.xpose.msra.mxu0 0
          %1731 = vmatprep.subr.bf16.mxu0 0
          %1732 = vmatpush1.bf16.xpose.msra.mxu0 0
          %1733 = vmatprep.subr.bf16.mxu0 0
          %1734 = vmatpush1.bf16.xpose.msra.mxu0 0
          %1735 = vmatprep.subr.bf16.mxu0 0
          %1736 = vmatpush1.bf16.xpose.msra.mxu0 0
          %1737 = vmatprep.subr.bf16.mxu0 0
          %1738 = vmatpush1.bf16.xpose.msra.mxu0 0
          %1739 = vmatprep.mubr.bf16.mxu0 0
          %1740 = vmatmul.mubr.bf16.gmra.mrb[0].mxu0 %v1702
          %v1741 = vpop.f32.mrb[0].mxu0
          %v1742 = vadd.f32 %v985, %v1741
          %v1743 = vpop.f32.mrb[0].mxu0
          %v1744 = vpop.f32.mrb[0].mxu0
          %v1745 = vpop.f32.mrb[0].mxu0
          %1746 = vdwg.mxu0
          %1747 = vrot.lane.b32.xlu0 %v969, 104
          %v1748 = vpop.permute.xlu0 %1747
          %1749 = vrot.lane.b32.xlu0 %v1042, 72
          %v1750 = vpop.permute.xlu0 %1749
          %v1752 = vsel %vm995, %v1748, 0
          %v1755 = vsel %vm995, %v1750, 0
          %1757 = vmatprep.subr.bf16.mxu0 0
          %1758 = vmatpush1.bf16.xpose.msra.mxu0 %v1755
          %1759 = vmatprep.subr.bf16.mxu0 0
          %1760 = vmatpush1.bf16.xpose.msra.mxu0 0
          %1761 = vmatprep.subr.bf16.mxu0 0
          %1762 = vmatpush1.bf16.xpose.msra.mxu0 0
          %1763 = vmatprep.subr.bf16.mxu0 0
          %1764 = vmatpush1.bf16.xpose.msra.mxu0 0
          %1765 = vmatprep.subr.bf16.mxu0 0
          %1766 = vmatpush1.bf16.xpose.msra.mxu0 0
          %1767 = vmatprep.subr.bf16.mxu0 0
          %1768 = vmatpush1.bf16.xpose.msra.mxu0 0
          %1769 = vmatprep.subr.bf16.mxu0 0
          %1770 = vmatpush1.bf16.xpose.msra.mxu0 0
          %1771 = vmatprep.subr.bf16.mxu0 0
          %1772 = vmatpush1.bf16.xpose.msra.mxu0 0
          %1773 = vmatprep.subr.bf16.mxu0 0
          %1774 = vmatpush1.bf16.xpose.msra.mxu0 0
          %1775 = vmatprep.subr.bf16.mxu0 0
          %1776 = vmatpush1.bf16.xpose.msra.mxu0 0
          %1777 = vmatprep.subr.bf16.mxu0 0
          %1778 = vmatpush1.bf16.xpose.msra.mxu0 0
          %1779 = vmatprep.subr.bf16.mxu0 0
          %1780 = vmatpush1.bf16.xpose.msra.mxu0 0
          %1781 = vmatprep.subr.bf16.mxu0 0
          %1782 = vmatpush1.bf16.xpose.msra.mxu0 0
          %1783 = vmatprep.subr.bf16.mxu0 0
          %1784 = vmatpush1.bf16.xpose.msra.mxu0 0
          %1785 = vmatprep.subr.bf16.mxu0 0
          %1786 = vmatpush1.bf16.xpose.msra.mxu0 0
          %1787 = vmatprep.subr.bf16.mxu0 0
          %1788 = vmatpush1.bf16.xpose.msra.mxu0 0
          %1789 = vmatprep.mubr.bf16.mxu0 0
          %1790 = vmatmul.mubr.bf16.gmra.mrb[0].mxu0 %v1752
          %v1791 = vpop.f32.mrb[0].mxu0
          %v1792 = vadd.f32 %v989, %v1791
          %v1793 = vpop.f32.mrb[0].mxu0
          %v1794 = vpop.f32.mrb[0].mxu0
          %v1795 = vpop.f32.mrb[0].mxu0
          %1796 = vdwg.mxu0
          %v1797 = vsel %vm995, %v1742, -inf
          %1798 = vmax.xlane.f32.xlu0 %v1797
          %v1799 = vpop.xlane.xlu0 %1798
          %v1800 = vsel %vm995, %v1792, -inf
          %1801 = vmax.xlane.f32.xlu0 %v1800
          %v1802 = vpop.xlane.xlu0 %1801
          %v1803 = vsub.f32 %v1742, %v1799
          %v1804 = vsub.f32 %v1792, %v1802
          %v1805 = vmul.f32 %v1803, 1.442695
          %v1806 = vpow.pop %v1805
          %v1807 = vmul.f32 %v1804, 1.442695
          %v1808 = vpow.pop %v1807
          %v1809 = vsel %vm995, %v1806, 0.0
          %1810 = vadd.xlane.f32.xlu0 %v1809
          %v1811 = vpop.xlane.xlu0 %1810
          %v1812 = vsel %vm995, %v1808, 0.0
          %1813 = vadd.xlane.f32.xlu0 %v1812
          %v1814 = vpop.xlane.xlu0 %1813
          %v1815 = vrcp.pop %v1811
          %v1816 = vmul.f32 1.0, %v1815
          %v1817 = vrcp.pop %v1814
          %v1818 = vmul.f32 1.0, %v1817
          %v1819 = vmul.f32 %v1806, %v1816
          %v1820 = vmul.f32 %v1808, %v1818
          %v1821 = vpack.c.bf16 %v1819, %v1819
          %v1822 = vpack.c.bf16 %v1820, %v1820
          %1823 = vrot.lane.b32.xlu0 %v992, 40
          %v1824 = vpop.permute.xlu0 %1823
          %v1826 = vsel %vm995, %v1821, 0
          %v1829 = vsel %vm1122, %v1824, 0
          %1831 = vmatprep.subr.bf16.mxu0 0
          %1832 = vmatpush1.bf16.msra.mxu0 %v1829
          %1833 = vmatprep.subr.bf16.mxu0 0
          %1834 = vmatpush1.bf16.msra.mxu0 0
          %1835 = vmatprep.subr.bf16.mxu0 0
          %1836 = vmatpush1.bf16.msra.mxu0 0
          %1837 = vmatprep.subr.bf16.mxu0 0
          %1838 = vmatpush1.bf16.msra.mxu0 0
          %1839 = vmatprep.subr.bf16.mxu0 0
          %1840 = vmatpush1.bf16.msra.mxu0 0
          %1841 = vmatprep.subr.bf16.mxu0 0
          %1842 = vmatpush1.bf16.msra.mxu0 0
          %1843 = vmatprep.subr.bf16.mxu0 0
          %1844 = vmatpush1.bf16.msra.mxu0 0
          %1845 = vmatprep.subr.bf16.mxu0 0
          %1846 = vmatpush1.bf16.msra.mxu0 0
          %1847 = vmatprep.subr.bf16.mxu0 0
          %1848 = vmatpush1.bf16.msra.mxu0 0
          %1849 = vmatprep.subr.bf16.mxu0 0
          %1850 = vmatpush1.bf16.msra.mxu0 0
          %1851 = vmatprep.subr.bf16.mxu0 0
          %1852 = vmatpush1.bf16.msra.mxu0 0
          %1853 = vmatprep.subr.bf16.mxu0 0
          %1854 = vmatpush1.bf16.msra.mxu0 0
          %1855 = vmatprep.subr.bf16.mxu0 0
          %1856 = vmatpush1.bf16.msra.mxu0 0
          %1857 = vmatprep.subr.bf16.mxu0 0
          %1858 = vmatpush1.bf16.msra.mxu0 0
          %1859 = vmatprep.subr.bf16.mxu0 0
          %1860 = vmatpush1.bf16.msra.mxu0 0
          %1861 = vmatprep.subr.bf16.mxu0 0
          %1862 = vmatpush1.bf16.msra.mxu0 0
          %1863 = vmatprep.mubr.bf16.mxu0 0
          %1864 = vmatmul.mubr.bf16.gmra.mrb[0].mxu0 %v1826
          %v1865 = vpop.f32.mrb[0].mxu0
          %v1866 = vadd.f32 0.0, %v1865
          %v1867 = vpop.f32.mrb[0].mxu0
          %v1868 = vpop.f32.mrb[0].mxu0
          %v1869 = vpop.f32.mrb[0].mxu0
          %1870 = vdwg.mxu0
          %1871 = vrot.lane.b32.xlu0 %v1042, 40
          %v1872 = vpop.permute.xlu0 %1871
          %v1874 = vsel %vm995, %v1822, 0
          %v1877 = vsel %vm1122, %v1872, 0
          %1879 = vmatprep.subr.bf16.mxu0 0
          %1880 = vmatpush1.bf16.msra.mxu0 %v1877
          %1881 = vmatprep.subr.bf16.mxu0 0
          %1882 = vmatpush1.bf16.msra.mxu0 0
          %1883 = vmatprep.subr.bf16.mxu0 0
          %1884 = vmatpush1.bf16.msra.mxu0 0
          %1885 = vmatprep.subr.bf16.mxu0 0
          %1886 = vmatpush1.bf16.msra.mxu0 0
          %1887 = vmatprep.subr.bf16.mxu0 0
          %1888 = vmatpush1.bf16.msra.mxu0 0
          %1889 = vmatprep.subr.bf16.mxu0 0
          %1890 = vmatpush1.bf16.msra.mxu0 0
          %1891 = vmatprep.subr.bf16.mxu0 0
          %1892 = vmatpush1.bf16.msra.mxu0 0
          %1893 = vmatprep.subr.bf16.mxu0 0
          %1894 = vmatpush1.bf16.msra.mxu0 0
          %1895 = vmatprep.subr.bf16.mxu0 0
          %1896 = vmatpush1.bf16.msra.mxu0 0
          %1897 = vmatprep.subr.bf16.mxu0 0
          %1898 = vmatpush1.bf16.msra.mxu0 0
          %1899 = vmatprep.subr.bf16.mxu0 0
          %1900 = vmatpush1.bf16.msra.mxu0 0
          %1901 = vmatprep.subr.bf16.mxu0 0
          %1902 = vmatpush1.bf16.msra.mxu0 0
          %1903 = vmatprep.subr.bf16.mxu0 0
          %1904 = vmatpush1.bf16.msra.mxu0 0
          %1905 = vmatprep.subr.bf16.mxu0 0
          %1906 = vmatpush1.bf16.msra.mxu0 0
          %1907 = vmatprep.subr.bf16.mxu0 0
          %1908 = vmatpush1.bf16.msra.mxu0 0
          %1909 = vmatprep.subr.bf16.mxu0 0
          %1910 = vmatpush1.bf16.msra.mxu0 0
          %1911 = vmatprep.mubr.bf16.mxu0 0
          %1912 = vmatmul.mubr.bf16.gmra.mrb[0].mxu0 %v1874
          %v1913 = vpop.f32.mrb[0].mxu0
          %v1914 = vadd.f32 0.0, %v1913
          %v1915 = vpop.f32.mrb[0].mxu0
          %v1916 = vpop.f32.mrb[0].mxu0
          %v1917 = vpop.f32.mrb[0].mxu0
          %1918 = vdwg.mxu0
          %v1919 = vpack.c.bf16 %v1866, %v1866
          %v1920 = vpack.c.bf16 %v1914, %v1914
          %v1923 = vunpack.c.l.b16 %v1919
          %v1924 = vunpack.c.l.b16 %v1920
          %v1925 = vpack.c.b16 %v1923, %v1923
          %v1926 = vpack.c.b16 %v1924, %v1924
          %1927 = vrot.lane.b32.xlu0 %v1925, 24
          %v1928 = vpop.permute.xlu0 %1927
          %1929 = vrot.lane.b32.xlu0 %v1926, 24
          %v1930 = vpop.permute.xlu0 %1929
          %vm1933 = vcmask 257216
          %1934 = vst.msk [vmem:[#allocation3] sm:$0xf] %vm1933, %v1928
          %1935 = vst.msk [vmem:[#allocation3 + $0x4] sm:$0xf] %vm1933, %v1930
          %v1936 = vld [vmem:[#allocation3] sm:$0xf]
          %v1937 = vld [vmem:[#allocation3 + $0x4] sm:$0xf]
          %v1938 = vld [vmem:[%s786] sm:$0xf]
          %v1939 = vld [vmem:[%s786 + $0x4] sm:$0xf]
          %v1940 = vld [vmem:[%s786 + $0x8] sm:$0xf]
          %v1941 = vld [vmem:[%s786 + $0xc] sm:$0xf]
          %v1942 = vld [vmem:[%s789] sm:$0x1]
          %v1944 = vlaneseq
          %v1945 = vshrl.u32 %v1944, 7
          %v1946 = vsub.s32 0, %v1945
          %v1947 = vrot.slane %v1942, %v1946
          %v1951 = vunpack.c.l.b16 %v1936
          %v1952 = vunpack.c.l.b16 %v1937
          %v1953 = vpack.c.b16 %v1952, %v1951
          %v1958 = vunpack.c.l.b16 %v1938
          %v1959 = vunpack.c.l.b16 %v1939
          %v1960 = vunpack.c.l.b16 %v1940
          %v1961 = vunpack.c.l.b16 %v1941
          %v1962 = vpack.c.b16 %v1959, %v1958
          %v1963 = vpack.c.b16 %v1961, %v1960
          %v1967 = vsel %vm834, %v1953, 0
          %1969 = vmatprep.subr.bf16.mxu0 0
          %1970 = vmatpush1.bf16.msra.mxu0 %v1962
          %1971 = vmatprep.subr.bf16.mxu0 0
          %1972 = vmatpush1.bf16.msra.mxu0 %v1963
          %1973 = vmatprep.subr.bf16.mxu0 0
          %1974 = vmatpush1.bf16.msra.mxu0 0
          %1975 = vmatprep.subr.bf16.mxu0 0
          %1976 = vmatpush1.bf16.msra.mxu0 0
          %1977 = vmatprep.subr.bf16.mxu0 0
          %1978 = vmatpush1.bf16.msra.mxu0 0
          %1979 = vmatprep.subr.bf16.mxu0 0
          %1980 = vmatpush1.bf16.msra.mxu0 0
          %1981 = vmatprep.subr.bf16.mxu0 0
          %1982 = vmatpush1.bf16.msra.mxu0 0
          %1983 = vmatprep.subr.bf16.mxu0 0
          %1984 = vmatpush1.bf16.msra.mxu0 0
          %1985 = vmatprep.subr.bf16.mxu0 0
          %1986 = vmatpush1.bf16.msra.mxu0 0
          %1987 = vmatprep.subr.bf16.mxu0 0
          %1988 = vmatpush1.bf16.msra.mxu0 0
          %1989 = vmatprep.subr.bf16.mxu0 0
          %1990 = vmatpush1.bf16.msra.mxu0 0
          %1991 = vmatprep.subr.bf16.mxu0 0
          %1992 = vmatpush1.bf16.msra.mxu0 0
          %1993 = vmatprep.subr.bf16.mxu0 0
          %1994 = vmatpush1.bf16.msra.mxu0 0
          %1995 = vmatprep.subr.bf16.mxu0 0
          %1996 = vmatpush1.bf16.msra.mxu0 0
          %1997 = vmatprep.subr.bf16.mxu0 0
          %1998 = vmatpush1.bf16.msra.mxu0 0
          %1999 = vmatprep.subr.bf16.mxu0 0
          %2000 = vmatpush1.bf16.msra.mxu0 0
          %2001 = vmatprep.mubr.bf16.mxu0 0
          %2002 = vmatmul.mubr.bf16.gmra.mrb[0].mxu0 %v1967
          %v2003 = vpop.f32.mrb[0].mxu0
          %v2004 = vadd.f32 %v1947, %v2003
          %v2005 = vpop.f32.mrb[0].mxu0
          %v2006 = vpop.f32.mrb[0].mxu0
          %v2007 = vadd.f32 %v1947, %v2006
          %v2008 = vpop.f32.mrb[0].mxu0
          %2009 = vdwg.mxu0
          %v2010 = vadd.f32 %v830, %v2004
          %v2011 = vadd.f32 %v831, %v2007
          %v2012 = vld [vmem:[%s792] sm:$0x1]
          %v2013 = vld [vmem:[%s658] sm:$0x1]
          %v2014 = vsel %vm834, %v2010, 0.0
          %2015 = vadd.xlane.f32.xlu0 %v2014
          %v2016 = vpop.xlane.xlu0 %2015
          %v2017 = vsel %vm834, %v2011, 0.0
          %2018 = vadd.xlane.f32.xlu0 %v2017
          %v2019 = vpop.xlane.xlu0 %2018
          %v2020 = vmul.f32 %v2016, %v841
          %v2021 = vmul.f32 %v2019, %v841
          %v2022 = vsub.f32 %v2010, %v2020
          %v2023 = vsub.f32 %v2011, %v2021
          %v2024 = vmul.f32 %v2022, %v2022
          %v2025 = vmul.f32 %v2023, %v2023
          %v2026 = vsel %vm834, %v2024, 0.0
          %2027 = vadd.xlane.f32.xlu0 %v2026
          %v2028 = vpop.xlane.xlu0 %2027
          %v2029 = vsel %vm834, %v2025, 0.0
          %2030 = vadd.xlane.f32.xlu0 %v2029
          %v2031 = vpop.xlane.xlu0 %2030
          %v2032 = vmul.f32 %v2028, 0.032258064
          %v2033 = vmul.f32 %v2031, 0.032258064
          %v2034 = vrsqrt.pop %v2032
          %v2035 = vmul.f32 %v2032, %v2034
          %vm2036 = vcmp.eq.f32.partialorder %v2032, inf
          %v2037 = vsel %vm2036, %v2032, %v2035
          %vm2038 = vcmp.eq.f32.partialorder %v2032, 0.0
          %v2039 = vand.u32 %v2032, 2147483648
          %v2040 = vsel %vm2038, %v2039, %v2037
          %v2041 = vrsqrt.pop %v2033
          %v2042 = vmul.f32 %v2033, %v2041
          %vm2043 = vcmp.eq.f32.partialorder %v2033, inf
          %v2044 = vsel %vm2043, %v2033, %v2042
          %vm2045 = vcmp.eq.f32.partialorder %v2033, 0.0
          %v2046 = vand.u32 %v2033, 2147483648
          %v2047 = vsel %vm2045, %v2046, %v2044
          %v2049 = vlaneseq
          %v2050 = vshrl.u32 %v2049, 7
          %v2051 = vsub.s32 0, %v2050
          %v2052 = vrot.slane %v2012, %v2051
          %v2054 = vmul.f32 %v2052, %v2022
          %v2055 = vmul.f32 %v2052, %v2023
          %v2056 = vadd.f32 %v2040, 1e-06
          %v2057 = vadd.f32 %v2047, 1e-06
          %v2058 = vrcp.pop %v2056
          %v2059 = vmul.f32 1.0, %v2058
          %v2060 = vrcp.pop %v2057
          %v2061 = vmul.f32 1.0, %v2060
          %v2062 = vmul.f32 %v2054, %v2059
          %v2063 = vmul.f32 %v2055, %v2061
          %v2065 = vlaneseq
          %v2066 = vshrl.u32 %v2065, 7
          %v2067 = vsub.s32 0, %v2066
          %v2068 = vrot.slane %v2013, %v2067
          %v2070 = vadd.f32 %v2062, %v2068
          %v2071 = vadd.f32 %v2063, %v2068
          %v2072 = vpack.c.bf16 %v2071, %v2070
          %2073 = vst.msk [vmem:[#allocation4] sm:$0xff] %vm834, %v2072
          %2074 = vst.msk [vmem:[#allocation2] sm:$0xff] %vm834, %v2010
          %2075 = vst.msk [vmem:[#allocation2 + $0x8] sm:$0xff] %vm834, %v2011
        $region104: #{tpu_custom_call.1} parent=83 // pred_fallthru
          _
        %v2076 = vld [vmem:[#allocation4] sm:$0xff]
        %v2077 = vld [vmem:[%s800] sm:$0xf]
        %v2078 = vld [vmem:[%s800 + $0x4] sm:$0xf]
        %v2079 = vld [vmem:[%s800 + $0x8] sm:$0xf]
        %v2080 = vld [vmem:[%s800 + $0xc] sm:$0xf]
        %v2081 = vld [vmem:[%s666] sm:$0x1]
        %v2083 = vlaneseq
        %v2084 = vshrl.u32 %v2083, 7
        %v2085 = vsub.s32 0, %v2084
        %v2086 = vrot.slane %v2081, %v2085
        %v2092 = vunpack.c.l.b16 %v2077
        %v2093 = vunpack.c.l.b16 %v2078
        %v2094 = vunpack.c.l.b16 %v2079
        %v2095 = vunpack.c.l.b16 %v2080
        %v2096 = vpack.c.b16 %v2093, %v2092
        %v2097 = vpack.c.b16 %v2095, %v2094
        %vm2100 = vcmask 261120
        %v2102 = vsel %vm2100, %v2076, 0
        %2104 = vmatprep.subr.bf16.mxu0 0
        %2105 = vmatpush1.bf16.msra.mxu0 %v2096
        %2106 = vmatprep.subr.bf16.mxu0 0
        %2107 = vmatpush1.bf16.msra.mxu0 %v2097
        %2108 = vmatprep.subr.bf16.mxu0 0
        %2109 = vmatpush1.bf16.msra.mxu0 0
        %2110 = vmatprep.subr.bf16.mxu0 0
        %2111 = vmatpush1.bf16.msra.mxu0 0
        %2112 = vmatprep.subr.bf16.mxu0 0
        %2113 = vmatpush1.bf16.msra.mxu0 0
        %2114 = vmatprep.subr.bf16.mxu0 0
        %2115 = vmatpush1.bf16.msra.mxu0 0
        %2116 = vmatprep.subr.bf16.mxu0 0
        %2117 = vmatpush1.bf16.msra.mxu0 0
        %2118 = vmatprep.subr.bf16.mxu0 0
        %2119 = vmatpush1.bf16.msra.mxu0 0
        %2120 = vmatprep.subr.bf16.mxu0 0
        %2121 = vmatpush1.bf16.msra.mxu0 0
        %2122 = vmatprep.subr.bf16.mxu0 0
        %2123 = vmatpush1.bf16.msra.mxu0 0
        %2124 = vmatprep.subr.bf16.mxu0 0
        %2125 = vmatpush1.bf16.msra.mxu0 0
        %2126 = vmatprep.subr.bf16.mxu0 0
        %2127 = vmatpush1.bf16.msra.mxu0 0
        %2128 = vmatprep.subr.bf16.mxu0 0
        %2129 = vmatpush1.bf16.msra.mxu0 0
        %2130 = vmatprep.subr.bf16.mxu0 0
        %2131 = vmatpush1.bf16.msra.mxu0 0
        %2132 = vmatprep.subr.bf16.mxu0 0
        %2133 = vmatpush1.bf16.msra.mxu0 0
        %2134 = vmatprep.subr.bf16.mxu0 0
        %2135 = vmatpush1.bf16.msra.mxu0 0
        %2136 = vmatprep.mubr.bf16.mxu0 0
        %2137 = vmatmul.mubr.bf16.gmra.mrb[0].mxu0 %v2102
        %v2138 = vpop.f32.mrb[0].mxu0
        %v2139 = vadd.f32 %v2086, %v2138
        %v2140 = vpop.f32.mrb[0].mxu0
        %v2141 = vpop.f32.mrb[0].mxu0
        %v2142 = vadd.f32 %v2086, %v2141
        %v2143 = vpop.f32.mrb[0].mxu0
        %2144 = vdwg.mxu0
        %v2145 = vmax.f32 %v2139, 0.0
        %v2146 = vmax.f32 %v2142, 0.0
        %v2147 = vpack.c.bf16 %v2146, %v2145
        %v2148 = vld [vmem:[%s809] sm:$0xf]
        %v2149 = vld [vmem:[%s809 + $0x4] sm:$0xf]
        %v2150 = vld [vmem:[%s809 + $0x8] sm:$0xf]
        %v2151 = vld [vmem:[%s809 + $0xc] sm:$0xf]
        %v2152 = vld [vmem:[%s809 + $0x10] sm:$0xf]
        %v2153 = vld [vmem:[%s809 + $0x14] sm:$0xf]
        %v2154 = vld [vmem:[%s809 + $0x18] sm:$0xf]
        %v2155 = vld [vmem:[%s809 + $0x1c] sm:$0xf]
        %v2164 = vunpack.c.l.b16 %v2148
        %v2165 = vunpack.c.l.b16 %v2149
        %v2166 = vunpack.c.l.b16 %v2150
        %v2167 = vunpack.c.l.b16 %v2151
        %v2168 = vunpack.c.l.b16 %v2152
        %v2169 = vunpack.c.l.b16 %v2153
        %v2170 = vunpack.c.l.b16 %v2154
        %v2171 = vunpack.c.l.b16 %v2155
        %v2172 = vpack.c.b16 %v2165, %v2164
        %v2173 = vpack.c.b16 %v2167, %v2166
        %v2174 = vpack.c.b16 %v2169, %v2168
        %v2175 = vpack.c.b16 %v2171, %v2170
        %vm2180 = vcmask 523264
        %v2182 = vsel %vm2180, %v2147, 0
        %2184 = vmatprep.subr.bf16.mxu0 0
        %2185 = vmatpush1.bf16.msra.mxu0 %v2172
        %2186 = vmatprep.subr.bf16.mxu0 0
        %2187 = vmatpush1.bf16.msra.mxu0 %v2173
        %2188 = vmatprep.subr.bf16.mxu0 0
        %2189 = vmatpush1.bf16.msra.mxu0 %v2174
        %2190 = vmatprep.subr.bf16.mxu0 0
        %2191 = vmatpush1.bf16.msra.mxu0 %v2175
        %2192 = vmatprep.subr.bf16.mxu0 0
        %2193 = vmatpush1.bf16.msra.mxu0 0
        %2194 = vmatprep.subr.bf16.mxu0 0
        %2195 = vmatpush1.bf16.msra.mxu0 0
        %2196 = vmatprep.subr.bf16.mxu0 0
        %2197 = vmatpush1.bf16.msra.mxu0 0
        %2198 = vmatprep.subr.bf16.mxu0 0
        %2199 = vmatpush1.bf16.msra.mxu0 0
        %2200 = vmatprep.subr.bf16.mxu0 0
        %2201 = vmatpush1.bf16.msra.mxu0 0
        %2202 = vmatprep.subr.bf16.mxu0 0
        %2203 = vmatpush1.bf16.msra.mxu0 0
        %2204 = vmatprep.subr.bf16.mxu0 0
        %2205 = vmatpush1.bf16.msra.mxu0 0
        %2206 = vmatprep.subr.bf16.mxu0 0
        %2207 = vmatpush1.bf16.msra.mxu0 0
        %2208 = vmatprep.subr.bf16.mxu0 0
        %2209 = vmatpush1.bf16.msra.mxu0 0
        %2210 = vmatprep.subr.bf16.mxu0 0
        %2211 = vmatpush1.bf16.msra.mxu0 0
        %2212 = vmatprep.subr.bf16.mxu0 0
        %2213 = vmatpush1.bf16.msra.mxu0 0
        %2214 = vmatprep.subr.bf16.mxu0 0
        %2215 = vmatpush1.bf16.msra.mxu0 0
        %2216 = vmatprep.mubr.bf16.mxu0 0
        %2217 = vmatmul.mubr.bf16.gmra.mrb[0].mxu0 %v2182
        %v2218 = vpop.f32.mrb[0].mxu0
        %v2219 = vadd.f32 0.0, %v2218
        %v2220 = vpop.f32.mrb[0].mxu0
        %v2221 = vpop.f32.mrb[0].mxu0
        %v2222 = vadd.f32 0.0, %v2221
        %v2223 = vpop.f32.mrb[0].mxu0
        %2224 = vdwg.mxu0
        %v2225 = vld [vmem:[#allocation2] sm:$0xff]
        %v2226 = vld [vmem:[#allocation2 + $0x8] sm:$0xff]
        %v2227 = vadd.f32 %v2225, %v2219
        %v2228 = vadd.f32 %v2226, %v2222
        %2229 = vst.msk [vmem:[#allocation2] sm:$0xff] %vm2100, %v2227
        %2230 = vst.msk [vmem:[#allocation2 + $0x8] sm:$0xff] %vm2100, %v2228
        // Predicated region
        $region105: #{tpu_custom_call.1} parent=83 // pred_check
          %p2231 = pneg %p817
        $region106: #{tpu_custom_call.1} parent=83 // pred_check_branch
          %2233 = sbr.rel (%p2231) target = $region108
        $region107: #{tpu_custom_call.1} parent=83 // pred_region
          %v2234 = vld [vmem:[#allocation2] sm:$0xff]
          %v2235 = vld [vmem:[#allocation2 + $0x8] sm:$0xff]
          %v2236 = vld [vmem:[%s813] sm:$0x1]
          %v2238 = vlaneseq
          %v2239 = vshrl.u32 %v2238, 7
          %v2240 = vsub.s32 0, %v2239
          %v2241 = vrot.slane %v2236, %v2240
          %v2243 = vadd.f32 %v2234, %v2241
          %v2244 = vadd.f32 %v2235, %v2241
          %2245 = vst.msk [vmem:[#allocation2] sm:$0xff] %vm2100, %v2243
          %2246 = vst.msk [vmem:[#allocation2 + $0x8] sm:$0xff] %vm2100, %v2244
        $region108: #{tpu_custom_call.1} parent=83 // pred_fallthru
          _
        %p2247 = scmp.eq.s32.totalorder %s38, 1
        %p2248 = pnand %p2247, %p817
        %p2249 = pneg %p2248
        // Predicated region
        $region109: #{tpu_custom_call.1} parent=83 // pred_check
          _
        $region110: #{tpu_custom_call.1} parent=83 // pred_check_branch
          %2251 = sbr.rel (%p2248) target = $region112
        $region111: #{tpu_custom_call.1} parent=83 // pred_region
          %v2252 = vld [vmem:[#allocation2] sm:$0xff]
          %v2253 = vld [vmem:[#allocation2 + $0x8] sm:$0xff]
          %v2254 = vld [vmem:[%s14] sm:$0x1]
          %v2255 = vld [vmem:[%s15] sm:$0x1]
          %v2256 = vsel %vm2100, %v2252, 0.0
          %2257 = vadd.xlane.f32.xlu0 %v2256
          %v2258 = vpop.xlane.xlu0 %2257
          %v2259 = vsel %vm2100, %v2253, 0.0
          %2260 = vadd.xlane.f32.xlu0 %v2259
          %v2261 = vpop.xlane.xlu0 %2260
          %v2262 = vrcp.pop 32.0
          %v2263 = vmul.f32 %v2258, %v2262
          %v2264 = vmul.f32 %v2261, %v2262
          %v2265 = vsub.f32 %v2252, %v2263
          %v2266 = vsub.f32 %v2253, %v2264
          %v2267 = vmul.f32 %v2265, %v2265
          %v2268 = vmul.f32 %v2266, %v2266
          %v2269 = vsel %vm2100, %v2267, 0.0
          %2270 = vadd.xlane.f32.xlu0 %v2269
          %v2271 = vpop.xlane.xlu0 %2270
          %v2272 = vsel %vm2100, %v2268, 0.0
          %2273 = vadd.xlane.f32.xlu0 %v2272
          %v2274 = vpop.xlane.xlu0 %2273
          %v2275 = vmul.f32 %v2271, 0.032258064
          %v2276 = vmul.f32 %v2274, 0.032258064
          %v2277 = vrsqrt.pop %v2275
          %v2278 = vmul.f32 %v2275, %v2277
          %vm2279 = vcmp.eq.f32.partialorder %v2275, inf
          %v2280 = vsel %vm2279, %v2275, %v2278
          %vm2281 = vcmp.eq.f32.partialorder %v2275, 0.0
          %v2282 = vand.u32 %v2275, 2147483648
          %v2283 = vsel %vm2281, %v2282, %v2280
          %v2284 = vrsqrt.pop %v2276
          %v2285 = vmul.f32 %v2276, %v2284
          %vm2286 = vcmp.eq.f32.partialorder %v2276, inf
          %v2287 = vsel %vm2286, %v2276, %v2285
          %vm2288 = vcmp.eq.f32.partialorder %v2276, 0.0
          %v2289 = vand.u32 %v2276, 2147483648
          %v2290 = vsel %vm2288, %v2289, %v2287
          %v2292 = vlaneseq
          %v2293 = vshrl.u32 %v2292, 7
          %v2294 = vsub.s32 0, %v2293
          %v2295 = vrot.slane %v2254, %v2294
          %v2297 = vmul.f32 %v2295, %v2265
          %v2298 = vmul.f32 %v2295, %v2266
          %v2299 = vadd.f32 %v2283, 1e-06
          %v2300 = vadd.f32 %v2290, 1e-06
          %v2301 = vrcp.pop %v2299
          %v2302 = vmul.f32 1.0, %v2301
          %v2303 = vrcp.pop %v2300
          %v2304 = vmul.f32 1.0, %v2303
          %v2305 = vmul.f32 %v2297, %v2302
          %v2306 = vmul.f32 %v2298, %v2304
          %v2308 = vlaneseq
          %v2309 = vshrl.u32 %v2308, 7
          %v2310 = vsub.s32 0, %v2309
          %v2311 = vrot.slane %v2255, %v2310
          %v2313 = vadd.f32 %v2305, %v2311
          %v2314 = vadd.f32 %v2306, %v2311
          %v2315 = vpack.c.bf16 %v2314, %v2313
          %v2317 = vunpack.c.l.b16 %v2315
          %v2318 = vunpack.c.h.b16 %v2315
          %v2319 = vpack.c.b16 %v2317, %v2317
          %v2320 = vpack.c.b16 %v2318, %v2318
          %vm2323 = vcmask 257024
          %2324 = vst.msk [vmem:[#allocation11] sm:$0xf] %vm2323, %v2319
          %2325 = vst.msk [vmem:[#allocation11 + $0x4] sm:$0xf] %vm2323, %v2320
        $region112: #{tpu_custom_call.1} parent=83 // pred_fallthru
          _
        // Predicated region
        $region113: #{tpu_custom_call.1} parent=83 // pred_check
          %p2326 = pneg %p481
        $region114: #{tpu_custom_call.1} parent=83 // pred_check_branch
          %2328 = sbr.rel (%p2326) target = $region116
        $region115: #{tpu_custom_call.1} parent=83 // pred_region
          %s2329 = smul.u32 2, %s37
          %s2331 = ssub.s32 128, 128
          %2332 = vsyncadd [#allocation7], %s2331
          %s2333 = smul.addr %s2329, 64
          %s2334 = scalar_lea.hbm %s16, %s2333
          %s2335 = sshll.u32 [#allocation11], 4
          %s2336 = int_to_ptr.vmem [resolvable:$true] %s2335
          %2341 = dma.vmem_to_hbm [thread:$0]  %s2336, 128, %s2334, [#allocation7], 64, 64, 4
        $region116: #{tpu_custom_call.1} parent=83 // pred_fallthru
          _
        // Predicated region
        $region117: #{tpu_custom_call.1} parent=83 // pred_check
          %p2342 = pneg %p481
        $region118: #{tpu_custom_call.1} parent=83 // pred_check_branch
          %2344 = sbr.rel (%p2342) target = $region120
        $region119: #{tpu_custom_call.1} parent=83 // pred_region
          %2345 = dma.done [#allocation7], 128
        $region120: #{tpu_custom_call.1} parent=83 // pred_fallthru
          _
      $region84: #{tpu_custom_call.1} parent=5 // pred_fallthru
        _
      %p2346 = scmp.le.s32.totalorder 2, %s27
      // Predicated region
      $region121: #{tpu_custom_call.1} parent=5 // pred_check
        %p2347 = pneg %p2346
      $region122: #{tpu_custom_call.1} parent=5 // pred_check_branch
        %2349 = sbr.rel (%p2347) target = $region124
      $region123: #{tpu_custom_call.1} parent=5 // pred_region
        %s2350 = ssub.s32 %s27, 2
      $region124: #{tpu_custom_call.1} parent=5 // pred_fallthru
        _
    $region6: #{tpu_custom_call.1} parent=1 // loop_footer
      %s31 = sadd.s32 1, %s27
    $region7: #{tpu_custom_call.1} parent=1 // loop_footer_branch
      %26 = sbr.rel target = $region3
    $region8: #{tpu_custom_call.1} parent=1 // loop_exit
      _
    %2351 = vsyncpa [#allocation6], 1
    %s2352 = scalar_lea.sflag [#allocation6], 1
    %2353 = vsyncpa %s2352, 1
    %2354 = vsyncpa [#allocation9], 1
    %s2355 = scalar_lea.sflag [#allocation9], 1
    %2356 = vsyncpa %s2355, 1
    %2357 = vsyncpa [#allocation7], 1
    %s2358 = scalar_lea.sflag [#allocation7], 1
    %2359 = vsyncpa %s2358, 1

</llo_original>
